<compile_context>
chip_gen: v5e
topology: v5e:2x2
jax: 0.10.0
libtpu: 0.0.40
codegen_flags: <defaults>
</compile_context>

<pallas_src>
import functools
import math
import jax
import jax.numpy as jnp
from jax import lax
from jax.experimental import pallas as pl
from jax.experimental.pallas import tpu as pltpu


# ----------------------------- Pallas kernel --------------------------------
def selfatt_kernel(att_ref, m2_ref, neg_ref,
                   wwrap_ref, bwrap_ref,
                   wg_ref, bg_ref, whh_ref, bhh_ref,
                   wx_ref, wy_ref, wdot_ref,
                   wupv_ref, wupe_ref, wupev_ref, bup_ref,
                   out_ref,
                   g_ref, encf_ref, encb_ref,
                   *, B, T):
    H = wwrap_ref.shape[1]
    H2 = H // 2
    D2 = 2 * H2          # biGRU output width (== H)
    G = 3 * D2           # gate width (both directions, per-gate interleaved)
    f32 = jnp.float32

    # ---- att_wrapper (TimeDistributed Linear) + ReLU: one slab matmul ---------
    att = att_ref[...]                                               # (TB, H4) time-major
    h1 = jnp.dot(att, wwrap_ref[...], preferred_element_type=f32) + bwrap_ref[...]
    h1 = jnp.maximum(h1, 0.0)
    # dropout -> identity at inference

    # ---- GRU input-gate projection, both directions, no duplicated rows -------
    # column layout (interleaved per gate): [r_f r_b | z_f z_b | n_f n_b]
    g_ref[...] = jnp.dot(h1, wg_ref[...], preferred_element_type=f32) + bg_ref[...]

    whh = whh_ref[...]                                               # (D2, G) block-diag
    bhh = bhh_ref[...]                                               # (1, G)
    # fwd/bwd column selector, hoisted out of the recurrence
    lane = lax.broadcasted_iota(jnp.int32, (B, G), 1)
    fwd_cols = (lane % D2) < H2

    # ---- fused bidirectional GRU recurrence (one matmul, two stores per step) --
    def gru_step(t, h):                                              # h = [h_f | h_b] (B, D2)
        gf = g_ref[pl.ds(t * B, B), :]                               # gates @ input time t
        gb = g_ref[pl.ds((T - 1 - t) * B, B), :]                     # gates @ input time T-1-t
        gi = jnp.where(fwd_cols, gf, gb)                             # (B, G)
        gh = jnp.dot(h, whh, preferred_element_type=f32) + bhh       # (B, G)
        r = jax.nn.sigmoid(gi[:, 0:D2] + gh[:, 0:D2])
        z = jax.nn.sigmoid(gi[:, D2:2 * D2] + gh[:, D2:2 * D2])
        n = jnp.tanh(gi[:, 2 * D2:G] + r * gh[:, 2 * D2:G])
        h_new = (1.0 - z) * n + z * h                                # (B, D2)
        encf_ref[pl.ds(t * B, B), :] = h_new[:, 0:H2]                # output time t
        encb_ref[pl.ds((T - 1 - t) * B, B), :] = h_new[:, H2:D2]     # output time T-1-t
        return h_new

    _ = lax.fori_loop(0, T, gru_step, jnp.zeros((B, D2), f32), unroll=True)

    # ---- TriLinear self-attention, batched over B via block-diagonal mask ------
    enc = jnp.concatenate([encf_ref[...], encb_ref[...]], axis=-1)   # (TB, D2) time-major
    xf = jnp.dot(enc, wx_ref[...], preferred_element_type=f32)       # (TB, 1)
    yf = lax.dot_general(wy_ref[...], enc, (((0,), (1,)), ((), ())),
                         preferred_element_type=f32)                 # (1, TB)
    dot_factors = lax.dot_general(enc * wdot_ref[...], enc, (((1,), (1,)), ((), ())),
                                  preferred_element_type=f32)        # (TB, TB)
    scores = dot_factors + xf + yf

    # masked softmax: m2/neg precomputed host-side.
    #   same-batch valid -> score, same-batch masked/diag -> -1e30, cross-batch -> -2e30
    # so fully-masked pad rows renormalize over their own batch (matches reference).
    logits = m2_ref[...] * scores + neg_ref[...]
    mx = jnp.max(logits, axis=-1, keepdims=True)
    e = jnp.exp(logits - mx)
    probs = e * pl.reciprocal(jnp.sum(e, axis=-1, keepdims=True), approx=True)

    vec = jnp.dot(probs, enc, preferred_element_type=f32)            # (TB, D2)

    # ---- upsampler: [vec | enc | enc*vec] @ w_up as three accumulating matmuls --
    up = (jnp.dot(vec, wupv_ref[...], preferred_element_type=f32)
          + jnp.dot(enc, wupe_ref[...], preferred_element_type=f32)
          + jnp.dot(enc * vec, wupev_ref[...], preferred_element_type=f32)
          + bup_ref[...])
    up = jnp.maximum(up, 0.0)                                        # (TB, H4)

    out_ref[...] = att + up          # residual; final dropout is identity (inference)


# ------------------------------- wrapper -------------------------------------
def selfatt_forward(att, c_mask, params):
    B, T, H4 = att.shape
    H = params["w_wrap"].shape[1]
    H2 = H // 2
    D2 = 2 * H2
    TB = T * B
    f32 = jnp.float32

    # ------- layout plumbing (host side, exact): time-major row = t*B + b -------
    att_tm = jnp.transpose(att, (1, 0, 2)).reshape(TB, H4)           # att DMA'd once

    cm = c_mask.astype(f32)
    mvec = cm.T.reshape(TB)                                          # value at row t*B+b
    idx = jnp.arange(TB)
    same_b = (idx[:, None] % B == idx[None, :] % B).astype(f32)
    diff_t = (idx[:, None] // B != idx[None, :] // B).astype(f32)
    m2 = mvec[:, None] * mvec[None, :] * same_b * diff_t             # (TB, TB)
    neg = (1.0 - m2) * (-1e30) + (1.0 - same_b) * (-1e30)            # additive bias

    # ------- derived GRU weights: per-gate interleaved [f|b] column layout ------
    def split3(w):
        return w[:, :H2], w[:, H2:2 * H2], w[:, 2 * H2:]

    wf_r, wf_z, wf_n = split3(params["wih_f"])
    wb_r, wb_z, wb_n = split3(params["wih_b"])
    wg = jnp.concatenate([wf_r, wb_r, wf_z, wb_z, wf_n, wb_n], axis=1)   # (H, 3*D2), no zeros

    def inter_bias(bf, bb):
        return jnp.concatenate([bf[:H2], bb[:H2], bf[H2:2 * H2], bb[H2:2 * H2],
                                bf[2 * H2:], bb[2 * H2:]]).reshape(1, 3 * D2)

    bg = inter_bias(params["bih_f"], params["bih_b"])
    bhh_cat = inter_bias(params["bhh_f"], params["bhh_b"])

    vf_r, vf_z, vf_n = split3(params["whh_f"])
    vb_r, vb_z, vb_n = split3(params["whh_b"])
    Zh = jnp.zeros((H2, H2), f32)
    whh_cat = jnp.concatenate([
        jnp.concatenate([vf_r, Zh, vf_z, Zh, vf_n, Zh], axis=1),     # rows: h_f
        jnp.concatenate([Zh, vb_r, Zh, vb_z, Zh, vb_n], axis=1),     # rows: h_b
    ], axis=0)                                                       # (D2, 3*D2)

    # ------- upsampler weight split: conc = [vec | enc | enc*vec] ---------------
    wup_v = params["w_up"][:H]
    wup_e = params["w_up"][H:2 * H]
    wup_ev = params["w_up"][2 * H:]

    args = (att_tm, m2, neg,
            params["w_wrap"], params["b_wrap"].reshape(1, H),
            wg, bg, whh_cat, bhh_cat,
            params["wx"], params["wy"], params["wdot"].reshape(1, D2),
            wup_v, wup_e, wup_ev, params["b_up"].reshape(1, H4))

    def full_spec(shape):
        nd = len(shape)
        return pl.BlockSpec(shape, lambda i, _nd=nd: (0,) * _nd)

    out_tm = pl.pallas_call(
        functools.partial(selfatt_kernel, B=B, T=T),
        out_shape=jax.ShapeDtypeStruct((TB, H4), f32),
        grid=(1,),
        in_specs=[full_spec(a.shape) for a in args],
        out_specs=full_spec((TB, H4)),
        scratch_shapes=[
            pltpu.VMEM((TB, 3 * D2), f32),   # GRU input-gate projections (time-major)
            pltpu.VMEM((TB, H2), f32),       # fwd enc outputs (time-major)
            pltpu.VMEM((TB, H2), f32),       # bwd enc outputs (time-major)
        ],
        input_output_aliases={0: 0},         # out aliases att_tm (same shape/dtype)
        compiler_params=pltpu.CompilerParams(dimension_semantics=("arbitrary",)),
    )(*args)

    return jnp.transpose(out_tm.reshape(T, B, H4), (1, 0, 2))        # (B, T, H4)


# ------------------------- deterministic parameters --------------------------
def init_params(key, H):
    H2 = H // 2
    H4 = 4 * H
    G = 3 * H2
    ks = jax.random.split(key, 15)

    def u(k, shape, bound):
        return jax.random.uniform(k, shape, jnp.float32, -bound, bound)

    lin_b = 1.0 / math.sqrt(H4)
    gru_b = 1.0 / math.sqrt(H2)
    up_b = 1.0 / math.sqrt(3 * H)
    tri_b = math.sqrt(6.0 / (H * 3 + 1))

    return dict(
        w_wrap=u(ks[0], (H4, H), lin_b), b_wrap=u(ks[1], (H,), lin_b),
        wih_f=u(ks[2], (H, G), gru_b), whh_f=u(ks[3], (H2, G), gru_b),
        bih_f=u(ks[4], (G,), gru_b), bhh_f=u(ks[5], (G,), gru_b),
        wih_b=u(ks[6], (H, G), gru_b), whh_b=u(ks[7], (H2, G), gru_b),
        bih_b=u(ks[8], (G,), gru_b), bhh_b=u(ks[9], (G,), gru_b),
        wx=u(ks[10], (H, 1), tri_b), wy=u(ks[11], (H, 1), tri_b),
        wdot=u(ks[12], (H,), tri_b),
        w_up=u(ks[13], (3 * H, H4), up_b), b_up=u(ks[14], (H4,), up_b),
    )


# ----------------------------- pure-JAX reference ----------------------------
def selfatt_ref(att, c_mask, params):
    B, T, H4 = att.shape
    H = params["w_wrap"].shape[1]
    H2 = H // 2
    h1 = jax.nn.relu(att @ params["w_wrap"] + params["b_wrap"])

    def gru_dir(x, wih, whh, bih, bhh, reverse):
        def step(h, xt):
            gi = xt @ wih + bih
            gh = h @ whh + bhh
            r = jax.nn.sigmoid(gi[:, :H2] + gh[:, :H2])
            z = jax.nn.sigmoid(gi[:, H2:2 * H2] + gh[:, H2:2 * H2])
            n = jnp.tanh(gi[:, 2 * H2:] + r * gh[:, 2 * H2:])
            hn = (1 - z) * n + z * h
            return hn, hn
        xs = jnp.swapaxes(x, 0, 1)
        h0 = jnp.zeros((x.shape[0], H2), jnp.float32)
        _, ys = lax.scan(step, h0, xs, reverse=reverse)
        return jnp.swapaxes(ys, 0, 1)

    fwd = gru_dir(h1, params["wih_f"], params["whh_f"], params["bih_f"], params["bhh_f"], False)
    bwd = gru_dir(h1, params["wih_b"], params["whh_b"], params["bih_b"], params["bhh_b"], True)
    enc = jnp.concatenate([fwd, bwd], axis=-1)

    xf = enc @ params["wx"]                          # (B, T, 1)
    yf = jnp.swapaxes(enc @ params["wy"], 1, 2)      # (B, 1, T)
    dot = jnp.einsum("btd,bsd->bts", enc * params["wdot"], enc)
    scores = dot + xf + yf

    cm = c_mask.astype(jnp.float32)
    mask2d = cm[:, :, None] * cm[:, None, :]
    mask2d = mask2d * (1.0 - jnp.eye(enc.shape[1], dtype=jnp.float32)[None])
    logits = mask2d * scores + (1.0 - mask2d) * (-1e30)
    probs = jax.nn.softmax(logits, axis=-1)
    vec = probs @ enc
    conc = jnp.concatenate([vec, enc, enc * vec], axis=-1)
    up = jax.nn.relu(conc @ params["w_up"] + params["b_up"])
    return att + up


# ----------------------------------- main -------------------------------------
if __name__ == "__main__":
    B, T, H = 2, 16, 32              # hidden_size=32, i==1 path => att feature dim = 4*H
    key = jax.random.PRNGKey(0)
    kp, ka = jax.random.split(key, 2)
    params = init_params(kp, H)

    att = jax.random.normal(ka, (B, T, 4 * H), jnp.float32)
    c_mask = jnp.ones((B, T), jnp.float32).at[1, 12:].set(0.0)   # pad last 4 of batch 1

    fwd_fn = jax.jit(selfatt_forward)
    out = fwd_fn(att, c_mask, params)
    out = jax.block_until_ready(out)

    ref = selfatt_ref(att, c_mask, params)
    assert out.shape == (B, T, 4 * H)
    assert bool(jnp.all(jnp.isfinite(out)))
    max_err = float(jnp.max(jnp.abs(out - ref)))
    assert max_err < 1e-2, f"mismatch vs reference: {max_err}"
    print("KERNEL_OK")
</pallas_src>

<mosaic_0001>
module attributes {stable_mosaic.version = 11 : i64} {
  func.func @selfatt_kernel(%arg0: i32, %arg1: memref<32x128xf32, #tpu.memory_space<vmem>>, %arg2: memref<32x32xf32, #tpu.memory_space<vmem>>, %arg3: memref<32x32xf32, #tpu.memory_space<vmem>>, %arg4: memref<128x32xf32, #tpu.memory_space<vmem>>, %arg5: memref<1x32xf32, #tpu.memory_space<vmem>>, %arg6: memref<32x96xf32, #tpu.memory_space<vmem>>, %arg7: memref<1x96xf32, #tpu.memory_space<vmem>>, %arg8: memref<32x96xf32, #tpu.memory_space<vmem>>, %arg9: memref<1x96xf32, #tpu.memory_space<vmem>>, %arg10: memref<32x1xf32, #tpu.memory_space<vmem>>, %arg11: memref<32x1xf32, #tpu.memory_space<vmem>>, %arg12: memref<1x32xf32, #tpu.memory_space<vmem>>, %arg13: memref<32x128xf32, #tpu.memory_space<vmem>>, %arg14: memref<32x128xf32, #tpu.memory_space<vmem>>, %arg15: memref<32x128xf32, #tpu.memory_space<vmem>>, %arg16: memref<1x128xf32, #tpu.memory_space<vmem>>, %arg17: memref<32x128xf32, #tpu.memory_space<vmem>>, %arg18: memref<32x96xf32, #tpu.memory_space<vmem>>, %arg19: memref<32x16xf32, #tpu.memory_space<vmem>>, %arg20: memref<32x16xf32, #tpu.memory_space<vmem>>) attributes {dimension_semantics = [#tpu.dimension_semantics<arbitrary>], iteration_bounds = array<i64: 1>, scalar_prefetch = 0 : i64, scratch_operands = 3 : i64, tpu.core_type = #tpu.core_type<tc>, window_params = [{pipeline_mode = #tpu.pipeline_mode<synchronous>, transform_indices = @transform_0, window_bounds = array<i64: 32, 128>}, {pipeline_mode = #tpu.pipeline_mode<synchronous>, transform_indices = @transform_1, window_bounds = array<i64: 32, 32>}, {pipeline_mode = #tpu.pipeline_mode<synchronous>, transform_indices = @transform_2, window_bounds = array<i64: 32, 32>}, {pipeline_mode = #tpu.pipeline_mode<synchronous>, transform_indices = @transform_3, window_bounds = array<i64: 128, 32>}, {pipeline_mode = #tpu.pipeline_mode<synchronous>, transform_indices = @transform_4, window_bounds = array<i64: 1, 32>}, {pipeline_mode = #tpu.pipeline_mode<synchronous>, transform_indices = @transform_5, window_bounds = array<i64: 32, 96>}, {pipeline_mode = #tpu.pipeline_mode<synchronous>, transform_indices = @transform_6, window_bounds = array<i64: 1, 96>}, {pipeline_mode = #tpu.pipeline_mode<synchronous>, transform_indices = @transform_7, window_bounds = array<i64: 32, 96>}, {pipeline_mode = #tpu.pipeline_mode<synchronous>, transform_indices = @transform_8, window_bounds = array<i64: 1, 96>}, {pipeline_mode = #tpu.pipeline_mode<synchronous>, transform_indices = @transform_9, window_bounds = array<i64: 32, 1>}, {pipeline_mode = #tpu.pipeline_mode<synchronous>, transform_indices = @transform_10, window_bounds = array<i64: 32, 1>}, {pipeline_mode = #tpu.pipeline_mode<synchronous>, transform_indices = @transform_11, window_bounds = array<i64: 1, 32>}, {pipeline_mode = #tpu.pipeline_mode<synchronous>, transform_indices = @transform_12, window_bounds = array<i64: 32, 128>}, {pipeline_mode = #tpu.pipeline_mode<synchronous>, transform_indices = @transform_13, window_bounds = array<i64: 32, 128>}, {pipeline_mode = #tpu.pipeline_mode<synchronous>, transform_indices = @transform_14, window_bounds = array<i64: 32, 128>}, {pipeline_mode = #tpu.pipeline_mode<synchronous>, transform_indices = @transform_15, window_bounds = array<i64: 1, 128>}, {pipeline_mode = #tpu.pipeline_mode<synchronous>, transform_indices = @transform_16, window_bounds = array<i64: 32, 128>}]} {
    %c0 = arith.constant 0 : index
    %c0_0 = arith.constant 0 : index
    %0 = vector.load %arg1[%c0, %c0_0] : memref<32x128xf32, #tpu.memory_space<vmem>>, vector<32x128xf32>
    %c0_1 = arith.constant 0 : index
    %c0_2 = arith.constant 0 : index
    %1 = vector.load %arg4[%c0_1, %c0_2] : memref<128x32xf32, #tpu.memory_space<vmem>>, vector<128x32xf32>
    %cst = arith.constant dense<0.000000e+00> : vector<32x32xf32>
    %2 = tpu.matmul %0, %1, %cst {dimension_numbers = #tpu.dot_dimension_numbers<[1], [0], [0], [1], [0, 0, 1, 1], [], []>} : vector<32x128xf32>, vector<128x32xf32>, vector<32x32xf32> -> vector<32x32xf32>
    %c0_3 = arith.constant 0 : index
    %c0_4 = arith.constant 0 : index
    %3 = vector.load %arg5[%c0_3, %c0_4] : memref<1x32xf32, #tpu.memory_space<vmem>>, vector<1x32xf32>
    %4 = vector.broadcast %3 : vector<1x32xf32> to vector<32x32xf32>
    %5 = arith.addf %2, %4 : vector<32x32xf32>
    %cst_5 = arith.constant 0.000000e+00 : f32
    %6 = vector.broadcast %cst_5 : f32 to vector<32x32xf32>
    %7 = arith.maximumf %5, %6 : vector<32x32xf32>
    %c0_6 = arith.constant 0 : index
    %c0_7 = arith.constant 0 : index
    %8 = vector.load %arg6[%c0_6, %c0_7] : memref<32x96xf32, #tpu.memory_space<vmem>>, vector<32x96xf32>
    %cst_8 = arith.constant dense<0.000000e+00> : vector<32x96xf32>
    %9 = tpu.matmul %7, %8, %cst_8 {dimension_numbers = #tpu.dot_dimension_numbers<[1], [0], [0], [1], [0, 0, 1, 1], [], []>} : vector<32x32xf32>, vector<32x96xf32>, vector<32x96xf32> -> vector<32x96xf32>
    %c0_9 = arith.constant 0 : index
    %c0_10 = arith.constant 0 : index
    %10 = vector.load %arg7[%c0_9, %c0_10] : memref<1x96xf32, #tpu.memory_space<vmem>>, vector<1x96xf32>
    %11 = vector.broadcast %10 : vector<1x96xf32> to vector<32x96xf32>
    %12 = arith.addf %9, %11 : vector<32x96xf32>
    %c0_11 = arith.constant 0 : index
    %c0_12 = arith.constant 0 : index
    %13 = vector.load %arg18[%c0_11, %c0_12] : memref<32x96xf32, #tpu.memory_space<vmem>>, vector<32x96xf32>
    tpu.vector_store %arg18[%c0_11, %c0_12], %12 {strides = array<i32>} : memref<32x96xf32, #tpu.memory_space<vmem>>, vector<32x96xf32>,
    %c0_13 = arith.constant 0 : index
    %c0_14 = arith.constant 0 : index
    %14 = vector.load %arg8[%c0_13, %c0_14] : memref<32x96xf32, #tpu.memory_space<vmem>>, vector<32x96xf32>
    %c0_15 = arith.constant 0 : index
    %c0_16 = arith.constant 0 : index
    %15 = vector.load %arg9[%c0_15, %c0_16] : memref<1x96xf32, #tpu.memory_space<vmem>>, vector<1x96xf32>
    %16 = tpu.iota {dimensions = array<i32: 1>} : vector<2x96xi32>
    %c32_i32 = arith.constant 32 : i32
    %c0_i32 = arith.constant 0 : i32
    %17 = arith.cmpi eq, %c32_i32, %c0_i32 : i32
    %c1_i32 = arith.constant 1 : i32
    %18 = arith.select %17, %c1_i32, %c32_i32 : i32
    %19 = vector.broadcast %18 : i32 to vector<2x96xi32>
    %20 = arith.remsi %16, %19 : vector<2x96xi32>
    %c0_i32_17 = arith.constant 0 : i32
    %21 = vector.broadcast %c0_i32_17 : i32 to vector<2x96xi32>
    %22 = arith.cmpi ne, %20, %21 : vector<2x96xi32>
    %c0_i32_18 = arith.constant 0 : i32
    %23 = vector.broadcast %c0_i32_18 : i32 to vector<2x96xi32>
    %24 = arith.cmpi slt, %20, %23 : vector<2x96xi32>
    %c0_i32_19 = arith.constant 0 : i32
    %25 = arith.cmpi slt, %18, %c0_i32_19 : i32
    %26 = vector.broadcast %25 : i1 to vector<2x96xi1>
    %27 = vector.broadcast %26 : vector<2x96xi1> to vector<2x96xi1>
    %28 = arith.xori %24, %27 : vector<2x96xi1>
    %29 = arith.andi %28, %22 : vector<2x96xi1>
    %30 = vector.broadcast %18 : i32 to vector<2x96xi32>
    %31 = arith.addi %20, %30 : vector<2x96xi32>
    %32 = arith.select %29, %31, %20 : vector<2x96xi1>, vector<2x96xi32>
    %c16_i32 = arith.constant 16 : i32
    %33 = vector.broadcast %c16_i32 : i32 to vector<2x96xi32>
    %34 = arith.cmpi slt, %32, %33 : vector<2x96xi32>
    %cst_20 = arith.constant 0.000000e+00 : f32
    %35 = vector.broadcast %cst_20 : f32 to vector<2x32xf32>
    %c0_i32_21 = arith.constant 0 : i32
    %c2_i32 = arith.constant 2 : i32
    %36 = arith.muli %c0_i32_21, %c2_i32 : i32
    %37 = arith.index_cast %36 : i32 to index
    %c0_22 = arith.constant 0 : index
    %38 = vector.load %arg18[%37, %c0_22] : memref<32x96xf32, #tpu.memory_space<vmem>>, vector<2x96xf32>
    %c15_i32 = arith.constant 15 : i32
    %39 = arith.subi %c15_i32, %c0_i32_21 : i32
    %c2_i32_23 = arith.constant 2 : i32
    %40 = arith.muli %39, %c2_i32_23 : i32
    %41 = arith.index_cast %40 : i32 to index
    %c0_24 = arith.constant 0 : index
    %42 = vector.load %arg18[%41, %c0_24] : memref<32x96xf32, #tpu.memory_space<vmem>>, vector<2x96xf32>
    %43 = arith.select %34, %38, %42 : vector<2x96xi1>, vector<2x96xf32>
    %cst_25 = arith.constant dense<0.000000e+00> : vector<2x96xf32>
    %44 = tpu.matmul %35, %14, %cst_25 {dimension_numbers = #tpu.dot_dimension_numbers<[1], [0], [0], [1], [0, 0, 1, 1], [], []>} : vector<2x32xf32>, vector<32x96xf32>, vector<2x96xf32> -> vector<2x96xf32>
    %45 = vector.broadcast %15 : vector<1x96xf32> to vector<2x96xf32>
    %46 = arith.addf %44, %45 : vector<2x96xf32>
    %47 = vector.extract_strided_slice %43 {offsets = [0, 0], sizes = [2, 32], strides = [1, 1]} : vector<2x96xf32> to vector<2x32xf32>
    %48 = vector.extract_strided_slice %46 {offsets = [0, 0], sizes = [2, 32], strides = [1, 1]} : vector<2x96xf32> to vector<2x32xf32>
    %49 = arith.addf %47, %48 : vector<2x32xf32>
    %50 = arith.negf %49 : vector<2x32xf32>
    %51 = math.exp %50 : vector<2x32xf32>
    %cst_26 = arith.constant 1.000000e+00 : f32
    %52 = vector.broadcast %cst_26 : f32 to vector<2x32xf32>
    %53 = arith.addf %52, %51 : vector<2x32xf32>
    %54 = arith.divf %52, %53 : vector<2x32xf32>
    %55 = vector.extract_strided_slice %43 {offsets = [0, 32], sizes = [2, 32], strides = [1, 1]} : vector<2x96xf32> to vector<2x32xf32>
    %56 = vector.extract_strided_slice %46 {offsets = [0, 32], sizes = [2, 32], strides = [1, 1]} : vector<2x96xf32> to vector<2x32xf32>
    %57 = arith.addf %55, %56 : vector<2x32xf32>
    %58 = arith.negf %57 : vector<2x32xf32>
    %59 = math.exp %58 : vector<2x32xf32>
    %cst_27 = arith.constant 1.000000e+00 : f32
    %60 = vector.broadcast %cst_27 : f32 to vector<2x32xf32>
    %61 = arith.addf %60, %59 : vector<2x32xf32>
    %62 = arith.divf %60, %61 : vector<2x32xf32>
    %63 = vector.extract_strided_slice %43 {offsets = [0, 64], sizes = [2, 32], strides = [1, 1]} : vector<2x96xf32> to vector<2x32xf32>
    %64 = vector.extract_strided_slice %46 {offsets = [0, 64], sizes = [2, 32], strides = [1, 1]} : vector<2x96xf32> to vector<2x32xf32>
    %65 = arith.mulf %54, %64 : vector<2x32xf32>
    %66 = arith.addf %63, %65 : vector<2x32xf32>
    %67 = math.tanh %66 : vector<2x32xf32>
    %cst_28 = arith.constant 1.000000e+00 : f32
    %68 = vector.broadcast %cst_28 : f32 to vector<2x32xf32>
    %69 = arith.subf %68, %62 : vector<2x32xf32>
    %70 = arith.mulf %69, %67 : vector<2x32xf32>
    %71 = arith.mulf %62, %35 : vector<2x32xf32>
    %72 = arith.addf %70, %71 : vector<2x32xf32>
    %73 = vector.extract_strided_slice %72 {offsets = [0, 0], sizes = [2, 16], strides = [1, 1]} : vector<2x32xf32> to vector<2x16xf32>
    %c2_i32_29 = arith.constant 2 : i32
    %74 = arith.muli %c0_i32_21, %c2_i32_29 : i32
    %75 = arith.index_cast %74 : i32 to index
    %c0_30 = arith.constant 0 : index
    %76 = vector.load %arg19[%75, %c0_30] : memref<32x16xf32, #tpu.memory_space<vmem>>, vector<2x16xf32>
    tpu.vector_store %arg19[%75, %c0_30], %73 {strides = array<i32>} : memref<32x16xf32, #tpu.memory_space<vmem>>, vector<2x16xf32>,
    %77 = vector.extract_strided_slice %72 {offsets = [0, 16], sizes = [2, 16], strides = [1, 1]} : vector<2x32xf32> to vector<2x16xf32>
    %c15_i32_31 = arith.constant 15 : i32
    %78 = arith.subi %c15_i32_31, %c0_i32_21 : i32
    %c2_i32_32 = arith.constant 2 : i32
    %79 = arith.muli %78, %c2_i32_32 : i32
    %80 = arith.index_cast %79 : i32 to index
    %c0_33 = arith.constant 0 : index
    %81 = vector.load %arg20[%80, %c0_33] : memref<32x16xf32, #tpu.memory_space<vmem>>, vector<2x16xf32>
    tpu.vector_store %arg20[%80, %c0_33], %77 {strides = array<i32>} : memref<32x16xf32, #tpu.memory_space<vmem>>, vector<2x16xf32>,
    %c1_i32_34 = arith.constant 1 : i32
    %c2_i32_35 = arith.constant 2 : i32
    %82 = arith.muli %c1_i32_34, %c2_i32_35 : i32
    %83 = arith.index_cast %82 : i32 to index
    %c0_36 = arith.constant 0 : index
    %84 = vector.load %arg18[%83, %c0_36] : memref<32x96xf32, #tpu.memory_space<vmem>>, vector<2x96xf32>
    %c15_i32_37 = arith.constant 15 : i32
    %85 = arith.subi %c15_i32_37, %c1_i32_34 : i32
    %c2_i32_38 = arith.constant 2 : i32
    %86 = arith.muli %85, %c2_i32_38 : i32
    %87 = arith.index_cast %86 : i32 to index
    %c0_39 = arith.constant 0 : index
    %88 = vector.load %arg18[%87, %c0_39] : memref<32x96xf32, #tpu.memory_space<vmem>>, vector<2x96xf32>
    %89 = arith.select %34, %84, %88 : vector<2x96xi1>, vector<2x96xf32>
    %cst_40 = arith.constant dense<0.000000e+00> : vector<2x96xf32>
    %90 = tpu.matmul %72, %14, %cst_40 {dimension_numbers = #tpu.dot_dimension_numbers<[1], [0], [0], [1], [0, 0, 1, 1], [], []>} : vector<2x32xf32>, vector<32x96xf32>, vector<2x96xf32> -> vector<2x96xf32>
    %91 = vector.broadcast %15 : vector<1x96xf32> to vector<2x96xf32>
    %92 = arith.addf %90, %91 : vector<2x96xf32>
    %93 = vector.extract_strided_slice %89 {offsets = [0, 0], sizes = [2, 32], strides = [1, 1]} : vector<2x96xf32> to vector<2x32xf32>
    %94 = vector.extract_strided_slice %92 {offsets = [0, 0], sizes = [2, 32], strides = [1, 1]} : vector<2x96xf32> to vector<2x32xf32>
    %95 = arith.addf %93, %94 : vector<2x32xf32>
    %96 = arith.negf %95 : vector<2x32xf32>
    %97 = math.exp %96 : vector<2x32xf32>
    %cst_41 = arith.constant 1.000000e+00 : f32
    %98 = vector.broadcast %cst_41 : f32 to vector<2x32xf32>
    %99 = arith.addf %98, %97 : vector<2x32xf32>
    %100 = arith.divf %98, %99 : vector<2x32xf32>
    %101 = vector.extract_strided_slice %89 {offsets = [0, 32], sizes = [2, 32], strides = [1, 1]} : vector<2x96xf32> to vector<2x32xf32>
    %102 = vector.extract_strided_slice %92 {offsets = [0, 32], sizes = [2, 32], strides = [1, 1]} : vector<2x96xf32> to vector<2x32xf32>
    %103 = arith.addf %101, %102 : vector<2x32xf32>
    %104 = arith.negf %103 : vector<2x32xf32>
    %105 = math.exp %104 : vector<2x32xf32>
    %cst_42 = arith.constant 1.000000e+00 : f32
    %106 = vector.broadcast %cst_42 : f32 to vector<2x32xf32>
    %107 = arith.addf %106, %105 : vector<2x32xf32>
    %108 = arith.divf %106, %107 : vector<2x32xf32>
    %109 = vector.extract_strided_slice %89 {offsets = [0, 64], sizes = [2, 32], strides = [1, 1]} : vector<2x96xf32> to vector<2x32xf32>
    %110 = vector.extract_strided_slice %92 {offsets = [0, 64], sizes = [2, 32], strides = [1, 1]} : vector<2x96xf32> to vector<2x32xf32>
    %111 = arith.mulf %100, %110 : vector<2x32xf32>
    %112 = arith.addf %109, %111 : vector<2x32xf32>
    %113 = math.tanh %112 : vector<2x32xf32>
    %cst_43 = arith.constant 1.000000e+00 : f32
    %114 = vector.broadcast %cst_43 : f32 to vector<2x32xf32>
    %115 = arith.subf %114, %108 : vector<2x32xf32>
    %116 = arith.mulf %115, %113 : vector<2x32xf32>
    %117 = arith.mulf %108, %72 : vector<2x32xf32>
    %118 = arith.addf %116, %117 : vector<2x32xf32>
    %119 = vector.extract_strided_slice %118 {offsets = [0, 0], sizes = [2, 16], strides = [1, 1]} : vector<2x32xf32> to vector<2x16xf32>
    %c2_i32_44 = arith.constant 2 : i32
    %120 = arith.muli %c1_i32_34, %c2_i32_44 : i32
    %121 = arith.index_cast %120 : i32 to index
    %c0_45 = arith.constant 0 : index
    %122 = vector.load %arg19[%121, %c0_45] : memref<32x16xf32, #tpu.memory_space<vmem>>, vector<2x16xf32>
    tpu.vector_store %arg19[%121, %c0_45], %119 {strides = array<i32>} : memref<32x16xf32, #tpu.memory_space<vmem>>, vector<2x16xf32>,
    %123 = vector.extract_strided_slice %118 {offsets = [0, 16], sizes = [2, 16], strides = [1, 1]} : vector<2x32xf32> to vector<2x16xf32>
    %c15_i32_46 = arith.constant 15 : i32
    %124 = arith.subi %c15_i32_46, %c1_i32_34 : i32
    %c2_i32_47 = arith.constant 2 : i32
    %125 = arith.muli %124, %c2_i32_47 : i32
    %126 = arith.index_cast %125 : i32 to index
    %c0_48 = arith.constant 0 : index
    %127 = vector.load %arg20[%126, %c0_48] : memref<32x16xf32, #tpu.memory_space<vmem>>, vector<2x16xf32>
    tpu.vector_store %arg20[%126, %c0_48], %123 {strides = array<i32>} : memref<32x16xf32, #tpu.memory_space<vmem>>, vector<2x16xf32>,
    %c2_i32_49 = arith.constant 2 : i32
    %c2_i32_50 = arith.constant 2 : i32
    %128 = arith.muli %c2_i32_49, %c2_i32_50 : i32
    %129 = arith.index_cast %128 : i32 to index
    %c0_51 = arith.constant 0 : index
    %130 = vector.load %arg18[%129, %c0_51] : memref<32x96xf32, #tpu.memory_space<vmem>>, vector<2x96xf32>
    %c15_i32_52 = arith.constant 15 : i32
    %131 = arith.subi %c15_i32_52, %c2_i32_49 : i32
    %c2_i32_53 = arith.constant 2 : i32
    %132 = arith.muli %131, %c2_i32_53 : i32
    %133 = arith.index_cast %132 : i32 to index
    %c0_54 = arith.constant 0 : index
    %134 = vector.load %arg18[%133, %c0_54] : memref<32x96xf32, #tpu.memory_space<vmem>>, vector<2x96xf32>
    %135 = arith.select %34, %130, %134 : vector<2x96xi1>, vector<2x96xf32>
    %cst_55 = arith.constant dense<0.000000e+00> : vector<2x96xf32>
    %136 = tpu.matmul %118, %14, %cst_55 {dimension_numbers = #tpu.dot_dimension_numbers<[1], [0], [0], [1], [0, 0, 1, 1], [], []>} : vector<2x32xf32>, vector<32x96xf32>, vector<2x96xf32> -> vector<2x96xf32>
    %137 = vector.broadcast %15 : vector<1x96xf32> to vector<2x96xf32>
    %138 = arith.addf %136, %137 : vector<2x96xf32>
    %139 = vector.extract_strided_slice %135 {offsets = [0, 0], sizes = [2, 32], strides = [1, 1]} : vector<2x96xf32> to vector<2x32xf32>
    %140 = vector.extract_strided_slice %138 {offsets = [0, 0], sizes = [2, 32], strides = [1, 1]} : vector<2x96xf32> to vector<2x32xf32>
    %141 = arith.addf %139, %140 : vector<2x32xf32>
    %142 = arith.negf %141 : vector<2x32xf32>
    %143 = math.exp %142 : vector<2x32xf32>
    %cst_56 = arith.constant 1.000000e+00 : f32
    %144 = vector.broadcast %cst_56 : f32 to vector<2x32xf32>
    %145 = arith.addf %144, %143 : vector<2x32xf32>
    %146 = arith.divf %144, %145 : vector<2x32xf32>
    %147 = vector.extract_strided_slice %135 {offsets = [0, 32], sizes = [2, 32], strides = [1, 1]} : vector<2x96xf32> to vector<2x32xf32>
    %148 = vector.extract_strided_slice %138 {offsets = [0, 32], sizes = [2, 32], strides = [1, 1]} : vector<2x96xf32> to vector<2x32xf32>
    %149 = arith.addf %147, %148 : vector<2x32xf32>
    %150 = arith.negf %149 : vector<2x32xf32>
    %151 = math.exp %150 : vector<2x32xf32>
    %cst_57 = arith.constant 1.000000e+00 : f32
    %152 = vector.broadcast %cst_57 : f32 to vector<2x32xf32>
    %153 = arith.addf %152, %151 : vector<2x32xf32>
    %154 = arith.divf %152, %153 : vector<2x32xf32>
    %155 = vector.extract_strided_slice %135 {offsets = [0, 64], sizes = [2, 32], strides = [1, 1]} : vector<2x96xf32> to vector<2x32xf32>
    %156 = vector.extract_strided_slice %138 {offsets = [0, 64], sizes = [2, 32], strides = [1, 1]} : vector<2x96xf32> to vector<2x32xf32>
    %157 = arith.mulf %146, %156 : vector<2x32xf32>
    %158 = arith.addf %155, %157 : vector<2x32xf32>
    %159 = math.tanh %158 : vector<2x32xf32>
    %cst_58 = arith.constant 1.000000e+00 : f32
    %160 = vector.broadcast %cst_58 : f32 to vector<2x32xf32>
    %161 = arith.subf %160, %154 : vector<2x32xf32>
    %162 = arith.mulf %161, %159 : vector<2x32xf32>
    %163 = arith.mulf %154, %118 : vector<2x32xf32>
    %164 = arith.addf %162, %163 : vector<2x32xf32>
    %165 = vector.extract_strided_slice %164 {offsets = [0, 0], sizes = [2, 16], strides = [1, 1]} : vector<2x32xf32> to vector<2x16xf32>
    %c2_i32_59 = arith.constant 2 : i32
    %166 = arith.muli %c2_i32_49, %c2_i32_59 : i32
    %167 = arith.index_cast %166 : i32 to index
    %c0_60 = arith.constant 0 : index
    %168 = vector.load %arg19[%167, %c0_60] : memref<32x16xf32, #tpu.memory_space<vmem>>, vector<2x16xf32>
    tpu.vector_store %arg19[%167, %c0_60], %165 {strides = array<i32>} : memref<32x16xf32, #tpu.memory_space<vmem>>, vector<2x16xf32>,
    %169 = vector.extract_strided_slice %164 {offsets = [0, 16], sizes = [2, 16], strides = [1, 1]} : vector<2x32xf32> to vector<2x16xf32>
    %c15_i32_61 = arith.constant 15 : i32
    %170 = arith.subi %c15_i32_61, %c2_i32_49 : i32
    %c2_i32_62 = arith.constant 2 : i32
    %171 = arith.muli %170, %c2_i32_62 : i32
    %172 = arith.index_cast %171 : i32 to index
    %c0_63 = arith.constant 0 : index
    %173 = vector.load %arg20[%172, %c0_63] : memref<32x16xf32, #tpu.memory_space<vmem>>, vector<2x16xf32>
    tpu.vector_store %arg20[%172, %c0_63], %169 {strides = array<i32>} : memref<32x16xf32, #tpu.memory_space<vmem>>, vector<2x16xf32>,
    %c3_i32 = arith.constant 3 : i32
    %c2_i32_64 = arith.constant 2 : i32
    %174 = arith.muli %c3_i32, %c2_i32_64 : i32
    %175 = arith.index_cast %174 : i32 to index
    %c0_65 = arith.constant 0 : index
    %176 = vector.load %arg18[%175, %c0_65] : memref<32x96xf32, #tpu.memory_space<vmem>>, vector<2x96xf32>
    %c15_i32_66 = arith.constant 15 : i32
    %177 = arith.subi %c15_i32_66, %c3_i32 : i32
    %c2_i32_67 = arith.constant 2 : i32
    %178 = arith.muli %177, %c2_i32_67 : i32
    %179 = arith.index_cast %178 : i32 to index
    %c0_68 = arith.constant 0 : index
    %180 = vector.load %arg18[%179, %c0_68] : memref<32x96xf32, #tpu.memory_space<vmem>>, vector<2x96xf32>
    %181 = arith.select %34, %176, %180 : vector<2x96xi1>, vector<2x96xf32>
    %cst_69 = arith.constant dense<0.000000e+00> : vector<2x96xf32>
    %182 = tpu.matmul %164, %14, %cst_69 {dimension_numbers = #tpu.dot_dimension_numbers<[1], [0], [0], [1], [0, 0, 1, 1], [], []>} : vector<2x32xf32>, vector<32x96xf32>, vector<2x96xf32> -> vector<2x96xf32>
    %183 = vector.broadcast %15 : vector<1x96xf32> to vector<2x96xf32>
    %184 = arith.addf %182, %183 : vector<2x96xf32>
    %185 = vector.extract_strided_slice %181 {offsets = [0, 0], sizes = [2, 32], strides = [1, 1]} : vector<2x96xf32> to vector<2x32xf32>
    %186 = vector.extract_strided_slice %184 {offsets = [0, 0], sizes = [2, 32], strides = [1, 1]} : vector<2x96xf32> to vector<2x32xf32>
    %187 = arith.addf %185, %186 : vector<2x32xf32>
    %188 = arith.negf %187 : vector<2x32xf32>
    %189 = math.exp %188 : vector<2x32xf32>
    %cst_70 = arith.constant 1.000000e+00 : f32
    %190 = vector.broadcast %cst_70 : f32 to vector<2x32xf32>
    %191 = arith.addf %190, %189 : vector<2x32xf32>
    %192 = arith.divf %190, %191 : vector<2x32xf32>
    %193 = vector.extract_strided_slice %181 {offsets = [0, 32], sizes = [2, 32], strides = [1, 1]} : vector<2x96xf32> to vector<2x32xf32>
    %194 = vector.extract_strided_slice %184 {offsets = [0, 32], sizes = [2, 32], strides = [1, 1]} : vector<2x96xf32> to vector<2x32xf32>
    %195 = arith.addf %193, %194 : vector<2x32xf32>
    %196 = arith.negf %195 : vector<2x32xf32>
    %197 = math.exp %196 : vector<2x32xf32>
    %cst_71 = arith.constant 1.000000e+00 : f32
    %198 = vector.broadcast %cst_71 : f32 to vector<2x32xf32>
    %199 = arith.addf %198, %197 : vector<2x32xf32>
    %200 = arith.divf %198, %199 : vector<2x32xf32>
    %201 = vector.extract_strided_slice %181 {offsets = [0, 64], sizes = [2, 32], strides = [1, 1]} : vector<2x96xf32> to vector<2x32xf32>
    %202 = vector.extract_strided_slice %184 {offsets = [0, 64], sizes = [2, 32], strides = [1, 1]} : vector<2x96xf32> to vector<2x32xf32>
    %203 = arith.mulf %192, %202 : vector<2x32xf32>
    %204 = arith.addf %201, %203 : vector<2x32xf32>
    %205 = math.tanh %204 : vector<2x32xf32>
    %cst_72 = arith.constant 1.000000e+00 : f32
    %206 = vector.broadcast %cst_72 : f32 to vector<2x32xf32>
    %207 = arith.subf %206, %200 : vector<2x32xf32>
    %208 = arith.mulf %207, %205 : vector<2x32xf32>
    %209 = arith.mulf %200, %164 : vector<2x32xf32>
    %210 = arith.addf %208, %209 : vector<2x32xf32>
    %211 = vector.extract_strided_slice %210 {offsets = [0, 0], sizes = [2, 16], strides = [1, 1]} : vector<2x32xf32> to vector<2x16xf32>
    %c2_i32_73 = arith.constant 2 : i32
    %212 = arith.muli %c3_i32, %c2_i32_73 : i32
    %213 = arith.index_cast %212 : i32 to index
    %c0_74 = arith.constant 0 : index
    %214 = vector.load %arg19[%213, %c0_74] : memref<32x16xf32, #tpu.memory_space<vmem>>, vector<2x16xf32>
    tpu.vector_store %arg19[%213, %c0_74], %211 {strides = array<i32>} : memref<32x16xf32, #tpu.memory_space<vmem>>, vector<2x16xf32>,
    %215 = vector.extract_strided_slice %210 {offsets = [0, 16], sizes = [2, 16], strides = [1, 1]} : vector<2x32xf32> to vector<2x16xf32>
    %c15_i32_75 = arith.constant 15 : i32
    %216 = arith.subi %c15_i32_75, %c3_i32 : i32
    %c2_i32_76 = arith.constant 2 : i32
    %217 = arith.muli %216, %c2_i32_76 : i32
    %218 = arith.index_cast %217 : i32 to index
    %c0_77 = arith.constant 0 : index
    %219 = vector.load %arg20[%218, %c0_77] : memref<32x16xf32, #tpu.memory_space<vmem>>, vector<2x16xf32>
    tpu.vector_store %arg20[%218, %c0_77], %215 {strides = array<i32>} : memref<32x16xf32, #tpu.memory_space<vmem>>, vector<2x16xf32>,
    %c4_i32 = arith.constant 4 : i32
    %c2_i32_78 = arith.constant 2 : i32
    %220 = arith.muli %c4_i32, %c2_i32_78 : i32
    %221 = arith.index_cast %220 : i32 to index
    %c0_79 = arith.constant 0 : index
    %222 = vector.load %arg18[%221, %c0_79] : memref<32x96xf32, #tpu.memory_space<vmem>>, vector<2x96xf32>
    %c15_i32_80 = arith.constant 15 : i32
    %223 = arith.subi %c15_i32_80, %c4_i32 : i32
    %c2_i32_81 = arith.constant 2 : i32
    %224 = arith.muli %223, %c2_i32_81 : i32
    %225 = arith.index_cast %224 : i32 to index
    %c0_82 = arith.constant 0 : index
    %226 = vector.load %arg18[%225, %c0_82] : memref<32x96xf32, #tpu.memory_space<vmem>>, vector<2x96xf32>
    %227 = arith.select %34, %222, %226 : vector<2x96xi1>, vector<2x96xf32>
    %cst_83 = arith.constant dense<0.000000e+00> : vector<2x96xf32>
    %228 = tpu.matmul %210, %14, %cst_83 {dimension_numbers = #tpu.dot_dimension_numbers<[1], [0], [0], [1], [0, 0, 1, 1], [], []>} : vector<2x32xf32>, vector<32x96xf32>, vector<2x96xf32> -> vector<2x96xf32>
    %229 = vector.broadcast %15 : vector<1x96xf32> to vector<2x96xf32>
    %230 = arith.addf %228, %229 : vector<2x96xf32>
    %231 = vector.extract_strided_slice %227 {offsets = [0, 0], sizes = [2, 32], strides = [1, 1]} : vector<2x96xf32> to vector<2x32xf32>
    %232 = vector.extract_strided_slice %230 {offsets = [0, 0], sizes = [2, 32], strides = [1, 1]} : vector<2x96xf32> to vector<2x32xf32>
    %233 = arith.addf %231, %232 : vector<2x32xf32>
    %234 = arith.negf %233 : vector<2x32xf32>
    %235 = math.exp %234 : vector<2x32xf32>
    %cst_84 = arith.constant 1.000000e+00 : f32
    %236 = vector.broadcast %cst_84 : f32 to vector<2x32xf32>
    %237 = arith.addf %236, %235 : vector<2x32xf32>
    %238 = arith.divf %236, %237 : vector<2x32xf32>
    %239 = vector.extract_strided_slice %227 {offsets = [0, 32], sizes = [2, 32], strides = [1, 1]} : vector<2x96xf32> to vector<2x32xf32>
    %240 = vector.extract_strided_slice %230 {offsets = [0, 32], sizes = [2, 32], strides = [1, 1]} : vector<2x96xf32> to vector<2x32xf32>
    %241 = arith.addf %239, %240 : vector<2x32xf32>
    %242 = arith.negf %241 : vector<2x32xf32>
    %243 = math.exp %242 : vector<2x32xf32>
    %cst_85 = arith.constant 1.000000e+00 : f32
    %244 = vector.broadcast %cst_85 : f32 to vector<2x32xf32>
    %245 = arith.addf %244, %243 : vector<2x32xf32>
    %246 = arith.divf %244, %245 : vector<2x32xf32>
    %247 = vector.extract_strided_slice %227 {offsets = [0, 64], sizes = [2, 32], strides = [1, 1]} : vector<2x96xf32> to vector<2x32xf32>
    %248 = vector.extract_strided_slice %230 {offsets = [0, 64], sizes = [2, 32], strides = [1, 1]} : vector<2x96xf32> to vector<2x32xf32>
    %249 = arith.mulf %238, %248 : vector<2x32xf32>
    %250 = arith.addf %247, %249 : vector<2x32xf32>
    %251 = math.tanh %250 : vector<2x32xf32>
    %cst_86 = arith.constant 1.000000e+00 : f32
    %252 = vector.broadcast %cst_86 : f32 to vector<2x32xf32>
    %253 = arith.subf %252, %246 : vector<2x32xf32>
    %254 = arith.mulf %253, %251 : vector<2x32xf32>
    %255 = arith.mulf %246, %210 : vector<2x32xf32>
    %256 = arith.addf %254, %255 : vector<2x32xf32>
    %257 = vector.extract_strided_slice %256 {offsets = [0, 0], sizes = [2, 16], strides = [1, 1]} : vector<2x32xf32> to vector<2x16xf32>
    %c2_i32_87 = arith.constant 2 : i32
    %258 = arith.muli %c4_i32, %c2_i32_87 : i32
    %259 = arith.index_cast %258 : i32 to index
    %c0_88 = arith.constant 0 : index
    %260 = vector.load %arg19[%259, %c0_88] : memref<32x16xf32, #tpu.memory_space<vmem>>, vector<2x16xf32>
    tpu.vector_store %arg19[%259, %c0_88], %257 {strides = array<i32>} : memref<32x16xf32, #tpu.memory_space<vmem>>, vector<2x16xf32>,
    %261 = vector.extract_strided_slice %256 {offsets = [0, 16], sizes = [2, 16], strides = [1, 1]} : vector<2x32xf32> to vector<2x16xf32>
    %c15_i32_89 = arith.constant 15 : i32
    %262 = arith.subi %c15_i32_89, %c4_i32 : i32
    %c2_i32_90 = arith.constant 2 : i32
    %263 = arith.muli %262, %c2_i32_90 : i32
    %264 = arith.index_cast %263 : i32 to index
    %c0_91 = arith.constant 0 : index
    %265 = vector.load %arg20[%264, %c0_91] : memref<32x16xf32, #tpu.memory_space<vmem>>, vector<2x16xf32>
    tpu.vector_store %arg20[%264, %c0_91], %261 {strides = array<i32>} : memref<32x16xf32, #tpu.memory_space<vmem>>, vector<2x16xf32>,
    %c5_i32 = arith.constant 5 : i32
    %c2_i32_92 = arith.constant 2 : i32
    %266 = arith.muli %c5_i32, %c2_i32_92 : i32
    %267 = arith.index_cast %266 : i32 to index
    %c0_93 = arith.constant 0 : index
    %268 = vector.load %arg18[%267, %c0_93] : memref<32x96xf32, #tpu.memory_space<vmem>>, vector<2x96xf32>
    %c15_i32_94 = arith.constant 15 : i32
    %269 = arith.subi %c15_i32_94, %c5_i32 : i32
    %c2_i32_95 = arith.constant 2 : i32
    %270 = arith.muli %269, %c2_i32_95 : i32
    %271 = arith.index_cast %270 : i32 to index
    %c0_96 = arith.constant 0 : index
    %272 = vector.load %arg18[%271, %c0_96] : memref<32x96xf32, #tpu.memory_space<vmem>>, vector<2x96xf32>
    %273 = arith.select %34, %268, %272 : vector<2x96xi1>, vector<2x96xf32>
    %cst_97 = arith.constant dense<0.000000e+00> : vector<2x96xf32>
    %274 = tpu.matmul %256, %14, %cst_97 {dimension_numbers = #tpu.dot_dimension_numbers<[1], [0], [0], [1], [0, 0, 1, 1], [], []>} : vector<2x32xf32>, vector<32x96xf32>, vector<2x96xf32> -> vector<2x96xf32>
    %275 = vector.broadcast %15 : vector<1x96xf32> to vector<2x96xf32>
    %276 = arith.addf %274, %275 : vector<2x96xf32>
    %277 = vector.extract_strided_slice %273 {offsets = [0, 0], sizes = [2, 32], strides = [1, 1]} : vector<2x96xf32> to vector<2x32xf32>
    %278 = vector.extract_strided_slice %276 {offsets = [0, 0], sizes = [2, 32], strides = [1, 1]} : vector<2x96xf32> to vector<2x32xf32>
    %279 = arith.addf %277, %278 : vector<2x32xf32>
    %280 = arith.negf %279 : vector<2x32xf32>
    %281 = math.exp %280 : vector<2x32xf32>
    %cst_98 = arith.constant 1.000000e+00 : f32
    %282 = vector.broadcast %cst_98 : f32 to vector<2x32xf32>
    %283 = arith.addf %282, %281 : vector<2x32xf32>
    %284 = arith.divf %282, %283 : vector<2x32xf32>
    %285 = vector.extract_strided_slice %273 {offsets = [0, 32], sizes = [2, 32], strides = [1, 1]} : vector<2x96xf32> to vector<2x32xf32>
    %286 = vector.extract_strided_slice %276 {offsets = [0, 32], sizes = [2, 32], strides = [1, 1]} : vector<2x96xf32> to vector<2x32xf32>
    %287 = arith.addf %285, %286 : vector<2x32xf32>
    %288 = arith.negf %287 : vector<2x32xf32>
    %289 = math.exp %288 : vector<2x32xf32>
    %cst_99 = arith.constant 1.000000e+00 : f32
    %290 = vector.broadcast %cst_99 : f32 to vector<2x32xf32>
    %291 = arith.addf %290, %289 : vector<2x32xf32>
    %292 = arith.divf %290, %291 : vector<2x32xf32>
    %293 = vector.extract_strided_slice %273 {offsets = [0, 64], sizes = [2, 32], strides = [1, 1]} : vector<2x96xf32> to vector<2x32xf32>
    %294 = vector.extract_strided_slice %276 {offsets = [0, 64], sizes = [2, 32], strides = [1, 1]} : vector<2x96xf32> to vector<2x32xf32>
    %295 = arith.mulf %284, %294 : vector<2x32xf32>
    %296 = arith.addf %293, %295 : vector<2x32xf32>
    %297 = math.tanh %296 : vector<2x32xf32>
    %cst_100 = arith.constant 1.000000e+00 : f32
    %298 = vector.broadcast %cst_100 : f32 to vector<2x32xf32>
    %299 = arith.subf %298, %292 : vector<2x32xf32>
    %300 = arith.mulf %299, %297 : vector<2x32xf32>
    %301 = arith.mulf %292, %256 : vector<2x32xf32>
    %302 = arith.addf %300, %301 : vector<2x32xf32>
    %303 = vector.extract_strided_slice %302 {offsets = [0, 0], sizes = [2, 16], strides = [1, 1]} : vector<2x32xf32> to vector<2x16xf32>
    %c2_i32_101 = arith.constant 2 : i32
    %304 = arith.muli %c5_i32, %c2_i32_101 : i32
    %305 = arith.index_cast %304 : i32 to index
    %c0_102 = arith.constant 0 : index
    %306 = vector.load %arg19[%305, %c0_102] : memref<32x16xf32, #tpu.memory_space<vmem>>, vector<2x16xf32>
    tpu.vector_store %arg19[%305, %c0_102], %303 {strides = array<i32>} : memref<32x16xf32, #tpu.memory_space<vmem>>, vector<2x16xf32>,
    %307 = vector.extract_strided_slice %302 {offsets = [0, 16], sizes = [2, 16], strides = [1, 1]} : vector<2x32xf32> to vector<2x16xf32>
    %c15_i32_103 = arith.constant 15 : i32
    %308 = arith.subi %c15_i32_103, %c5_i32 : i32
    %c2_i32_104 = arith.constant 2 : i32
    %309 = arith.muli %308, %c2_i32_104 : i32
    %310 = arith.index_cast %309 : i32 to index
    %c0_105 = arith.constant 0 : index
    %311 = vector.load %arg20[%310, %c0_105] : memref<32x16xf32, #tpu.memory_space<vmem>>, vector<2x16xf32>
    tpu.vector_store %arg20[%310, %c0_105], %307 {strides = array<i32>} : memref<32x16xf32, #tpu.memory_space<vmem>>, vector<2x16xf32>,
    %c6_i32 = arith.constant 6 : i32
    %c2_i32_106 = arith.constant 2 : i32
    %312 = arith.muli %c6_i32, %c2_i32_106 : i32
    %313 = arith.index_cast %312 : i32 to index
    %c0_107 = arith.constant 0 : index
    %314 = vector.load %arg18[%313, %c0_107] : memref<32x96xf32, #tpu.memory_space<vmem>>, vector<2x96xf32>
    %c15_i32_108 = arith.constant 15 : i32
    %315 = arith.subi %c15_i32_108, %c6_i32 : i32
    %c2_i32_109 = arith.constant 2 : i32
    %316 = arith.muli %315, %c2_i32_109 : i32
    %317 = arith.index_cast %316 : i32 to index
    %c0_110 = arith.constant 0 : index
    %318 = vector.load %arg18[%317, %c0_110] : memref<32x96xf32, #tpu.memory_space<vmem>>, vector<2x96xf32>
    %319 = arith.select %34, %314, %318 : vector<2x96xi1>, vector<2x96xf32>
    %cst_111 = arith.constant dense<0.000000e+00> : vector<2x96xf32>
    %320 = tpu.matmul %302, %14, %cst_111 {dimension_numbers = #tpu.dot_dimension_numbers<[1], [0], [0], [1], [0, 0, 1, 1], [], []>} : vector<2x32xf32>, vector<32x96xf32>, vector<2x96xf32> -> vector<2x96xf32>
    %321 = vector.broadcast %15 : vector<1x96xf32> to vector<2x96xf32>
    %322 = arith.addf %320, %321 : vector<2x96xf32>
    %323 = vector.extract_strided_slice %319 {offsets = [0, 0], sizes = [2, 32], strides = [1, 1]} : vector<2x96xf32> to vector<2x32xf32>
    %324 = vector.extract_strided_slice %322 {offsets = [0, 0], sizes = [2, 32], strides = [1, 1]} : vector<2x96xf32> to vector<2x32xf32>
    %325 = arith.addf %323, %324 : vector<2x32xf32>
    %326 = arith.negf %325 : vector<2x32xf32>
    %327 = math.exp %326 : vector<2x32xf32>
    %cst_112 = arith.constant 1.000000e+00 : f32
    %328 = vector.broadcast %cst_112 : f32 to vector<2x32xf32>
    %329 = arith.addf %328, %327 : vector<2x32xf32>
    %330 = arith.divf %328, %329 : vector<2x32xf32>
    %331 = vector.extract_strided_slice %319 {offsets = [0, 32], sizes = [2, 32], strides = [1, 1]} : vector<2x96xf32> to vector<2x32xf32>
    %332 = vector.extract_strided_slice %322 {offsets = [0, 32], sizes = [2, 32], strides = [1, 1]} : vector<2x96xf32> to vector<2x32xf32>
    %333 = arith.addf %331, %332 : vector<2x32xf32>
    %334 = arith.negf %333 : vector<2x32xf32>
    %335 = math.exp %334 : vector<2x32xf32>
    %cst_113 = arith.constant 1.000000e+00 : f32
    %336 = vector.broadcast %cst_113 : f32 to vector<2x32xf32>
    %337 = arith.addf %336, %335 : vector<2x32xf32>
    %338 = arith.divf %336, %337 : vector<2x32xf32>
    %339 = vector.extract_strided_slice %319 {offsets = [0, 64], sizes = [2, 32], strides = [1, 1]} : vector<2x96xf32> to vector<2x32xf32>
    %340 = vector.extract_strided_slice %322 {offsets = [0, 64], sizes = [2, 32], strides = [1, 1]} : vector<2x96xf32> to vector<2x32xf32>
    %341 = arith.mulf %330, %340 : vector<2x32xf32>
    %342 = arith.addf %339, %341 : vector<2x32xf32>
    %343 = math.tanh %342 : vector<2x32xf32>
    %cst_114 = arith.constant 1.000000e+00 : f32
    %344 = vector.broadcast %cst_114 : f32 to vector<2x32xf32>
    %345 = arith.subf %344, %338 : vector<2x32xf32>
    %346 = arith.mulf %345, %343 : vector<2x32xf32>
    %347 = arith.mulf %338, %302 : vector<2x32xf32>
    %348 = arith.addf %346, %347 : vector<2x32xf32>
    %349 = vector.extract_strided_slice %348 {offsets = [0, 0], sizes = [2, 16], strides = [1, 1]} : vector<2x32xf32> to vector<2x16xf32>
    %c2_i32_115 = arith.constant 2 : i32
    %350 = arith.muli %c6_i32, %c2_i32_115 : i32
    %351 = arith.index_cast %350 : i32 to index
    %c0_116 = arith.constant 0 : index
    %352 = vector.load %arg19[%351, %c0_116] : memref<32x16xf32, #tpu.memory_space<vmem>>, vector<2x16xf32>
    tpu.vector_store %arg19[%351, %c0_116], %349 {strides = array<i32>} : memref<32x16xf32, #tpu.memory_space<vmem>>, vector<2x16xf32>,
    %353 = vector.extract_strided_slice %348 {offsets = [0, 16], sizes = [2, 16], strides = [1, 1]} : vector<2x32xf32> to vector<2x16xf32>
    %c15_i32_117 = arith.constant 15 : i32
    %354 = arith.subi %c15_i32_117, %c6_i32 : i32
    %c2_i32_118 = arith.constant 2 : i32
    %355 = arith.muli %354, %c2_i32_118 : i32
    %356 = arith.index_cast %355 : i32 to index
    %c0_119 = arith.constant 0 : index
    %357 = vector.load %arg20[%356, %c0_119] : memref<32x16xf32, #tpu.memory_space<vmem>>, vector<2x16xf32>
    tpu.vector_store %arg20[%356, %c0_119], %353 {strides = array<i32>} : memref<32x16xf32, #tpu.memory_space<vmem>>, vector<2x16xf32>,
    %c7_i32 = arith.constant 7 : i32
    %c2_i32_120 = arith.constant 2 : i32
    %358 = arith.muli %c7_i32, %c2_i32_120 : i32
    %359 = arith.index_cast %358 : i32 to index
    %c0_121 = arith.constant 0 : index
    %360 = vector.load %arg18[%359, %c0_121] : memref<32x96xf32, #tpu.memory_space<vmem>>, vector<2x96xf32>
    %c15_i32_122 = arith.constant 15 : i32
    %361 = arith.subi %c15_i32_122, %c7_i32 : i32
    %c2_i32_123 = arith.constant 2 : i32
    %362 = arith.muli %361, %c2_i32_123 : i32
    %363 = arith.index_cast %362 : i32 to index
    %c0_124 = arith.constant 0 : index
    %364 = vector.load %arg18[%363, %c0_124] : memref<32x96xf32, #tpu.memory_space<vmem>>, vector<2x96xf32>
    %365 = arith.select %34, %360, %364 : vector<2x96xi1>, vector<2x96xf32>
    %cst_125 = arith.constant dense<0.000000e+00> : vector<2x96xf32>
    %366 = tpu.matmul %348, %14, %cst_125 {dimension_numbers = #tpu.dot_dimension_numbers<[1], [0], [0], [1], [0, 0, 1, 1], [], []>} : vector<2x32xf32>, vector<32x96xf32>, vector<2x96xf32> -> vector<2x96xf32>
    %367 = vector.broadcast %15 : vector<1x96xf32> to vector<2x96xf32>
    %368 = arith.addf %366, %367 : vector<2x96xf32>
    %369 = vector.extract_strided_slice %365 {offsets = [0, 0], sizes = [2, 32], strides = [1, 1]} : vector<2x96xf32> to vector<2x32xf32>
    %370 = vector.extract_strided_slice %368 {offsets = [0, 0], sizes = [2, 32], strides = [1, 1]} : vector<2x96xf32> to vector<2x32xf32>
    %371 = arith.addf %369, %370 : vector<2x32xf32>
    %372 = arith.negf %371 : vector<2x32xf32>
    %373 = math.exp %372 : vector<2x32xf32>
    %cst_126 = arith.constant 1.000000e+00 : f32
    %374 = vector.broadcast %cst_126 : f32 to vector<2x32xf32>
    %375 = arith.addf %374, %373 : vector<2x32xf32>
    %376 = arith.divf %374, %375 : vector<2x32xf32>
    %377 = vector.extract_strided_slice %365 {offsets = [0, 32], sizes = [2, 32], strides = [1, 1]} : vector<2x96xf32> to vector<2x32xf32>
    %378 = vector.extract_strided_slice %368 {offsets = [0, 32], sizes = [2, 32], strides = [1, 1]} : vector<2x96xf32> to vector<2x32xf32>
    %379 = arith.addf %377, %378 : vector<2x32xf32>
    %380 = arith.negf %379 : vector<2x32xf32>
    %381 = math.exp %380 : vector<2x32xf32>
    %cst_127 = arith.constant 1.000000e+00 : f32
    %382 = vector.broadcast %cst_127 : f32 to vector<2x32xf32>
    %383 = arith.addf %382, %381 : vector<2x32xf32>
    %384 = arith.divf %382, %383 : vector<2x32xf32>
    %385 = vector.extract_strided_slice %365 {offsets = [0, 64], sizes = [2, 32], strides = [1, 1]} : vector<2x96xf32> to vector<2x32xf32>
    %386 = vector.extract_strided_slice %368 {offsets = [0, 64], sizes = [2, 32], strides = [1, 1]} : vector<2x96xf32> to vector<2x32xf32>
    %387 = arith.mulf %376, %386 : vector<2x32xf32>
    %388 = arith.addf %385, %387 : vector<2x32xf32>
    %389 = math.tanh %388 : vector<2x32xf32>
    %cst_128 = arith.constant 1.000000e+00 : f32
    %390 = vector.broadcast %cst_128 : f32 to vector<2x32xf32>
    %391 = arith.subf %390, %384 : vector<2x32xf32>
    %392 = arith.mulf %391, %389 : vector<2x32xf32>
    %393 = arith.mulf %384, %348 : vector<2x32xf32>
    %394 = arith.addf %392, %393 : vector<2x32xf32>
    %395 = vector.extract_strided_slice %394 {offsets = [0, 0], sizes = [2, 16], strides = [1, 1]} : vector<2x32xf32> to vector<2x16xf32>
    %c2_i32_129 = arith.constant 2 : i32
    %396 = arith.muli %c7_i32, %c2_i32_129 : i32
    %397 = arith.index_cast %396 : i32 to index
    %c0_130 = arith.constant 0 : index
    %398 = vector.load %arg19[%397, %c0_130] : memref<32x16xf32, #tpu.memory_space<vmem>>, vector<2x16xf32>
    tpu.vector_store %arg19[%397, %c0_130], %395 {strides = array<i32>} : memref<32x16xf32, #tpu.memory_space<vmem>>, vector<2x16xf32>,
    %399 = vector.extract_strided_slice %394 {offsets = [0, 16], sizes = [2, 16], strides = [1, 1]} : vector<2x32xf32> to vector<2x16xf32>
    %c15_i32_131 = arith.constant 15 : i32
    %400 = arith.subi %c15_i32_131, %c7_i32 : i32
    %c2_i32_132 = arith.constant 2 : i32
    %401 = arith.muli %400, %c2_i32_132 : i32
    %402 = arith.index_cast %401 : i32 to index
    %c0_133 = arith.constant 0 : index
    %403 = vector.load %arg20[%402, %c0_133] : memref<32x16xf32, #tpu.memory_space<vmem>>, vector<2x16xf32>
    tpu.vector_store %arg20[%402, %c0_133], %399 {strides = array<i32>} : memref<32x16xf32, #tpu.memory_space<vmem>>, vector<2x16xf32>,
    %c8_i32 = arith.constant 8 : i32
    %c2_i32_134 = arith.constant 2 : i32
    %404 = arith.muli %c8_i32, %c2_i32_134 : i32
    %405 = arith.index_cast %404 : i32 to index
    %c0_135 = arith.constant 0 : index
    %406 = vector.load %arg18[%405, %c0_135] : memref<32x96xf32, #tpu.memory_space<vmem>>, vector<2x96xf32>
    %c15_i32_136 = arith.constant 15 : i32
    %407 = arith.subi %c15_i32_136, %c8_i32 : i32
    %c2_i32_137 = arith.constant 2 : i32
    %408 = arith.muli %407, %c2_i32_137 : i32
    %409 = arith.index_cast %408 : i32 to index
    %c0_138 = arith.constant 0 : index
    %410 = vector.load %arg18[%409, %c0_138] : memref<32x96xf32, #tpu.memory_space<vmem>>, vector<2x96xf32>
    %411 = arith.select %34, %406, %410 : vector<2x96xi1>, vector<2x96xf32>
    %cst_139 = arith.constant dense<0.000000e+00> : vector<2x96xf32>
    %412 = tpu.matmul %394, %14, %cst_139 {dimension_numbers = #tpu.dot_dimension_numbers<[1], [0], [0], [1], [0, 0, 1, 1], [], []>} : vector<2x32xf32>, vector<32x96xf32>, vector<2x96xf32> -> vector<2x96xf32>
    %413 = vector.broadcast %15 : vector<1x96xf32> to vector<2x96xf32>
    %414 = arith.addf %412, %413 : vector<2x96xf32>
    %415 = vector.extract_strided_slice %411 {offsets = [0, 0], sizes = [2, 32], strides = [1, 1]} : vector<2x96xf32> to vector<2x32xf32>
    %416 = vector.extract_strided_slice %414 {offsets = [0, 0], sizes = [2, 32], strides = [1, 1]} : vector<2x96xf32> to vector<2x32xf32>
    %417 = arith.addf %415, %416 : vector<2x32xf32>
    %418 = arith.negf %417 : vector<2x32xf32>
    %419 = math.exp %418 : vector<2x32xf32>
    %cst_140 = arith.constant 1.000000e+00 : f32
    %420 = vector.broadcast %cst_140 : f32 to vector<2x32xf32>
    %421 = arith.addf %420, %419 : vector<2x32xf32>
    %422 = arith.divf %420, %421 : vector<2x32xf32>
    %423 = vector.extract_strided_slice %411 {offsets = [0, 32], sizes = [2, 32], strides = [1, 1]} : vector<2x96xf32> to vector<2x32xf32>
    %424 = vector.extract_strided_slice %414 {offsets = [0, 32], sizes = [2, 32], strides = [1, 1]} : vector<2x96xf32> to vector<2x32xf32>
    %425 = arith.addf %423, %424 : vector<2x32xf32>
    %426 = arith.negf %425 : vector<2x32xf32>
    %427 = math.exp %426 : vector<2x32xf32>
    %cst_141 = arith.constant 1.000000e+00 : f32
    %428 = vector.broadcast %cst_141 : f32 to vector<2x32xf32>
    %429 = arith.addf %428, %427 : vector<2x32xf32>
    %430 = arith.divf %428, %429 : vector<2x32xf32>
    %431 = vector.extract_strided_slice %411 {offsets = [0, 64], sizes = [2, 32], strides = [1, 1]} : vector<2x96xf32> to vector<2x32xf32>
    %432 = vector.extract_strided_slice %414 {offsets = [0, 64], sizes = [2, 32], strides = [1, 1]} : vector<2x96xf32> to vector<2x32xf32>
    %433 = arith.mulf %422, %432 : vector<2x32xf32>
    %434 = arith.addf %431, %433 : vector<2x32xf32>
    %435 = math.tanh %434 : vector<2x32xf32>
    %cst_142 = arith.constant 1.000000e+00 : f32
    %436 = vector.broadcast %cst_142 : f32 to vector<2x32xf32>
    %437 = arith.subf %436, %430 : vector<2x32xf32>
    %438 = arith.mulf %437, %435 : vector<2x32xf32>
    %439 = arith.mulf %430, %394 : vector<2x32xf32>
    %440 = arith.addf %438, %439 : vector<2x32xf32>
    %441 = vector.extract_strided_slice %440 {offsets = [0, 0], sizes = [2, 16], strides = [1, 1]} : vector<2x32xf32> to vector<2x16xf32>
    %c2_i32_143 = arith.constant 2 : i32
    %442 = arith.muli %c8_i32, %c2_i32_143 : i32
    %443 = arith.index_cast %442 : i32 to index
    %c0_144 = arith.constant 0 : index
    %444 = vector.load %arg19[%443, %c0_144] : memref<32x16xf32, #tpu.memory_space<vmem>>, vector<2x16xf32>
    tpu.vector_store %arg19[%443, %c0_144], %441 {strides = array<i32>} : memref<32x16xf32, #tpu.memory_space<vmem>>, vector<2x16xf32>,
    %445 = vector.extract_strided_slice %440 {offsets = [0, 16], sizes = [2, 16], strides = [1, 1]} : vector<2x32xf32> to vector<2x16xf32>
    %c15_i32_145 = arith.constant 15 : i32
    %446 = arith.subi %c15_i32_145, %c8_i32 : i32
    %c2_i32_146 = arith.constant 2 : i32
    %447 = arith.muli %446, %c2_i32_146 : i32
    %448 = arith.index_cast %447 : i32 to index
    %c0_147 = arith.constant 0 : index
    %449 = vector.load %arg20[%448, %c0_147] : memref<32x16xf32, #tpu.memory_space<vmem>>, vector<2x16xf32>
    tpu.vector_store %arg20[%448, %c0_147], %445 {strides = array<i32>} : memref<32x16xf32, #tpu.memory_space<vmem>>, vector<2x16xf32>,
    %c9_i32 = arith.constant 9 : i32
    %c2_i32_148 = arith.constant 2 : i32
    %450 = arith.muli %c9_i32, %c2_i32_148 : i32
    %451 = arith.index_cast %450 : i32 to index
    %c0_149 = arith.constant 0 : index
    %452 = vector.load %arg18[%451, %c0_149] : memref<32x96xf32, #tpu.memory_space<vmem>>, vector<2x96xf32>
    %c15_i32_150 = arith.constant 15 : i32
    %453 = arith.subi %c15_i32_150, %c9_i32 : i32
    %c2_i32_151 = arith.constant 2 : i32
    %454 = arith.muli %453, %c2_i32_151 : i32
    %455 = arith.index_cast %454 : i32 to index
    %c0_152 = arith.constant 0 : index
    %456 = vector.load %arg18[%455, %c0_152] : memref<32x96xf32, #tpu.memory_space<vmem>>, vector<2x96xf32>
    %457 = arith.select %34, %452, %456 : vector<2x96xi1>, vector<2x96xf32>
    %cst_153 = arith.constant dense<0.000000e+00> : vector<2x96xf32>
    %458 = tpu.matmul %440, %14, %cst_153 {dimension_numbers = #tpu.dot_dimension_numbers<[1], [0], [0], [1], [0, 0, 1, 1], [], []>} : vector<2x32xf32>, vector<32x96xf32>, vector<2x96xf32> -> vector<2x96xf32>
    %459 = vector.broadcast %15 : vector<1x96xf32> to vector<2x96xf32>
    %460 = arith.addf %458, %459 : vector<2x96xf32>
    %461 = vector.extract_strided_slice %457 {offsets = [0, 0], sizes = [2, 32], strides = [1, 1]} : vector<2x96xf32> to vector<2x32xf32>
    %462 = vector.extract_strided_slice %460 {offsets = [0, 0], sizes = [2, 32], strides = [1, 1]} : vector<2x96xf32> to vector<2x32xf32>
    %463 = arith.addf %461, %462 : vector<2x32xf32>
    %464 = arith.negf %463 : vector<2x32xf32>
    %465 = math.exp %464 : vector<2x32xf32>
    %cst_154 = arith.constant 1.000000e+00 : f32
    %466 = vector.broadcast %cst_154 : f32 to vector<2x32xf32>
    %467 = arith.addf %466, %465 : vector<2x32xf32>
    %468 = arith.divf %466, %467 : vector<2x32xf32>
    %469 = vector.extract_strided_slice %457 {offsets = [0, 32], sizes = [2, 32], strides = [1, 1]} : vector<2x96xf32> to vector<2x32xf32>
    %470 = vector.extract_strided_slice %460 {offsets = [0, 32], sizes = [2, 32], strides = [1, 1]} : vector<2x96xf32> to vector<2x32xf32>
    %471 = arith.addf %469, %470 : vector<2x32xf32>
    %472 = arith.negf %471 : vector<2x32xf32>
    %473 = math.exp %472 : vector<2x32xf32>
    %cst_155 = arith.constant 1.000000e+00 : f32
    %474 = vector.broadcast %cst_155 : f32 to vector<2x32xf32>
    %475 = arith.addf %474, %473 : vector<2x32xf32>
    %476 = arith.divf %474, %475 : vector<2x32xf32>
    %477 = vector.extract_strided_slice %457 {offsets = [0, 64], sizes = [2, 32], strides = [1, 1]} : vector<2x96xf32> to vector<2x32xf32>
    %478 = vector.extract_strided_slice %460 {offsets = [0, 64], sizes = [2, 32], strides = [1, 1]} : vector<2x96xf32> to vector<2x32xf32>
    %479 = arith.mulf %468, %478 : vector<2x32xf32>
    %480 = arith.addf %477, %479 : vector<2x32xf32>
    %481 = math.tanh %480 : vector<2x32xf32>
    %cst_156 = arith.constant 1.000000e+00 : f32
    %482 = vector.broadcast %cst_156 : f32 to vector<2x32xf32>
    %483 = arith.subf %482, %476 : vector<2x32xf32>
    %484 = arith.mulf %483, %481 : vector<2x32xf32>
    %485 = arith.mulf %476, %440 : vector<2x32xf32>
    %486 = arith.addf %484, %485 : vector<2x32xf32>
    %487 = vector.extract_strided_slice %486 {offsets = [0, 0], sizes = [2, 16], strides = [1, 1]} : vector<2x32xf32> to vector<2x16xf32>
    %c2_i32_157 = arith.constant 2 : i32
    %488 = arith.muli %c9_i32, %c2_i32_157 : i32
    %489 = arith.index_cast %488 : i32 to index
    %c0_158 = arith.constant 0 : index
    %490 = vector.load %arg19[%489, %c0_158] : memref<32x16xf32, #tpu.memory_space<vmem>>, vector<2x16xf32>
    tpu.vector_store %arg19[%489, %c0_158], %487 {strides = array<i32>} : memref<32x16xf32, #tpu.memory_space<vmem>>, vector<2x16xf32>,
    %491 = vector.extract_strided_slice %486 {offsets = [0, 16], sizes = [2, 16], strides = [1, 1]} : vector<2x32xf32> to vector<2x16xf32>
    %c15_i32_159 = arith.constant 15 : i32
    %492 = arith.subi %c15_i32_159, %c9_i32 : i32
    %c2_i32_160 = arith.constant 2 : i32
    %493 = arith.muli %492, %c2_i32_160 : i32
    %494 = arith.index_cast %493 : i32 to index
    %c0_161 = arith.constant 0 : index
    %495 = vector.load %arg20[%494, %c0_161] : memref<32x16xf32, #tpu.memory_space<vmem>>, vector<2x16xf32>
    tpu.vector_store %arg20[%494, %c0_161], %491 {strides = array<i32>} : memref<32x16xf32, #tpu.memory_space<vmem>>, vector<2x16xf32>,
    %c10_i32 = arith.constant 10 : i32
    %c2_i32_162 = arith.constant 2 : i32
    %496 = arith.muli %c10_i32, %c2_i32_162 : i32
    %497 = arith.index_cast %496 : i32 to index
    %c0_163 = arith.constant 0 : index
    %498 = vector.load %arg18[%497, %c0_163] : memref<32x96xf32, #tpu.memory_space<vmem>>, vector<2x96xf32>
    %c15_i32_164 = arith.constant 15 : i32
    %499 = arith.subi %c15_i32_164, %c10_i32 : i32
    %c2_i32_165 = arith.constant 2 : i32
    %500 = arith.muli %499, %c2_i32_165 : i32
    %501 = arith.index_cast %500 : i32 to index
    %c0_166 = arith.constant 0 : index
    %502 = vector.load %arg18[%501, %c0_166] : memref<32x96xf32, #tpu.memory_space<vmem>>, vector<2x96xf32>
    %503 = arith.select %34, %498, %502 : vector<2x96xi1>, vector<2x96xf32>
    %cst_167 = arith.constant dense<0.000000e+00> : vector<2x96xf32>
    %504 = tpu.matmul %486, %14, %cst_167 {dimension_numbers = #tpu.dot_dimension_numbers<[1], [0], [0], [1], [0, 0, 1, 1], [], []>} : vector<2x32xf32>, vector<32x96xf32>, vector<2x96xf32> -> vector<2x96xf32>
    %505 = vector.broadcast %15 : vector<1x96xf32> to vector<2x96xf32>
    %506 = arith.addf %504, %505 : vector<2x96xf32>
    %507 = vector.extract_strided_slice %503 {offsets = [0, 0], sizes = [2, 32], strides = [1, 1]} : vector<2x96xf32> to vector<2x32xf32>
    %508 = vector.extract_strided_slice %506 {offsets = [0, 0], sizes = [2, 32], strides = [1, 1]} : vector<2x96xf32> to vector<2x32xf32>
    %509 = arith.addf %507, %508 : vector<2x32xf32>
    %510 = arith.negf %509 : vector<2x32xf32>
    %511 = math.exp %510 : vector<2x32xf32>
    %cst_168 = arith.constant 1.000000e+00 : f32
    %512 = vector.broadcast %cst_168 : f32 to vector<2x32xf32>
    %513 = arith.addf %512, %511 : vector<2x32xf32>
    %514 = arith.divf %512, %513 : vector<2x32xf32>
    %515 = vector.extract_strided_slice %503 {offsets = [0, 32], sizes = [2, 32], strides = [1, 1]} : vector<2x96xf32> to vector<2x32xf32>
    %516 = vector.extract_strided_slice %506 {offsets = [0, 32], sizes = [2, 32], strides = [1, 1]} : vector<2x96xf32> to vector<2x32xf32>
    %517 = arith.addf %515, %516 : vector<2x32xf32>
    %518 = arith.negf %517 : vector<2x32xf32>
    %519 = math.exp %518 : vector<2x32xf32>
    %cst_169 = arith.constant 1.000000e+00 : f32
    %520 = vector.broadcast %cst_169 : f32 to vector<2x32xf32>
    %521 = arith.addf %520, %519 : vector<2x32xf32>
    %522 = arith.divf %520, %521 : vector<2x32xf32>
    %523 = vector.extract_strided_slice %503 {offsets = [0, 64], sizes = [2, 32], strides = [1, 1]} : vector<2x96xf32> to vector<2x32xf32>
    %524 = vector.extract_strided_slice %506 {offsets = [0, 64], sizes = [2, 32], strides = [1, 1]} : vector<2x96xf32> to vector<2x32xf32>
    %525 = arith.mulf %514, %524 : vector<2x32xf32>
    %526 = arith.addf %523, %525 : vector<2x32xf32>
    %527 = math.tanh %526 : vector<2x32xf32>
    %cst_170 = arith.constant 1.000000e+00 : f32
    %528 = vector.broadcast %cst_170 : f32 to vector<2x32xf32>
    %529 = arith.subf %528, %522 : vector<2x32xf32>
    %530 = arith.mulf %529, %527 : vector<2x32xf32>
    %531 = arith.mulf %522, %486 : vector<2x32xf32>
    %532 = arith.addf %530, %531 : vector<2x32xf32>
    %533 = vector.extract_strided_slice %532 {offsets = [0, 0], sizes = [2, 16], strides = [1, 1]} : vector<2x32xf32> to vector<2x16xf32>
    %c2_i32_171 = arith.constant 2 : i32
    %534 = arith.muli %c10_i32, %c2_i32_171 : i32
    %535 = arith.index_cast %534 : i32 to index
    %c0_172 = arith.constant 0 : index
    %536 = vector.load %arg19[%535, %c0_172] : memref<32x16xf32, #tpu.memory_space<vmem>>, vector<2x16xf32>
    tpu.vector_store %arg19[%535, %c0_172], %533 {strides = array<i32>} : memref<32x16xf32, #tpu.memory_space<vmem>>, vector<2x16xf32>,
    %537 = vector.extract_strided_slice %532 {offsets = [0, 16], sizes = [2, 16], strides = [1, 1]} : vector<2x32xf32> to vector<2x16xf32>
    %c15_i32_173 = arith.constant 15 : i32
    %538 = arith.subi %c15_i32_173, %c10_i32 : i32
    %c2_i32_174 = arith.constant 2 : i32
    %539 = arith.muli %538, %c2_i32_174 : i32
    %540 = arith.index_cast %539 : i32 to index
    %c0_175 = arith.constant 0 : index
    %541 = vector.load %arg20[%540, %c0_175] : memref<32x16xf32, #tpu.memory_space<vmem>>, vector<2x16xf32>
    tpu.vector_store %arg20[%540, %c0_175], %537 {strides = array<i32>} : memref<32x16xf32, #tpu.memory_space<vmem>>, vector<2x16xf32>,
    %c11_i32 = arith.constant 11 : i32
    %c2_i32_176 = arith.constant 2 : i32
    %542 = arith.muli %c11_i32, %c2_i32_176 : i32
    %543 = arith.index_cast %542 : i32 to index
    %c0_177 = arith.constant 0 : index
    %544 = vector.load %arg18[%543, %c0_177] : memref<32x96xf32, #tpu.memory_space<vmem>>, vector<2x96xf32>
    %c15_i32_178 = arith.constant 15 : i32
    %545 = arith.subi %c15_i32_178, %c11_i32 : i32
    %c2_i32_179 = arith.constant 2 : i32
    %546 = arith.muli %545, %c2_i32_179 : i32
    %547 = arith.index_cast %546 : i32 to index
    %c0_180 = arith.constant 0 : index
    %548 = vector.load %arg18[%547, %c0_180] : memref<32x96xf32, #tpu.memory_space<vmem>>, vector<2x96xf32>
    %549 = arith.select %34, %544, %548 : vector<2x96xi1>, vector<2x96xf32>
    %cst_181 = arith.constant dense<0.000000e+00> : vector<2x96xf32>
    %550 = tpu.matmul %532, %14, %cst_181 {dimension_numbers = #tpu.dot_dimension_numbers<[1], [0], [0], [1], [0, 0, 1, 1], [], []>} : vector<2x32xf32>, vector<32x96xf32>, vector<2x96xf32> -> vector<2x96xf32>
    %551 = vector.broadcast %15 : vector<1x96xf32> to vector<2x96xf32>
    %552 = arith.addf %550, %551 : vector<2x96xf32>
    %553 = vector.extract_strided_slice %549 {offsets = [0, 0], sizes = [2, 32], strides = [1, 1]} : vector<2x96xf32> to vector<2x32xf32>
    %554 = vector.extract_strided_slice %552 {offsets = [0, 0], sizes = [2, 32], strides = [1, 1]} : vector<2x96xf32> to vector<2x32xf32>
    %555 = arith.addf %553, %554 : vector<2x32xf32>
    %556 = arith.negf %555 : vector<2x32xf32>
    %557 = math.exp %556 : vector<2x32xf32>
    %cst_182 = arith.constant 1.000000e+00 : f32
    %558 = vector.broadcast %cst_182 : f32 to vector<2x32xf32>
    %559 = arith.addf %558, %557 : vector<2x32xf32>
    %560 = arith.divf %558, %559 : vector<2x32xf32>
    %561 = vector.extract_strided_slice %549 {offsets = [0, 32], sizes = [2, 32], strides = [1, 1]} : vector<2x96xf32> to vector<2x32xf32>
    %562 = vector.extract_strided_slice %552 {offsets = [0, 32], sizes = [2, 32], strides = [1, 1]} : vector<2x96xf32> to vector<2x32xf32>
    %563 = arith.addf %561, %562 : vector<2x32xf32>
    %564 = arith.negf %563 : vector<2x32xf32>
    %565 = math.exp %564 : vector<2x32xf32>
    %cst_183 = arith.constant 1.000000e+00 : f32
    %566 = vector.broadcast %cst_183 : f32 to vector<2x32xf32>
    %567 = arith.addf %566, %565 : vector<2x32xf32>
    %568 = arith.divf %566, %567 : vector<2x32xf32>
    %569 = vector.extract_strided_slice %549 {offsets = [0, 64], sizes = [2, 32], strides = [1, 1]} : vector<2x96xf32> to vector<2x32xf32>
    %570 = vector.extract_strided_slice %552 {offsets = [0, 64], sizes = [2, 32], strides = [1, 1]} : vector<2x96xf32> to vector<2x32xf32>
    %571 = arith.mulf %560, %570 : vector<2x32xf32>
    %572 = arith.addf %569, %571 : vector<2x32xf32>
    %573 = math.tanh %572 : vector<2x32xf32>
    %cst_184 = arith.constant 1.000000e+00 : f32
    %574 = vector.broadcast %cst_184 : f32 to vector<2x32xf32>
    %575 = arith.subf %574, %568 : vector<2x32xf32>
    %576 = arith.mulf %575, %573 : vector<2x32xf32>
    %577 = arith.mulf %568, %532 : vector<2x32xf32>
    %578 = arith.addf %576, %577 : vector<2x32xf32>
    %579 = vector.extract_strided_slice %578 {offsets = [0, 0], sizes = [2, 16], strides = [1, 1]} : vector<2x32xf32> to vector<2x16xf32>
    %c2_i32_185 = arith.constant 2 : i32
    %580 = arith.muli %c11_i32, %c2_i32_185 : i32
    %581 = arith.index_cast %580 : i32 to index
    %c0_186 = arith.constant 0 : index
    %582 = vector.load %arg19[%581, %c0_186] : memref<32x16xf32, #tpu.memory_space<vmem>>, vector<2x16xf32>
    tpu.vector_store %arg19[%581, %c0_186], %579 {strides = array<i32>} : memref<32x16xf32, #tpu.memory_space<vmem>>, vector<2x16xf32>,
    %583 = vector.extract_strided_slice %578 {offsets = [0, 16], sizes = [2, 16], strides = [1, 1]} : vector<2x32xf32> to vector<2x16xf32>
    %c15_i32_187 = arith.constant 15 : i32
    %584 = arith.subi %c15_i32_187, %c11_i32 : i32
    %c2_i32_188 = arith.constant 2 : i32
    %585 = arith.muli %584, %c2_i32_188 : i32
    %586 = arith.index_cast %585 : i32 to index
    %c0_189 = arith.constant 0 : index
    %587 = vector.load %arg20[%586, %c0_189] : memref<32x16xf32, #tpu.memory_space<vmem>>, vector<2x16xf32>
    tpu.vector_store %arg20[%586, %c0_189], %583 {strides = array<i32>} : memref<32x16xf32, #tpu.memory_space<vmem>>, vector<2x16xf32>,
    %c12_i32 = arith.constant 12 : i32
    %c2_i32_190 = arith.constant 2 : i32
    %588 = arith.muli %c12_i32, %c2_i32_190 : i32
    %589 = arith.index_cast %588 : i32 to index
    %c0_191 = arith.constant 0 : index
    %590 = vector.load %arg18[%589, %c0_191] : memref<32x96xf32, #tpu.memory_space<vmem>>, vector<2x96xf32>
    %c15_i32_192 = arith.constant 15 : i32
    %591 = arith.subi %c15_i32_192, %c12_i32 : i32
    %c2_i32_193 = arith.constant 2 : i32
    %592 = arith.muli %591, %c2_i32_193 : i32
    %593 = arith.index_cast %592 : i32 to index
    %c0_194 = arith.constant 0 : index
    %594 = vector.load %arg18[%593, %c0_194] : memref<32x96xf32, #tpu.memory_space<vmem>>, vector<2x96xf32>
    %595 = arith.select %34, %590, %594 : vector<2x96xi1>, vector<2x96xf32>
    %cst_195 = arith.constant dense<0.000000e+00> : vector<2x96xf32>
    %596 = tpu.matmul %578, %14, %cst_195 {dimension_numbers = #tpu.dot_dimension_numbers<[1], [0], [0], [1], [0, 0, 1, 1], [], []>} : vector<2x32xf32>, vector<32x96xf32>, vector<2x96xf32> -> vector<2x96xf32>
    %597 = vector.broadcast %15 : vector<1x96xf32> to vector<2x96xf32>
    %598 = arith.addf %596, %597 : vector<2x96xf32>
    %599 = vector.extract_strided_slice %595 {offsets = [0, 0], sizes = [2, 32], strides = [1, 1]} : vector<2x96xf32> to vector<2x32xf32>
    %600 = vector.extract_strided_slice %598 {offsets = [0, 0], sizes = [2, 32], strides = [1, 1]} : vector<2x96xf32> to vector<2x32xf32>
    %601 = arith.addf %599, %600 : vector<2x32xf32>
    %602 = arith.negf %601 : vector<2x32xf32>
    %603 = math.exp %602 : vector<2x32xf32>
    %cst_196 = arith.constant 1.000000e+00 : f32
    %604 = vector.broadcast %cst_196 : f32 to vector<2x32xf32>
    %605 = arith.addf %604, %603 : vector<2x32xf32>
    %606 = arith.divf %604, %605 : vector<2x32xf32>
    %607 = vector.extract_strided_slice %595 {offsets = [0, 32], sizes = [2, 32], strides = [1, 1]} : vector<2x96xf32> to vector<2x32xf32>
    %608 = vector.extract_strided_slice %598 {offsets = [0, 32], sizes = [2, 32], strides = [1, 1]} : vector<2x96xf32> to vector<2x32xf32>
    %609 = arith.addf %607, %608 : vector<2x32xf32>
    %610 = arith.negf %609 : vector<2x32xf32>
    %611 = math.exp %610 : vector<2x32xf32>
    %cst_197 = arith.constant 1.000000e+00 : f32
    %612 = vector.broadcast %cst_197 : f32 to vector<2x32xf32>
    %613 = arith.addf %612, %611 : vector<2x32xf32>
    %614 = arith.divf %612, %613 : vector<2x32xf32>
    %615 = vector.extract_strided_slice %595 {offsets = [0, 64], sizes = [2, 32], strides = [1, 1]} : vector<2x96xf32> to vector<2x32xf32>
    %616 = vector.extract_strided_slice %598 {offsets = [0, 64], sizes = [2, 32], strides = [1, 1]} : vector<2x96xf32> to vector<2x32xf32>
    %617 = arith.mulf %606, %616 : vector<2x32xf32>
    %618 = arith.addf %615, %617 : vector<2x32xf32>
    %619 = math.tanh %618 : vector<2x32xf32>
    %cst_198 = arith.constant 1.000000e+00 : f32
    %620 = vector.broadcast %cst_198 : f32 to vector<2x32xf32>
    %621 = arith.subf %620, %614 : vector<2x32xf32>
    %622 = arith.mulf %621, %619 : vector<2x32xf32>
    %623 = arith.mulf %614, %578 : vector<2x32xf32>
    %624 = arith.addf %622, %623 : vector<2x32xf32>
    %625 = vector.extract_strided_slice %624 {offsets = [0, 0], sizes = [2, 16], strides = [1, 1]} : vector<2x32xf32> to vector<2x16xf32>
    %c2_i32_199 = arith.constant 2 : i32
    %626 = arith.muli %c12_i32, %c2_i32_199 : i32
    %627 = arith.index_cast %626 : i32 to index
    %c0_200 = arith.constant 0 : index
    %628 = vector.load %arg19[%627, %c0_200] : memref<32x16xf32, #tpu.memory_space<vmem>>, vector<2x16xf32>
    tpu.vector_store %arg19[%627, %c0_200], %625 {strides = array<i32>} : memref<32x16xf32, #tpu.memory_space<vmem>>, vector<2x16xf32>,
    %629 = vector.extract_strided_slice %624 {offsets = [0, 16], sizes = [2, 16], strides = [1, 1]} : vector<2x32xf32> to vector<2x16xf32>
    %c15_i32_201 = arith.constant 15 : i32
    %630 = arith.subi %c15_i32_201, %c12_i32 : i32
    %c2_i32_202 = arith.constant 2 : i32
    %631 = arith.muli %630, %c2_i32_202 : i32
    %632 = arith.index_cast %631 : i32 to index
    %c0_203 = arith.constant 0 : index
    %633 = vector.load %arg20[%632, %c0_203] : memref<32x16xf32, #tpu.memory_space<vmem>>, vector<2x16xf32>
    tpu.vector_store %arg20[%632, %c0_203], %629 {strides = array<i32>} : memref<32x16xf32, #tpu.memory_space<vmem>>, vector<2x16xf32>,
    %c13_i32 = arith.constant 13 : i32
    %c2_i32_204 = arith.constant 2 : i32
    %634 = arith.muli %c13_i32, %c2_i32_204 : i32
    %635 = arith.index_cast %634 : i32 to index
    %c0_205 = arith.constant 0 : index
    %636 = vector.load %arg18[%635, %c0_205] : memref<32x96xf32, #tpu.memory_space<vmem>>, vector<2x96xf32>
    %c15_i32_206 = arith.constant 15 : i32
    %637 = arith.subi %c15_i32_206, %c13_i32 : i32
    %c2_i32_207 = arith.constant 2 : i32
    %638 = arith.muli %637, %c2_i32_207 : i32
    %639 = arith.index_cast %638 : i32 to index
    %c0_208 = arith.constant 0 : index
    %640 = vector.load %arg18[%639, %c0_208] : memref<32x96xf32, #tpu.memory_space<vmem>>, vector<2x96xf32>
    %641 = arith.select %34, %636, %640 : vector<2x96xi1>, vector<2x96xf32>
    %cst_209 = arith.constant dense<0.000000e+00> : vector<2x96xf32>
    %642 = tpu.matmul %624, %14, %cst_209 {dimension_numbers = #tpu.dot_dimension_numbers<[1], [0], [0], [1], [0, 0, 1, 1], [], []>} : vector<2x32xf32>, vector<32x96xf32>, vector<2x96xf32> -> vector<2x96xf32>
    %643 = vector.broadcast %15 : vector<1x96xf32> to vector<2x96xf32>
    %644 = arith.addf %642, %643 : vector<2x96xf32>
    %645 = vector.extract_strided_slice %641 {offsets = [0, 0], sizes = [2, 32], strides = [1, 1]} : vector<2x96xf32> to vector<2x32xf32>
    %646 = vector.extract_strided_slice %644 {offsets = [0, 0], sizes = [2, 32], strides = [1, 1]} : vector<2x96xf32> to vector<2x32xf32>
    %647 = arith.addf %645, %646 : vector<2x32xf32>
    %648 = arith.negf %647 : vector<2x32xf32>
    %649 = math.exp %648 : vector<2x32xf32>
    %cst_210 = arith.constant 1.000000e+00 : f32
    %650 = vector.broadcast %cst_210 : f32 to vector<2x32xf32>
    %651 = arith.addf %650, %649 : vector<2x32xf32>
    %652 = arith.divf %650, %651 : vector<2x32xf32>
    %653 = vector.extract_strided_slice %641 {offsets = [0, 32], sizes = [2, 32], strides = [1, 1]} : vector<2x96xf32> to vector<2x32xf32>
    %654 = vector.extract_strided_slice %644 {offsets = [0, 32], sizes = [2, 32], strides = [1, 1]} : vector<2x96xf32> to vector<2x32xf32>
    %655 = arith.addf %653, %654 : vector<2x32xf32>
    %656 = arith.negf %655 : vector<2x32xf32>
    %657 = math.exp %656 : vector<2x32xf32>
    %cst_211 = arith.constant 1.000000e+00 : f32
    %658 = vector.broadcast %cst_211 : f32 to vector<2x32xf32>
    %659 = arith.addf %658, %657 : vector<2x32xf32>
    %660 = arith.divf %658, %659 : vector<2x32xf32>
    %661 = vector.extract_strided_slice %641 {offsets = [0, 64], sizes = [2, 32], strides = [1, 1]} : vector<2x96xf32> to vector<2x32xf32>
    %662 = vector.extract_strided_slice %644 {offsets = [0, 64], sizes = [2, 32], strides = [1, 1]} : vector<2x96xf32> to vector<2x32xf32>
    %663 = arith.mulf %652, %662 : vector<2x32xf32>
    %664 = arith.addf %661, %663 : vector<2x32xf32>
    %665 = math.tanh %664 : vector<2x32xf32>
    %cst_212 = arith.constant 1.000000e+00 : f32
    %666 = vector.broadcast %cst_212 : f32 to vector<2x32xf32>
    %667 = arith.subf %666, %660 : vector<2x32xf32>
    %668 = arith.mulf %667, %665 : vector<2x32xf32>
    %669 = arith.mulf %660, %624 : vector<2x32xf32>
    %670 = arith.addf %668, %669 : vector<2x32xf32>
    %671 = vector.extract_strided_slice %670 {offsets = [0, 0], sizes = [2, 16], strides = [1, 1]} : vector<2x32xf32> to vector<2x16xf32>
    %c2_i32_213 = arith.constant 2 : i32
    %672 = arith.muli %c13_i32, %c2_i32_213 : i32
    %673 = arith.index_cast %672 : i32 to index
    %c0_214 = arith.constant 0 : index
    %674 = vector.load %arg19[%673, %c0_214] : memref<32x16xf32, #tpu.memory_space<vmem>>, vector<2x16xf32>
    tpu.vector_store %arg19[%673, %c0_214], %671 {strides = array<i32>} : memref<32x16xf32, #tpu.memory_space<vmem>>, vector<2x16xf32>,
    %675 = vector.extract_strided_slice %670 {offsets = [0, 16], sizes = [2, 16], strides = [1, 1]} : vector<2x32xf32> to vector<2x16xf32>
    %c15_i32_215 = arith.constant 15 : i32
    %676 = arith.subi %c15_i32_215, %c13_i32 : i32
    %c2_i32_216 = arith.constant 2 : i32
    %677 = arith.muli %676, %c2_i32_216 : i32
    %678 = arith.index_cast %677 : i32 to index
    %c0_217 = arith.constant 0 : index
    %679 = vector.load %arg20[%678, %c0_217] : memref<32x16xf32, #tpu.memory_space<vmem>>, vector<2x16xf32>
    tpu.vector_store %arg20[%678, %c0_217], %675 {strides = array<i32>} : memref<32x16xf32, #tpu.memory_space<vmem>>, vector<2x16xf32>,
    %c14_i32 = arith.constant 14 : i32
    %c2_i32_218 = arith.constant 2 : i32
    %680 = arith.muli %c14_i32, %c2_i32_218 : i32
    %681 = arith.index_cast %680 : i32 to index
    %c0_219 = arith.constant 0 : index
    %682 = vector.load %arg18[%681, %c0_219] : memref<32x96xf32, #tpu.memory_space<vmem>>, vector<2x96xf32>
    %c15_i32_220 = arith.constant 15 : i32
    %683 = arith.subi %c15_i32_220, %c14_i32 : i32
    %c2_i32_221 = arith.constant 2 : i32
    %684 = arith.muli %683, %c2_i32_221 : i32
    %685 = arith.index_cast %684 : i32 to index
    %c0_222 = arith.constant 0 : index
    %686 = vector.load %arg18[%685, %c0_222] : memref<32x96xf32, #tpu.memory_space<vmem>>, vector<2x96xf32>
    %687 = arith.select %34, %682, %686 : vector<2x96xi1>, vector<2x96xf32>
    %cst_223 = arith.constant dense<0.000000e+00> : vector<2x96xf32>
    %688 = tpu.matmul %670, %14, %cst_223 {dimension_numbers = #tpu.dot_dimension_numbers<[1], [0], [0], [1], [0, 0, 1, 1], [], []>} : vector<2x32xf32>, vector<32x96xf32>, vector<2x96xf32> -> vector<2x96xf32>
    %689 = vector.broadcast %15 : vector<1x96xf32> to vector<2x96xf32>
    %690 = arith.addf %688, %689 : vector<2x96xf32>
    %691 = vector.extract_strided_slice %687 {offsets = [0, 0], sizes = [2, 32], strides = [1, 1]} : vector<2x96xf32> to vector<2x32xf32>
    %692 = vector.extract_strided_slice %690 {offsets = [0, 0], sizes = [2, 32], strides = [1, 1]} : vector<2x96xf32> to vector<2x32xf32>
    %693 = arith.addf %691, %692 : vector<2x32xf32>
    %694 = arith.negf %693 : vector<2x32xf32>
    %695 = math.exp %694 : vector<2x32xf32>
    %cst_224 = arith.constant 1.000000e+00 : f32
    %696 = vector.broadcast %cst_224 : f32 to vector<2x32xf32>
    %697 = arith.addf %696, %695 : vector<2x32xf32>
    %698 = arith.divf %696, %697 : vector<2x32xf32>
    %699 = vector.extract_strided_slice %687 {offsets = [0, 32], sizes = [2, 32], strides = [1, 1]} : vector<2x96xf32> to vector<2x32xf32>
    %700 = vector.extract_strided_slice %690 {offsets = [0, 32], sizes = [2, 32], strides = [1, 1]} : vector<2x96xf32> to vector<2x32xf32>
    %701 = arith.addf %699, %700 : vector<2x32xf32>
    %702 = arith.negf %701 : vector<2x32xf32>
    %703 = math.exp %702 : vector<2x32xf32>
    %cst_225 = arith.constant 1.000000e+00 : f32
    %704 = vector.broadcast %cst_225 : f32 to vector<2x32xf32>
    %705 = arith.addf %704, %703 : vector<2x32xf32>
    %706 = arith.divf %704, %705 : vector<2x32xf32>
    %707 = vector.extract_strided_slice %687 {offsets = [0, 64], sizes = [2, 32], strides = [1, 1]} : vector<2x96xf32> to vector<2x32xf32>
    %708 = vector.extract_strided_slice %690 {offsets = [0, 64], sizes = [2, 32], strides = [1, 1]} : vector<2x96xf32> to vector<2x32xf32>
    %709 = arith.mulf %698, %708 : vector<2x32xf32>
    %710 = arith.addf %707, %709 : vector<2x32xf32>
    %711 = math.tanh %710 : vector<2x32xf32>
    %cst_226 = arith.constant 1.000000e+00 : f32
    %712 = vector.broadcast %cst_226 : f32 to vector<2x32xf32>
    %713 = arith.subf %712, %706 : vector<2x32xf32>
    %714 = arith.mulf %713, %711 : vector<2x32xf32>
    %715 = arith.mulf %706, %670 : vector<2x32xf32>
    %716 = arith.addf %714, %715 : vector<2x32xf32>
    %717 = vector.extract_strided_slice %716 {offsets = [0, 0], sizes = [2, 16], strides = [1, 1]} : vector<2x32xf32> to vector<2x16xf32>
    %c2_i32_227 = arith.constant 2 : i32
    %718 = arith.muli %c14_i32, %c2_i32_227 : i32
    %719 = arith.index_cast %718 : i32 to index
    %c0_228 = arith.constant 0 : index
    %720 = vector.load %arg19[%719, %c0_228] : memref<32x16xf32, #tpu.memory_space<vmem>>, vector<2x16xf32>
    tpu.vector_store %arg19[%719, %c0_228], %717 {strides = array<i32>} : memref<32x16xf32, #tpu.memory_space<vmem>>, vector<2x16xf32>,
    %721 = vector.extract_strided_slice %716 {offsets = [0, 16], sizes = [2, 16], strides = [1, 1]} : vector<2x32xf32> to vector<2x16xf32>
    %c15_i32_229 = arith.constant 15 : i32
    %722 = arith.subi %c15_i32_229, %c14_i32 : i32
    %c2_i32_230 = arith.constant 2 : i32
    %723 = arith.muli %722, %c2_i32_230 : i32
    %724 = arith.index_cast %723 : i32 to index
    %c0_231 = arith.constant 0 : index
    %725 = vector.load %arg20[%724, %c0_231] : memref<32x16xf32, #tpu.memory_space<vmem>>, vector<2x16xf32>
    tpu.vector_store %arg20[%724, %c0_231], %721 {strides = array<i32>} : memref<32x16xf32, #tpu.memory_space<vmem>>, vector<2x16xf32>,
    %c15_i32_232 = arith.constant 15 : i32
    %c2_i32_233 = arith.constant 2 : i32
    %726 = arith.muli %c15_i32_232, %c2_i32_233 : i32
    %727 = arith.index_cast %726 : i32 to index
    %c0_234 = arith.constant 0 : index
    %728 = vector.load %arg18[%727, %c0_234] : memref<32x96xf32, #tpu.memory_space<vmem>>, vector<2x96xf32>
    %c15_i32_235 = arith.constant 15 : i32
    %729 = arith.subi %c15_i32_235, %c15_i32_232 : i32
    %c2_i32_236 = arith.constant 2 : i32
    %730 = arith.muli %729, %c2_i32_236 : i32
    %731 = arith.index_cast %730 : i32 to index
    %c0_237 = arith.constant 0 : index
    %732 = vector.load %arg18[%731, %c0_237] : memref<32x96xf32, #tpu.memory_space<vmem>>, vector<2x96xf32>
    %733 = arith.select %34, %728, %732 : vector<2x96xi1>, vector<2x96xf32>
    %cst_238 = arith.constant dense<0.000000e+00> : vector<2x96xf32>
    %734 = tpu.matmul %716, %14, %cst_238 {dimension_numbers = #tpu.dot_dimension_numbers<[1], [0], [0], [1], [0, 0, 1, 1], [], []>} : vector<2x32xf32>, vector<32x96xf32>, vector<2x96xf32> -> vector<2x96xf32>
    %735 = vector.broadcast %15 : vector<1x96xf32> to vector<2x96xf32>
    %736 = arith.addf %734, %735 : vector<2x96xf32>
    %737 = vector.extract_strided_slice %733 {offsets = [0, 0], sizes = [2, 32], strides = [1, 1]} : vector<2x96xf32> to vector<2x32xf32>
    %738 = vector.extract_strided_slice %736 {offsets = [0, 0], sizes = [2, 32], strides = [1, 1]} : vector<2x96xf32> to vector<2x32xf32>
    %739 = arith.addf %737, %738 : vector<2x32xf32>
    %740 = arith.negf %739 : vector<2x32xf32>
    %741 = math.exp %740 : vector<2x32xf32>
    %cst_239 = arith.constant 1.000000e+00 : f32
    %742 = vector.broadcast %cst_239 : f32 to vector<2x32xf32>
    %743 = arith.addf %742, %741 : vector<2x32xf32>
    %744 = arith.divf %742, %743 : vector<2x32xf32>
    %745 = vector.extract_strided_slice %733 {offsets = [0, 32], sizes = [2, 32], strides = [1, 1]} : vector<2x96xf32> to vector<2x32xf32>
    %746 = vector.extract_strided_slice %736 {offsets = [0, 32], sizes = [2, 32], strides = [1, 1]} : vector<2x96xf32> to vector<2x32xf32>
    %747 = arith.addf %745, %746 : vector<2x32xf32>
    %748 = arith.negf %747 : vector<2x32xf32>
    %749 = math.exp %748 : vector<2x32xf32>
    %cst_240 = arith.constant 1.000000e+00 : f32
    %750 = vector.broadcast %cst_240 : f32 to vector<2x32xf32>
    %751 = arith.addf %750, %749 : vector<2x32xf32>
    %752 = arith.divf %750, %751 : vector<2x32xf32>
    %753 = vector.extract_strided_slice %733 {offsets = [0, 64], sizes = [2, 32], strides = [1, 1]} : vector<2x96xf32> to vector<2x32xf32>
    %754 = vector.extract_strided_slice %736 {offsets = [0, 64], sizes = [2, 32], strides = [1, 1]} : vector<2x96xf32> to vector<2x32xf32>
    %755 = arith.mulf %744, %754 : vector<2x32xf32>
    %756 = arith.addf %753, %755 : vector<2x32xf32>
    %757 = math.tanh %756 : vector<2x32xf32>
    %cst_241 = arith.constant 1.000000e+00 : f32
    %758 = vector.broadcast %cst_241 : f32 to vector<2x32xf32>
    %759 = arith.subf %758, %752 : vector<2x32xf32>
    %760 = arith.mulf %759, %757 : vector<2x32xf32>
    %761 = arith.mulf %752, %716 : vector<2x32xf32>
    %762 = arith.addf %760, %761 : vector<2x32xf32>
    %763 = vector.extract_strided_slice %762 {offsets = [0, 0], sizes = [2, 16], strides = [1, 1]} : vector<2x32xf32> to vector<2x16xf32>
    %c2_i32_242 = arith.constant 2 : i32
    %764 = arith.muli %c15_i32_232, %c2_i32_242 : i32
    %765 = arith.index_cast %764 : i32 to index
    %c0_243 = arith.constant 0 : index
    %766 = vector.load %arg19[%765, %c0_243] : memref<32x16xf32, #tpu.memory_space<vmem>>, vector<2x16xf32>
    tpu.vector_store %arg19[%765, %c0_243], %763 {strides = array<i32>} : memref<32x16xf32, #tpu.memory_space<vmem>>, vector<2x16xf32>,
    %767 = vector.extract_strided_slice %762 {offsets = [0, 16], sizes = [2, 16], strides = [1, 1]} : vector<2x32xf32> to vector<2x16xf32>
    %c15_i32_244 = arith.constant 15 : i32
    %768 = arith.subi %c15_i32_244, %c15_i32_232 : i32
    %c2_i32_245 = arith.constant 2 : i32
    %769 = arith.muli %768, %c2_i32_245 : i32
    %770 = arith.index_cast %769 : i32 to index
    %c0_246 = arith.constant 0 : index
    %771 = vector.load %arg20[%770, %c0_246] : memref<32x16xf32, #tpu.memory_space<vmem>>, vector<2x16xf32>
    tpu.vector_store %arg20[%770, %c0_246], %767 {strides = array<i32>} : memref<32x16xf32, #tpu.memory_space<vmem>>, vector<2x16xf32>,
    %c16_i32_247 = arith.constant 16 : i32
    %c0_248 = arith.constant 0 : index
    %c0_249 = arith.constant 0 : index
    %772 = vector.load %arg19[%c0_248, %c0_249] : memref<32x16xf32, #tpu.memory_space<vmem>>, vector<32x16xf32>
    %c0_250 = arith.constant 0 : index
    %c0_251 = arith.constant 0 : index
    %773 = vector.load %arg20[%c0_250, %c0_251] : memref<32x16xf32, #tpu.memory_space<vmem>>, vector<32x16xf32>
    %774 = tpu.concatenate %772, %773 in 1 : vector<32x16xf32>, vector<32x16xf32> -> vector<32x32xf32>
    %c0_252 = arith.constant 0 : index
    %c0_253 = arith.constant 0 : index
    %775 = vector.load %arg10[%c0_252, %c0_253] : memref<32x1xf32, #tpu.memory_space<vmem>>, vector<32x1xf32>
    %cst_254 = arith.constant dense<0.000000e+00> : vector<32x1xf32>
    %776 = tpu.matmul %774, %775, %cst_254 {dimension_numbers = #tpu.dot_dimension_numbers<[1], [0], [0], [1], [0, 0, 1, 1], [], []>} : vector<32x32xf32>, vector<32x1xf32>, vector<32x1xf32> -> vector<32x1xf32>
    %c0_255 = arith.constant 0 : index
    %c0_256 = arith.constant 0 : index
    %777 = vector.load %arg11[%c0_255, %c0_256] : memref<32x1xf32, #tpu.memory_space<vmem>>, vector<32x1xf32>
    %cst_257 = arith.constant dense<0.000000e+00> : vector<1x32xf32>
    %778 = tpu.matmul %777, %774, %cst_257 {dimension_numbers = #tpu.dot_dimension_numbers<[0], [1], [1], [0], [0, 1, 1, 0], [], []>} : vector<32x1xf32>, vector<32x32xf32>, vector<1x32xf32> -> vector<1x32xf32>
    %c0_258 = arith.constant 0 : index
    %c0_259 = arith.constant 0 : index
    %779 = vector.load %arg12[%c0_258, %c0_259] : memref<1x32xf32, #tpu.memory_space<vmem>>, vector<1x32xf32>
    %780 = vector.broadcast %779 : vector<1x32xf32> to vector<32x32xf32>
    %781 = arith.mulf %774, %780 : vector<32x32xf32>
    %cst_260 = arith.constant dense<0.000000e+00> : vector<32x32xf32>
    %782 = tpu.matmul %781, %774, %cst_260 {dimension_numbers = #tpu.dot_dimension_numbers<[1], [1], [0], [0], [0, 0, 1, 0], [], []>} : vector<32x32xf32>, vector<32x32xf32>, vector<32x32xf32> -> vector<32x32xf32>
    %783 = vector.broadcast %776 : vector<32x1xf32> to vector<32x32xf32>
    %784 = arith.addf %782, %783 : vector<32x32xf32>
    %785 = vector.broadcast %778 : vector<1x32xf32> to vector<32x32xf32>
    %786 = arith.addf %784, %785 : vector<32x32xf32>
    %c0_261 = arith.constant 0 : index
    %c0_262 = arith.constant 0 : index
    %787 = vector.load %arg2[%c0_261, %c0_262] : memref<32x32xf32, #tpu.memory_space<vmem>>, vector<32x32xf32>
    %788 = arith.mulf %787, %786 : vector<32x32xf32>
    %c0_263 = arith.constant 0 : index
    %c0_264 = arith.constant 0 : index
    %789 = vector.load %arg3[%c0_263, %c0_264] : memref<32x32xf32, #tpu.memory_space<vmem>>, vector<32x32xf32>
    %790 = arith.addf %788, %789 : vector<32x32xf32>
    %cst_265 = arith.constant dense<0xFF800000> : vector<32xf32>
    %791 = vector.multi_reduction <maximumf>, %790, %cst_265 [1] : vector<32x32xf32> to vector<32xf32>
    %792 = vector.shape_cast %791 : vector<32xf32> to vector<32x1xf32>
    %793 = vector.broadcast %792 : vector<32x1xf32> to vector<32x32xf32>
    %794 = arith.subf %790, %793 : vector<32x32xf32>
    %795 = math.exp %794 : vector<32x32xf32>
    %cst_266 = arith.constant dense<0.000000e+00> : vector<32xf32>
    %796 = vector.multi_reduction <add>, %795, %cst_266 [1] : vector<32x32xf32> to vector<32xf32>
    %797 = vector.shape_cast %796 : vector<32xf32> to vector<32x1xf32>
    %798 = tpu.reciprocal %797 {approx = true} : vector<32x1xf32> -> vector<32x1xf32>
    %799 = vector.broadcast %798 : vector<32x1xf32> to vector<32x32xf32>
    %800 = arith.mulf %795, %799 : vector<32x32xf32>
    %cst_267 = arith.constant dense<0.000000e+00> : vector<32x32xf32>
    %801 = tpu.matmul %800, %774, %cst_267 {dimension_numbers = #tpu.dot_dimension_numbers<[1], [0], [0], [1], [0, 0, 1, 1], [], []>} : vector<32x32xf32>, vector<32x32xf32>, vector<32x32xf32> -> vector<32x32xf32>
    %c0_268 = arith.constant 0 : index
    %c0_269 = arith.constant 0 : index
    %802 = vector.load %arg13[%c0_268, %c0_269] : memref<32x128xf32, #tpu.memory_space<vmem>>, vector<32x128xf32>
    %cst_270 = arith.constant dense<0.000000e+00> : vector<32x128xf32>
    %803 = tpu.matmul %801, %802, %cst_270 {dimension_numbers = #tpu.dot_dimension_numbers<[1], [0], [0], [1], [0, 0, 1, 1], [], []>} : vector<32x32xf32>, vector<32x128xf32>, vector<32x128xf32> -> vector<32x128xf32>
    %c0_271 = arith.constant 0 : index
    %c0_272 = arith.constant 0 : index
    %804 = vector.load %arg14[%c0_271, %c0_272] : memref<32x128xf32, #tpu.memory_space<vmem>>, vector<32x128xf32>
    %cst_273 = arith.constant dense<0.000000e+00> : vector<32x128xf32>
    %805 = tpu.matmul %774, %804, %cst_273 {dimension_numbers = #tpu.dot_dimension_numbers<[1], [0], [0], [1], [0, 0, 1, 1], [], []>} : vector<32x32xf32>, vector<32x128xf32>, vector<32x128xf32> -> vector<32x128xf32>
    %806 = arith.addf %803, %805 : vector<32x128xf32>
    %807 = arith.mulf %774, %801 : vector<32x32xf32>
    %c0_274 = arith.constant 0 : index
    %c0_275 = arith.constant 0 : index
    %808 = vector.load %arg15[%c0_274, %c0_275] : memref<32x128xf32, #tpu.memory_space<vmem>>, vector<32x128xf32>
    %cst_276 = arith.constant dense<0.000000e+00> : vector<32x128xf32>
    %809 = tpu.matmul %807, %808, %cst_276 {dimension_numbers = #tpu.dot_dimension_numbers<[1], [0], [0], [1], [0, 0, 1, 1], [], []>} : vector<32x32xf32>, vector<32x128xf32>, vector<32x128xf32> -> vector<32x128xf32>
    %810 = arith.addf %806, %809 : vector<32x128xf32>
    %c0_277 = arith.constant 0 : index
    %c0_278 = arith.constant 0 : index
    %811 = vector.load %arg16[%c0_277, %c0_278] : memref<1x128xf32, #tpu.memory_space<vmem>>, vector<1x128xf32>
    %812 = vector.broadcast %811 : vector<1x128xf32> to vector<32x128xf32>
    %813 = arith.addf %810, %812 : vector<32x128xf32>
    %cst_279 = arith.constant 0.000000e+00 : f32
    %814 = vector.broadcast %cst_279 : f32 to vector<32x128xf32>
    %815 = arith.maximumf %813, %814 : vector<32x128xf32>
    %816 = arith.addf %0, %815 : vector<32x128xf32>
    %c0_280 = arith.constant 0 : index
    %c0_281 = arith.constant 0 : index
    %817 = vector.load %arg17[%c0_280, %c0_281] : memref<32x128xf32, #tpu.memory_space<vmem>>, vector<32x128xf32>
    tpu.vector_store %arg17[%c0_280, %c0_281], %816 {strides = array<i32>} : memref<32x128xf32, #tpu.memory_space<vmem>>, vector<32x128xf32>,
    return
  }
  func.func @transform_0(%arg0: i32) -> (i32, i32) {
    %c0_i32 = arith.constant 0 : i32
    %c0_i32_0 = arith.constant 0 : i32
    %c0_i32_1 = arith.constant 0 : i32
    return %c0_i32, %c0_i32_0 : i32, i32
  }
  func.func @transform_1(%arg0: i32) -> (i32, i32) {
    %c0_i32 = arith.constant 0 : i32
    %c0_i32_0 = arith.constant 0 : i32
    %c0_i32_1 = arith.constant 0 : i32
    return %c0_i32, %c0_i32_0 : i32, i32
  }
  func.func @transform_2(%arg0: i32) -> (i32, i32) {
    %c0_i32 = arith.constant 0 : i32
    %c0_i32_0 = arith.constant 0 : i32
    %c0_i32_1 = arith.constant 0 : i32
    return %c0_i32, %c0_i32_0 : i32, i32
  }
  func.func @transform_3(%arg0: i32) -> (i32, i32) {
    %c0_i32 = arith.constant 0 : i32
    %c0_i32_0 = arith.constant 0 : i32
    %c0_i32_1 = arith.constant 0 : i32
    return %c0_i32, %c0_i32_0 : i32, i32
  }
  func.func @transform_4(%arg0: i32) -> (i32, i32) {
    %c0_i32 = arith.constant 0 : i32
    %c0_i32_0 = arith.constant 0 : i32
    %c0_i32_1 = arith.constant 0 : i32
    return %c0_i32, %c0_i32_0 : i32, i32
  }
  func.func @transform_5(%arg0: i32) -> (i32, i32) {
    %c0_i32 = arith.constant 0 : i32
    %c0_i32_0 = arith.constant 0 : i32
    %c0_i32_1 = arith.constant 0 : i32
    return %c0_i32, %c0_i32_0 : i32, i32
  }
  func.func @transform_6(%arg0: i32) -> (i32, i32) {
    %c0_i32 = arith.constant 0 : i32
    %c0_i32_0 = arith.constant 0 : i32
    %c0_i32_1 = arith.constant 0 : i32
    return %c0_i32, %c0_i32_0 : i32, i32
  }
  func.func @transform_7(%arg0: i32) -> (i32, i32) {
    %c0_i32 = arith.constant 0 : i32
    %c0_i32_0 = arith.constant 0 : i32
    %c0_i32_1 = arith.constant 0 : i32
    return %c0_i32, %c0_i32_0 : i32, i32
  }
  func.func @transform_8(%arg0: i32) -> (i32, i32) {
    %c0_i32 = arith.constant 0 : i32
    %c0_i32_0 = arith.constant 0 : i32
    %c0_i32_1 = arith.constant 0 : i32
    return %c0_i32, %c0_i32_0 : i32, i32
  }
  func.func @transform_9(%arg0: i32) -> (i32, i32) {
    %c0_i32 = arith.constant 0 : i32
    %c0_i32_0 = arith.constant 0 : i32
    %c0_i32_1 = arith.constant 0 : i32
    return %c0_i32, %c0_i32_0 : i32, i32
  }
  func.func @transform_10(%arg0: i32) -> (i32, i32) {
    %c0_i32 = arith.constant 0 : i32
    %c0_i32_0 = arith.constant 0 : i32
    %c0_i32_1 = arith.constant 0 : i32
    return %c0_i32, %c0_i32_0 : i32, i32
  }
  func.func @transform_11(%arg0: i32) -> (i32, i32) {
    %c0_i32 = arith.constant 0 : i32
    %c0_i32_0 = arith.constant 0 : i32
    %c0_i32_1 = arith.constant 0 : i32
    return %c0_i32, %c0_i32_0 : i32, i32
  }
  func.func @transform_12(%arg0: i32) -> (i32, i32) {
    %c0_i32 = arith.constant 0 : i32
    %c0_i32_0 = arith.constant 0 : i32
    %c0_i32_1 = arith.constant 0 : i32
    return %c0_i32, %c0_i32_0 : i32, i32
  }
  func.func @transform_13(%arg0: i32) -> (i32, i32) {
    %c0_i32 = arith.constant 0 : i32
    %c0_i32_0 = arith.constant 0 : i32
    %c0_i32_1 = arith.constant 0 : i32
    return %c0_i32, %c0_i32_0 : i32, i32
  }
  func.func @transform_14(%arg0: i32) -> (i32, i32) {
    %c0_i32 = arith.constant 0 : i32
    %c0_i32_0 = arith.constant 0 : i32
    %c0_i32_1 = arith.constant 0 : i32
    return %c0_i32, %c0_i32_0 : i32, i32
  }
  func.func @transform_15(%arg0: i32) -> (i32, i32) {
    %c0_i32 = arith.constant 0 : i32
    %c0_i32_0 = arith.constant 0 : i32
    %c0_i32_1 = arith.constant 0 : i32
    return %c0_i32, %c0_i32_0 : i32, i32
  }
  func.func @transform_16(%arg0: i32) -> (i32, i32) {
    %c0_i32 = arith.constant 0 : i32
    %c0_i32_0 = arith.constant 0 : i32
    %c0_i32_1 = arith.constant 0 : i32
    return %c0_i32, %c0_i32_0 : i32, i32
  }
}

</mosaic_0001>

<llo_original>
// kernel: mul.12
$region0: #{mul.12}
  %s0 = inlined_call_operand.vmem [shape: f32[16,2], index: 0, kind: input, shape index: {}]
  %s1 = inlined_call_operand.vmem [shape: f32[32], index: 1, kind: output, shape index: {}]
  $region1: #{mul.12} parent=0
    #allocation0 [shape = 'u8[4096]{0}', space=vmem, size = 0x1000, scoped, tag = 'scoped mem for output reshape']
    %v2 = vld [vmem:[%s0] sm:$0x1]
    %vm3 = vcmask 15360
    %4 = vst.msk [vmem:[#allocation0] sm:$0x1] %vm3, %v2
    %s5 = scalar_lea.vmem %s0, 15
    %v6 = vld [vmem:[%s5] sm:$0x1]
    %7 = vrot.lane.b32.xlu0 %v6, 30
    %v8 = vpop.permute.xlu0 %7
    %vm9 = vcmask 261360
    %10 = vst.msk [vmem:[#allocation0] sm:$0x1] %vm9, %v8
    %s11 = scalar_lea.vmem %s0, 14
    %v12 = vld [vmem:[%s11] sm:$0x1]
    %13 = vrot.lane.b32.xlu0 %v12, 28
    %v14 = vpop.permute.xlu0 %13
    %vm15 = vcmask 244960
    %16 = vst.msk [vmem:[#allocation0] sm:$0x1] %vm15, %v14
    %s17 = scalar_lea.vmem %s0, 13
    %v18 = vld [vmem:[%s17] sm:$0x1]
    %19 = vrot.lane.b32.xlu0 %v18, 26
    %v20 = vpop.permute.xlu0 %19
    %vm21 = vcmask 228560
    %22 = vst.msk [vmem:[#allocation0] sm:$0x1] %vm21, %v20
    %s23 = scalar_lea.vmem %s0, 12
    %v24 = vld [vmem:[%s23] sm:$0x1]
    %25 = vrot.lane.b32.xlu0 %v24, 24
    %v26 = vpop.permute.xlu0 %25
    %vm27 = vcmask 212160
    %28 = vst.msk [vmem:[#allocation0] sm:$0x1] %vm27, %v26
    %s29 = scalar_lea.vmem %s0, 11
    %v30 = vld [vmem:[%s29] sm:$0x1]
    %31 = vrot.lane.b32.xlu0 %v30, 22
    %v32 = vpop.permute.xlu0 %31
    %vm33 = vcmask 195760
    %34 = vst.msk [vmem:[#allocation0] sm:$0x1] %vm33, %v32
    %s35 = scalar_lea.vmem %s0, 10
    %v36 = vld [vmem:[%s35] sm:$0x1]
    %37 = vrot.lane.b32.xlu0 %v36, 20
    %v38 = vpop.permute.xlu0 %37
    %vm39 = vcmask 179360
    %40 = vst.msk [vmem:[#allocation0] sm:$0x1] %vm39, %v38
    %s41 = scalar_lea.vmem %s0, 9
    %v42 = vld [vmem:[%s41] sm:$0x1]
    %43 = vrot.lane.b32.xlu0 %v42, 18
    %v44 = vpop.permute.xlu0 %43
    %vm45 = vcmask 162960
    %46 = vst.msk [vmem:[#allocation0] sm:$0x1] %vm45, %v44
    %s47 = scalar_lea.vmem %s0, 8
    %v48 = vld [vmem:[%s47] sm:$0x1]
    %49 = vrot.lane.b32.xlu0 %v48, 16
    %v50 = vpop.permute.xlu0 %49
    %vm51 = vcmask 146560
    %52 = vst.msk [vmem:[#allocation0] sm:$0x1] %vm51, %v50
    %s53 = scalar_lea.vmem %s0, 7
    %v54 = vld [vmem:[%s53] sm:$0x1]
    %55 = vrot.lane.b32.xlu0 %v54, 14
    %v56 = vpop.permute.xlu0 %55
    %vm57 = vcmask 130160
    %58 = vst.msk [vmem:[#allocation0] sm:$0x1] %vm57, %v56
    %s59 = scalar_lea.vmem %s0, 6
    %v60 = vld [vmem:[%s59] sm:$0x1]
    %61 = vrot.lane.b32.xlu0 %v60, 12
    %v62 = vpop.permute.xlu0 %61
    %vm63 = vcmask 113760
    %64 = vst.msk [vmem:[#allocation0] sm:$0x1] %vm63, %v62
    %s65 = scalar_lea.vmem %s0, 5
    %v66 = vld [vmem:[%s65] sm:$0x1]
    %67 = vrot.lane.b32.xlu0 %v66, 10
    %v68 = vpop.permute.xlu0 %67
    %vm69 = vcmask 97360
    %70 = vst.msk [vmem:[#allocation0] sm:$0x1] %vm69, %v68
    %s71 = scalar_lea.vmem %s0, 4
    %v72 = vld [vmem:[%s71] sm:$0x1]
    %73 = vrot.lane.b32.xlu0 %v72, 8
    %v74 = vpop.permute.xlu0 %73
    %vm75 = vcmask 80960
    %76 = vst.msk [vmem:[#allocation0] sm:$0x1] %vm75, %v74
    %s77 = scalar_lea.vmem %s0, 3
    %v78 = vld [vmem:[%s77] sm:$0x1]
    %79 = vrot.lane.b32.xlu0 %v78, 6
    %v80 = vpop.permute.xlu0 %79
    %vm81 = vcmask 64560
    %82 = vst.msk [vmem:[#allocation0] sm:$0x1] %vm81, %v80
    %s83 = scalar_lea.vmem %s0, 2
    %v84 = vld [vmem:[%s83] sm:$0x1]
    %85 = vrot.lane.b32.xlu0 %v84, 4
    %v86 = vpop.permute.xlu0 %85
    %vm87 = vcmask 48160
    %88 = vst.msk [vmem:[#allocation0] sm:$0x1] %vm87, %v86
    %s89 = scalar_lea.vmem %s0, 1
    %v90 = vld [vmem:[%s89] sm:$0x1]
    %91 = vrot.lane.b32.xlu0 %v90, 2
    %v92 = vpop.permute.xlu0 %91
    %vm93 = vcmask 31760
    %94 = vst.msk [vmem:[#allocation0] sm:$0x1] %vm93, %v92
    %s96 = ssub.s32 2, 1
    %v97 = vld [vmem:[#allocation0] sm:%s96]
    %s99 = ssub.s32 2, 1
    %100 = vst [vmem:[%s1] sm:%s99] %v97

// kernel: selfatt_forward.1
$region0: #{selfatt_forward.1}
  #allocation0 [shape = 'u32[]', space=smem, size = 0x4, offset = 0x4, fixed_abs, tag = 'smem constant byte address 0x4 - core index']
  #allocation1 [shape = 'u32[72,128]{1,0:T(1,128)}', space=vmem, size = 0x9000, scoped, tag = 'internal scratch']
  #allocation2 [shape = 'f32[32,96]{1,0:T(8,128)}', space=vmem, size = 0x4000, scoped, tag = 'scratch operand']
  #allocation3 [shape = 'f32[32,16]{1,0:T(8,128)}', space=vmem, size = 0x4000, scoped, tag = 'scratch operand']
  #allocation4 [shape = 'f32[32,16]{1,0:T(8,128)}', space=vmem, size = 0x4000, scoped, tag = 'scratch operand']
  %s0 = inlined_call_operand.vmem [shape: f32[32,128], index: 0, kind: input, shape index: {}, may-alias: {0,16}]
  %s1 = inlined_call_operand.vmem [shape: f32[32,32], index: 1, kind: input, shape index: {}]
  %s2 = inlined_call_operand.vmem [shape: f32[32,32], index: 2, kind: input, shape index: {}]
  %s3 = inlined_call_operand.vmem [shape: f32[128,32], index: 3, kind: input, shape index: {}]
  %s4 = inlined_call_operand.vmem [shape: f32[1,32], index: 4, kind: input, shape index: {}]
  %s5 = inlined_call_operand.vmem [shape: f32[32,96], index: 5, kind: input, shape index: {}]
  %s6 = inlined_call_operand.vmem [shape: f32[1,96], index: 6, kind: input, shape index: {}]
  %s7 = inlined_call_operand.vmem [shape: f32[32,96], index: 7, kind: input, shape index: {}]
  %s8 = inlined_call_operand.vmem [shape: f32[1,96], index: 8, kind: input, shape index: {}]
  %s9 = inlined_call_operand.vmem [shape: f32[32,1], index: 9, kind: input, shape index: {}]
  %s10 = inlined_call_operand.vmem [shape: f32[32,1], index: 10, kind: input, shape index: {}]
  %s11 = inlined_call_operand.vmem [shape: f32[1,32], index: 11, kind: input, shape index: {}]
  %s12 = inlined_call_operand.vmem [shape: f32[32,128], index: 12, kind: input, shape index: {}]
  %s13 = inlined_call_operand.vmem [shape: f32[32,128], index: 13, kind: input, shape index: {}]
  %s14 = inlined_call_operand.vmem [shape: f32[32,128], index: 14, kind: input, shape index: {}]
  %s15 = inlined_call_operand.vmem [shape: f32[1,128], index: 15, kind: input, shape index: {}]
  %s16 = inlined_call_operand.vmem [shape: f32[32,128], index: 16, kind: output, shape index: {}, may-alias: {0,16}]
  %s17 = sld [smem:[#allocation0]]
  $region74: #{selfatt_forward.1} parent=0
    _
  %s19 = ssub.s32 1, %s17
  %s20 = scalar_select 0, %s19, %s17
  // Predicated region
  $region2: #{selfatt_forward.1} parent=0 // pred_check
    _
  $region3: #{selfatt_forward.1} parent=0 // pred_check_branch
    %22 = sbr.rel (0) target = $region5
  $region4: #{selfatt_forward.1} parent=0 // pred_region
    _
  $region5: #{selfatt_forward.1} parent=0 // pred_fallthru
    _
  // Predicated region
  $region6: #{selfatt_forward.1} parent=0 // pred_check
    _
  $region7: #{selfatt_forward.1} parent=0 // pred_check_branch
    %24 = sbr.rel (0) target = $region9
  $region8: #{selfatt_forward.1} parent=0 // pred_region
    _
  $region9: #{selfatt_forward.1} parent=0 // pred_fallthru
    _
  // Predicated region
  $region10: #{selfatt_forward.1} parent=0 // pred_check
    _
  $region11: #{selfatt_forward.1} parent=0 // pred_check_branch
    %26 = sbr.rel (0) target = $region13
  $region12: #{selfatt_forward.1} parent=0 // pred_region
    _
  $region13: #{selfatt_forward.1} parent=0 // pred_fallthru
    _
  // Predicated region
  $region14: #{selfatt_forward.1} parent=0 // pred_check
    _
  $region15: #{selfatt_forward.1} parent=0 // pred_check_branch
    %28 = sbr.rel (0) target = $region17
  $region16: #{selfatt_forward.1} parent=0 // pred_region
    _
  $region17: #{selfatt_forward.1} parent=0 // pred_fallthru
    _
  // Predicated region
  $region18: #{selfatt_forward.1} parent=0 // pred_check
    _
  $region19: #{selfatt_forward.1} parent=0 // pred_check_branch
    %30 = sbr.rel (0) target = $region21
  $region20: #{selfatt_forward.1} parent=0 // pred_region
    _
  $region21: #{selfatt_forward.1} parent=0 // pred_fallthru
    _
  // Predicated region
  $region22: #{selfatt_forward.1} parent=0 // pred_check
    _
  $region23: #{selfatt_forward.1} parent=0 // pred_check_branch
    %32 = sbr.rel (0) target = $region25
  $region24: #{selfatt_forward.1} parent=0 // pred_region
    _
  $region25: #{selfatt_forward.1} parent=0 // pred_fallthru
    _
  // Predicated region
  $region26: #{selfatt_forward.1} parent=0 // pred_check
    _
  $region27: #{selfatt_forward.1} parent=0 // pred_check_branch
    %34 = sbr.rel (0) target = $region29
  $region28: #{selfatt_forward.1} parent=0 // pred_region
    _
  $region29: #{selfatt_forward.1} parent=0 // pred_fallthru
    _
  // Predicated region
  $region30: #{selfatt_forward.1} parent=0 // pred_check
    _
  $region31: #{selfatt_forward.1} parent=0 // pred_check_branch
    %36 = sbr.rel (0) target = $region33
  $region32: #{selfatt_forward.1} parent=0 // pred_region
    _
  $region33: #{selfatt_forward.1} parent=0 // pred_fallthru
    _
  // Predicated region
  $region34: #{selfatt_forward.1} parent=0 // pred_check
    _
  $region35: #{selfatt_forward.1} parent=0 // pred_check_branch
    %38 = sbr.rel (0) target = $region37
  $region36: #{selfatt_forward.1} parent=0 // pred_region
    _
  $region37: #{selfatt_forward.1} parent=0 // pred_fallthru
    _
  // Predicated region
  $region38: #{selfatt_forward.1} parent=0 // pred_check
    _
  $region39: #{selfatt_forward.1} parent=0 // pred_check_branch
    %40 = sbr.rel (0) target = $region41
  $region40: #{selfatt_forward.1} parent=0 // pred_region
    _
  $region41: #{selfatt_forward.1} parent=0 // pred_fallthru
    _
  // Predicated region
  $region42: #{selfatt_forward.1} parent=0 // pred_check
    _
  $region43: #{selfatt_forward.1} parent=0 // pred_check_branch
    %42 = sbr.rel (0) target = $region45
  $region44: #{selfatt_forward.1} parent=0 // pred_region
    _
  $region45: #{selfatt_forward.1} parent=0 // pred_fallthru
    _
  // Predicated region
  $region46: #{selfatt_forward.1} parent=0 // pred_check
    _
  $region47: #{selfatt_forward.1} parent=0 // pred_check_branch
    %44 = sbr.rel (0) target = $region49
  $region48: #{selfatt_forward.1} parent=0 // pred_region
    _
  $region49: #{selfatt_forward.1} parent=0 // pred_fallthru
    _
  // Predicated region
  $region50: #{selfatt_forward.1} parent=0 // pred_check
    _
  $region51: #{selfatt_forward.1} parent=0 // pred_check_branch
    %46 = sbr.rel (0) target = $region53
  $region52: #{selfatt_forward.1} parent=0 // pred_region
    _
  $region53: #{selfatt_forward.1} parent=0 // pred_fallthru
    _
  // Predicated region
  $region54: #{selfatt_forward.1} parent=0 // pred_check
    _
  $region55: #{selfatt_forward.1} parent=0 // pred_check_branch
    %48 = sbr.rel (0) target = $region57
  $region56: #{selfatt_forward.1} parent=0 // pred_region
    _
  $region57: #{selfatt_forward.1} parent=0 // pred_fallthru
    _
  // Predicated region
  $region58: #{selfatt_forward.1} parent=0 // pred_check
    _
  $region59: #{selfatt_forward.1} parent=0 // pred_check_branch
    %50 = sbr.rel (0) target = $region61
  $region60: #{selfatt_forward.1} parent=0 // pred_region
    _
  $region61: #{selfatt_forward.1} parent=0 // pred_fallthru
    _
  // Predicated region
  $region62: #{selfatt_forward.1} parent=0 // pred_check
    _
  $region63: #{selfatt_forward.1} parent=0 // pred_check_branch
    %52 = sbr.rel (0) target = $region65
  $region64: #{selfatt_forward.1} parent=0 // pred_region
    _
  $region65: #{selfatt_forward.1} parent=0 // pred_fallthru
    _
  %v53 = vld [vmem:[%s0] sm:$0xff]
  %v54 = vld [vmem:[%s0 + $0x8] sm:$0xff]
  %v55 = vld [vmem:[%s0 + $0x10] sm:$0xff]
  %v56 = vld [vmem:[%s0 + $0x18] sm:$0xff]
  %v57 = vld [vmem:[%s3] sm:$0xff]
  %v58 = vld [vmem:[%s3 + $0x8] sm:$0xff]
  %v59 = vld [vmem:[%s3 + $0x10] sm:$0xff]
  %v60 = vld [vmem:[%s3 + $0x18] sm:$0xff]
  %v61 = vld [vmem:[%s3 + $0x20] sm:$0xff]
  %v62 = vld [vmem:[%s3 + $0x28] sm:$0xff]
  %v63 = vld [vmem:[%s3 + $0x30] sm:$0xff]
  %v64 = vld [vmem:[%s3 + $0x38] sm:$0xff]
  %v65 = vld [vmem:[%s3 + $0x40] sm:$0xff]
  %v66 = vld [vmem:[%s3 + $0x48] sm:$0xff]
  %v67 = vld [vmem:[%s3 + $0x50] sm:$0xff]
  %v68 = vld [vmem:[%s3 + $0x58] sm:$0xff]
  %v69 = vld [vmem:[%s3 + $0x60] sm:$0xff]
  %v70 = vld [vmem:[%s3 + $0x68] sm:$0xff]
  %v71 = vld [vmem:[%s3 + $0x70] sm:$0xff]
  %v72 = vld [vmem:[%s3 + $0x78] sm:$0xff]
  %v73 = vld [vmem:[%s4] sm:$0x1]
  %v75 = vperm.slane %v73, 0
  %77 = vmatpush.msra.mxu0 %v72
  %78 = vmatpush.msra.mxu0 %v71
  %79 = vmatpush.msra.mxu0 %v70
  %80 = vmatpush.msra.mxu0 %v69
  %81 = vmatpush.msra.mxu0 %v68
  %82 = vmatpush.msra.mxu0 %v67
  %83 = vmatpush.msra.mxu0 %v66
  %84 = vmatpush.msra.mxu0 %v65
  %85 = vmatpush.msra.mxu0 %v64
  %86 = vmatpush.msra.mxu0 %v63
  %87 = vmatpush.msra.mxu0 %v62
  %88 = vmatpush.msra.mxu0 %v61
  %89 = vmatpush.msra.mxu0 %v60
  %90 = vmatpush.msra.mxu0 %v59
  %91 = vmatpush.msra.mxu0 %v58
  %92 = vmatpush.msra.mxu0 %v57
  %93 = vmatmul.f32.gmra.mxu0 %v53
  %v94 = vpop.f32.mrf.mxu0
  %v95 = vadd.f32 %v75, %v94
  %96 = vmatmul.f32.gmra.mxu0 %v54
  %v97 = vpop.f32.mrf.mxu0
  %v98 = vadd.f32 %v75, %v97
  %99 = vmatmul.f32.gmra.mxu0 %v55
  %v100 = vpop.f32.mrf.mxu0
  %v101 = vadd.f32 %v75, %v100
  %102 = vmatmul.f32.gmra.mxu0 %v56
  %v103 = vpop.f32.mrf.mxu0
  %v104 = vadd.f32 %v75, %v103
  %105 = vdwg.mxu0
  %v106 = vmax.f32 %v95, 0.0
  %v107 = vmax.f32 %v98, 0.0
  %v108 = vmax.f32 %v101, 0.0
  %v109 = vmax.f32 %v104, 0.0
  %v110 = vld [vmem:[%s5] sm:$0xff]
  %v111 = vld [vmem:[%s5 + $0x8] sm:$0xff]
  %v112 = vld [vmem:[%s5 + $0x10] sm:$0xff]
  %v113 = vld [vmem:[%s5 + $0x18] sm:$0xff]
  %v114 = vld [vmem:[%s6] sm:$0x1]
  %v116 = vperm.slane %v114, 0
  %vm118 = vcmask 261120
  %v120 = vsel %vm118, %v106, 0
  %v123 = vsel %vm118, %v107, 0
  %v126 = vsel %vm118, %v108, 0
  %v129 = vsel %vm118, %v109, 0
  %131 = vmatpush.msra.mxu0 0.0
  %132 = vmatpush.msra.mxu0 0.0
  %133 = vmatpush.msra.mxu0 0.0
  %134 = vmatpush.msra.mxu0 0.0
  %135 = vmatpush.msra.mxu0 0.0
  %136 = vmatpush.msra.mxu0 0.0
  %137 = vmatpush.msra.mxu0 0.0
  %138 = vmatpush.msra.mxu0 0.0
  %139 = vmatpush.msra.mxu0 0.0
  %140 = vmatpush.msra.mxu0 0.0
  %141 = vmatpush.msra.mxu0 0.0
  %142 = vmatpush.msra.mxu0 0.0
  %143 = vmatpush.msra.mxu0 %v113
  %144 = vmatpush.msra.mxu0 %v112
  %145 = vmatpush.msra.mxu0 %v111
  %146 = vmatpush.msra.mxu0 %v110
  %147 = vmatmul.f32.gmra.mxu0 %v120
  %v148 = vpop.f32.mrf.mxu0
  %v149 = vadd.f32 %v116, %v148
  %150 = vmatmul.f32.gmra.mxu0 %v123
  %v151 = vpop.f32.mrf.mxu0
  %v152 = vadd.f32 %v116, %v151
  %153 = vmatmul.f32.gmra.mxu0 %v126
  %v154 = vpop.f32.mrf.mxu0
  %v155 = vadd.f32 %v116, %v154
  %156 = vmatmul.f32.gmra.mxu0 %v129
  %v157 = vpop.f32.mrf.mxu0
  %v158 = vadd.f32 %v116, %v157
  %159 = vdwg.mxu0
  %vm160 = vcmask 785408
  %161 = vst.msk [vmem:[#allocation2] sm:$0xff] %vm160, %v149
  %162 = vst.msk [vmem:[#allocation2 + $0x8] sm:$0xff] %vm160, %v152
  %163 = vst.msk [vmem:[#allocation2 + $0x10] sm:$0xff] %vm160, %v155
  %164 = vst.msk [vmem:[#allocation2 + $0x18] sm:$0xff] %vm160, %v158
  %v165 = vld [vmem:[%s7] sm:$0xff]
  %v166 = vld [vmem:[%s7 + $0x8] sm:$0xff]
  %v167 = vld [vmem:[%s7 + $0x10] sm:$0xff]
  %v168 = vld [vmem:[%s7 + $0x18] sm:$0xff]
  %v169 = vld [vmem:[%s8] sm:$0x1]
  %v170 = vlaneseq
  %v171 = vand.u32 %v170, 127
  %vm172 = vcmp.lt.s32.totalorder %v171, 0
  %v173 = vsub.s32 0, %v171
  %v174 = vsel %vm172, %v173, %v171
  %v175 = vshrl.u32 %v174, 5
  %v176 = vand.u32 %v174, 31
  %v177 = vsub.s32 0, %v176
  %v178 = vsel %vm172, %v177, %v176
  %vm179 = vcmp.ne.s32.totalorder %v178, 0
  %vm180 = vcmp.lt.s32.totalorder %v178, 0
  %vm181 = vmand %vm180, %vm179
  %v182 = vadd.s32 %v178, 32
  %v183 = vsel %vm181, %v182, %v178
  %vm184 = vcmp.lt.s32.totalorder %v183, 16
  %v185 = vld [vmem:[#allocation2] sm:$0x3]
  %v186 = vld [vmem:[#allocation2 + $0x1e] sm:$0x3]
  %v187 = vsel %vm184, %v185, %v186
  %v189 = vperm.slane %v169, 0
  %v192 = vsel %vm118, 0.0, 0
  %194 = vmatpush.msra.mxu0 0.0
  %195 = vmatpush.msra.mxu0 0.0
  %196 = vmatpush.msra.mxu0 0.0
  %197 = vmatpush.msra.mxu0 0.0
  %198 = vmatpush.msra.mxu0 0.0
  %199 = vmatpush.msra.mxu0 0.0
  %200 = vmatpush.msra.mxu0 0.0
  %201 = vmatpush.msra.mxu0 0.0
  %202 = vmatpush.msra.mxu0 0.0
  %203 = vmatpush.msra.mxu0 0.0
  %204 = vmatpush.msra.mxu0 0.0
  %205 = vmatpush.msra.mxu0 0.0
  %206 = vmatpush.msra.mxu0 %v168
  %207 = vmatpush.msra.mxu0 %v167
  %208 = vmatpush.msra.mxu0 %v166
  %209 = vmatpush.msra.mxu0 %v165
  %210 = vmatmul.f32.gmra.mxu0 %v192
  %v211 = vpop.f32.mrf.mxu0
  %v212 = vadd.f32 %v189, %v211
  %213 = vdwg.mxu0
  %v214 = vadd.f32 %v187, %v212
  %v215 = vxor.u32 %v214, 2147483648
  %v216 = vmul.f32 %v215, 1.442695
  %v217 = vpow.pop %v216
  %v218 = vadd.f32 %v217, 1.0
  %v219 = vrcp.pop %v218
  %v220 = vmul.f32 %v218, %v219
  %v221 = vsub.f32 1.0, %v220
  %v222 = vmul.f32 %v219, %v221
  %v223 = vadd.f32 %v219, %v222
  %vm224 = vweird.f32 %v218
  %vm225 = vweird.f32 %v219
  %vm226 = vmor %vm224, %vm225
  %v227 = vsel %vm226, %v219, %v223
  %v228 = vand.u32 2147483647, %v218
  %vm229 = vcmp.eq.f32.partialorder %v228, 8.507059e+37
  %v230 = vand.u32 %v218, 2147483648
  %v231 = vor.u32 1.1754944e-38, %v230
  %v232 = vsel %vm229, %v231, %v227
  %v233 = vmul.f32 1.0, %v232
  %235 = vrot.lane.b32.xlu0 %v212, 64
  %v236 = vpop.permute.xlu0 %235
  %v238 = vmul.f32 %v233, %v236
  %240 = vrot.lane.b32.xlu0 %v238, 64
  %v241 = vpop.permute.xlu0 %240
  %v243 = vadd.f32 %v187, %v241
  %v244 = vtanh.pop %v243
  %v245 = vsub.f32 1.0, %v233
  %247 = vrot.lane.b32.xlu0 %v244, 96
  %v248 = vpop.permute.xlu0 %247
  %v250 = vmul.f32 %v245, %v248
  %v251 = vmul.f32 %v233, 0.0
  %v252 = vadd.f32 %v250, %v251
  %254 = vrot.lane.b32.xlu0 %v252, 96
  %v255 = vpop.permute.xlu0 %254
  %vm257 = vcmask 123904
  %258 = vst.msk [vmem:[#allocation3] sm:$0x3] %vm257, %v255
  %259 = vrot.lane.b32.xlu0 %v252, 80
  %v260 = vpop.permute.xlu0 %259
  %262 = vst.msk [vmem:[#allocation4 + $0x1e] sm:$0x3] %vm257, %v260
  %v263 = vld [vmem:[#allocation2 + $0x2] sm:$0x3]
  %v264 = vld [vmem:[#allocation2 + $0x1c] sm:$0x3]
  %v265 = vsel %vm184, %v263, %v264
  %v266 = vsel %vm118, %v255, 0
  %268 = vmatpush.msra.mxu0 0.0
  %269 = vmatpush.msra.mxu0 0.0
  %270 = vmatpush.msra.mxu0 0.0
  %271 = vmatpush.msra.mxu0 0.0
  %272 = vmatpush.msra.mxu0 0.0
  %273 = vmatpush.msra.mxu0 0.0
  %274 = vmatpush.msra.mxu0 0.0
  %275 = vmatpush.msra.mxu0 0.0
  %276 = vmatpush.msra.mxu0 0.0
  %277 = vmatpush.msra.mxu0 0.0
  %278 = vmatpush.msra.mxu0 0.0
  %279 = vmatpush.msra.mxu0 0.0
  %280 = vmatpush.msra.mxu0 %v168
  %281 = vmatpush.msra.mxu0 %v167
  %282 = vmatpush.msra.mxu0 %v166
  %283 = vmatpush.msra.mxu0 %v165
  %284 = vmatmul.f32.gmra.mxu0 %v266
  %v285 = vpop.f32.mrf.mxu0
  %v286 = vadd.f32 %v189, %v285
  %287 = vdwg.mxu0
  %v288 = vadd.f32 %v265, %v286
  %v289 = vxor.u32 %v288, 2147483648
  %v290 = vmul.f32 %v289, 1.442695
  %v291 = vpow.pop %v290
  %v292 = vadd.f32 %v291, 1.0
  %v293 = vrcp.pop %v292
  %v294 = vmul.f32 %v292, %v293
  %v295 = vsub.f32 1.0, %v294
  %v296 = vmul.f32 %v293, %v295
  %v297 = vadd.f32 %v293, %v296
  %vm298 = vweird.f32 %v292
  %vm299 = vweird.f32 %v293
  %vm300 = vmor %vm298, %vm299
  %v301 = vsel %vm300, %v293, %v297
  %v302 = vand.u32 2147483647, %v292
  %vm303 = vcmp.eq.f32.partialorder %v302, 8.507059e+37
  %v304 = vand.u32 %v292, 2147483648
  %v305 = vor.u32 1.1754944e-38, %v304
  %v306 = vsel %vm303, %v305, %v301
  %v307 = vmul.f32 1.0, %v306
  %309 = vrot.lane.b32.xlu0 %v286, 64
  %v310 = vpop.permute.xlu0 %309
  %v312 = vmul.f32 %v307, %v310
  %314 = vrot.lane.b32.xlu0 %v312, 64
  %v315 = vpop.permute.xlu0 %314
  %v317 = vadd.f32 %v265, %v315
  %v318 = vtanh.pop %v317
  %v319 = vsub.f32 1.0, %v307
  %321 = vrot.lane.b32.xlu0 %v318, 96
  %v322 = vpop.permute.xlu0 %321
  %v324 = vmul.f32 %v319, %v322
  %v325 = vmul.f32 %v307, %v252
  %v326 = vadd.f32 %v324, %v325
  %328 = vrot.lane.b32.xlu0 %v326, 96
  %v329 = vpop.permute.xlu0 %328
  %331 = vst.msk [vmem:[#allocation3 + $0x2] sm:$0x3] %vm257, %v329
  %332 = vrot.lane.b32.xlu0 %v326, 80
  %v333 = vpop.permute.xlu0 %332
  %335 = vst.msk [vmem:[#allocation4 + $0x1c] sm:$0x3] %vm257, %v333
  %v336 = vld [vmem:[#allocation2 + $0x4] sm:$0x3]
  %v337 = vld [vmem:[#allocation2 + $0x1a] sm:$0x3]
  %v338 = vsel %vm184, %v336, %v337
  %v339 = vsel %vm118, %v329, 0
  %341 = vmatpush.msra.mxu0 0.0
  %342 = vmatpush.msra.mxu0 0.0
  %343 = vmatpush.msra.mxu0 0.0
  %344 = vmatpush.msra.mxu0 0.0
  %345 = vmatpush.msra.mxu0 0.0
  %346 = vmatpush.msra.mxu0 0.0
  %347 = vmatpush.msra.mxu0 0.0
  %348 = vmatpush.msra.mxu0 0.0
  %349 = vmatpush.msra.mxu0 0.0
  %350 = vmatpush.msra.mxu0 0.0
  %351 = vmatpush.msra.mxu0 0.0
  %352 = vmatpush.msra.mxu0 0.0
  %353 = vmatpush.msra.mxu0 %v168
  %354 = vmatpush.msra.mxu0 %v167
  %355 = vmatpush.msra.mxu0 %v166
  %356 = vmatpush.msra.mxu0 %v165
  %357 = vmatmul.f32.gmra.mxu0 %v339
  %v358 = vpop.f32.mrf.mxu0
  %v359 = vadd.f32 %v189, %v358
  %360 = vdwg.mxu0
  %v361 = vadd.f32 %v338, %v359
  %v362 = vxor.u32 %v361, 2147483648
  %v363 = vmul.f32 %v362, 1.442695
  %v364 = vpow.pop %v363
  %v365 = vadd.f32 %v364, 1.0
  %v366 = vrcp.pop %v365
  %v367 = vmul.f32 %v365, %v366
  %v368 = vsub.f32 1.0, %v367
  %v369 = vmul.f32 %v366, %v368
  %v370 = vadd.f32 %v366, %v369
  %vm371 = vweird.f32 %v365
  %vm372 = vweird.f32 %v366
  %vm373 = vmor %vm371, %vm372
  %v374 = vsel %vm373, %v366, %v370
  %v375 = vand.u32 2147483647, %v365
  %vm376 = vcmp.eq.f32.partialorder %v375, 8.507059e+37
  %v377 = vand.u32 %v365, 2147483648
  %v378 = vor.u32 1.1754944e-38, %v377
  %v379 = vsel %vm376, %v378, %v374
  %v380 = vmul.f32 1.0, %v379
  %382 = vrot.lane.b32.xlu0 %v359, 64
  %v383 = vpop.permute.xlu0 %382
  %v385 = vmul.f32 %v380, %v383
  %387 = vrot.lane.b32.xlu0 %v385, 64
  %v388 = vpop.permute.xlu0 %387
  %v390 = vadd.f32 %v338, %v388
  %v391 = vtanh.pop %v390
  %v392 = vsub.f32 1.0, %v380
  %394 = vrot.lane.b32.xlu0 %v391, 96
  %v395 = vpop.permute.xlu0 %394
  %v397 = vmul.f32 %v392, %v395
  %v398 = vmul.f32 %v380, %v326
  %v399 = vadd.f32 %v397, %v398
  %401 = vrot.lane.b32.xlu0 %v399, 96
  %v402 = vpop.permute.xlu0 %401
  %404 = vst.msk [vmem:[#allocation3 + $0x4] sm:$0x3] %vm257, %v402
  %405 = vrot.lane.b32.xlu0 %v399, 80
  %v406 = vpop.permute.xlu0 %405
  %408 = vst.msk [vmem:[#allocation4 + $0x1a] sm:$0x3] %vm257, %v406
  %v409 = vld [vmem:[#allocation2 + $0x6] sm:$0x3]
  %v410 = vld [vmem:[#allocation2 + $0x18] sm:$0x3]
  %v411 = vsel %vm184, %v409, %v410
  %v412 = vsel %vm118, %v402, 0
  %414 = vmatpush.msra.mxu0 0.0
  %415 = vmatpush.msra.mxu0 0.0
  %416 = vmatpush.msra.mxu0 0.0
  %417 = vmatpush.msra.mxu0 0.0
  %418 = vmatpush.msra.mxu0 0.0
  %419 = vmatpush.msra.mxu0 0.0
  %420 = vmatpush.msra.mxu0 0.0
  %421 = vmatpush.msra.mxu0 0.0
  %422 = vmatpush.msra.mxu0 0.0
  %423 = vmatpush.msra.mxu0 0.0
  %424 = vmatpush.msra.mxu0 0.0
  %425 = vmatpush.msra.mxu0 0.0
  %426 = vmatpush.msra.mxu0 %v168
  %427 = vmatpush.msra.mxu0 %v167
  %428 = vmatpush.msra.mxu0 %v166
  %429 = vmatpush.msra.mxu0 %v165
  %430 = vmatmul.f32.gmra.mxu0 %v412
  %v431 = vpop.f32.mrf.mxu0
  %v432 = vadd.f32 %v189, %v431
  %433 = vdwg.mxu0
  %v434 = vadd.f32 %v411, %v432
  %v435 = vxor.u32 %v434, 2147483648
  %v436 = vmul.f32 %v435, 1.442695
  %v437 = vpow.pop %v436
  %v438 = vadd.f32 %v437, 1.0
  %v439 = vrcp.pop %v438
  %v440 = vmul.f32 %v438, %v439
  %v441 = vsub.f32 1.0, %v440
  %v442 = vmul.f32 %v439, %v441
  %v443 = vadd.f32 %v439, %v442
  %vm444 = vweird.f32 %v438
  %vm445 = vweird.f32 %v439
  %vm446 = vmor %vm444, %vm445
  %v447 = vsel %vm446, %v439, %v443
  %v448 = vand.u32 2147483647, %v438
  %vm449 = vcmp.eq.f32.partialorder %v448, 8.507059e+37
  %v450 = vand.u32 %v438, 2147483648
  %v451 = vor.u32 1.1754944e-38, %v450
  %v452 = vsel %vm449, %v451, %v447
  %v453 = vmul.f32 1.0, %v452
  %455 = vrot.lane.b32.xlu0 %v432, 64
  %v456 = vpop.permute.xlu0 %455
  %v458 = vmul.f32 %v453, %v456
  %460 = vrot.lane.b32.xlu0 %v458, 64
  %v461 = vpop.permute.xlu0 %460
  %v463 = vadd.f32 %v411, %v461
  %v464 = vtanh.pop %v463
  %v465 = vsub.f32 1.0, %v453
  %467 = vrot.lane.b32.xlu0 %v464, 96
  %v468 = vpop.permute.xlu0 %467
  %v470 = vmul.f32 %v465, %v468
  %v471 = vmul.f32 %v453, %v399
  %v472 = vadd.f32 %v470, %v471
  %474 = vrot.lane.b32.xlu0 %v472, 96
  %v475 = vpop.permute.xlu0 %474
  %477 = vst.msk [vmem:[#allocation3 + $0x6] sm:$0x3] %vm257, %v475
  %478 = vrot.lane.b32.xlu0 %v472, 80
  %v479 = vpop.permute.xlu0 %478
  %481 = vst.msk [vmem:[#allocation4 + $0x18] sm:$0x3] %vm257, %v479
  %v482 = vld [vmem:[#allocation2 + $0x8] sm:$0x3]
  %v483 = vld [vmem:[#allocation2 + $0x16] sm:$0x3]
  %v484 = vsel %vm184, %v482, %v483
  %v485 = vsel %vm118, %v475, 0
  %487 = vmatpush.msra.mxu0 0.0
  %488 = vmatpush.msra.mxu0 0.0
  %489 = vmatpush.msra.mxu0 0.0
  %490 = vmatpush.msra.mxu0 0.0
  %491 = vmatpush.msra.mxu0 0.0
  %492 = vmatpush.msra.mxu0 0.0
  %493 = vmatpush.msra.mxu0 0.0
  %494 = vmatpush.msra.mxu0 0.0
  %495 = vmatpush.msra.mxu0 0.0
  %496 = vmatpush.msra.mxu0 0.0
  %497 = vmatpush.msra.mxu0 0.0
  %498 = vmatpush.msra.mxu0 0.0
  %499 = vmatpush.msra.mxu0 %v168
  %500 = vmatpush.msra.mxu0 %v167
  %501 = vmatpush.msra.mxu0 %v166
  %502 = vmatpush.msra.mxu0 %v165
  %503 = vmatmul.f32.gmra.mxu0 %v485
  %v504 = vpop.f32.mrf.mxu0
  %v505 = vadd.f32 %v189, %v504
  %506 = vdwg.mxu0
  %v507 = vadd.f32 %v484, %v505
  %v508 = vxor.u32 %v507, 2147483648
  %v509 = vmul.f32 %v508, 1.442695
  %v510 = vpow.pop %v509
  %v511 = vadd.f32 %v510, 1.0
  %v512 = vrcp.pop %v511
  %v513 = vmul.f32 %v511, %v512
  %v514 = vsub.f32 1.0, %v513
  %v515 = vmul.f32 %v512, %v514
  %v516 = vadd.f32 %v512, %v515
  %vm517 = vweird.f32 %v511
  %vm518 = vweird.f32 %v512
  %vm519 = vmor %vm517, %vm518
  %v520 = vsel %vm519, %v512, %v516
  %v521 = vand.u32 2147483647, %v511
  %vm522 = vcmp.eq.f32.partialorder %v521, 8.507059e+37
  %v523 = vand.u32 %v511, 2147483648
  %v524 = vor.u32 1.1754944e-38, %v523
  %v525 = vsel %vm522, %v524, %v520
  %v526 = vmul.f32 1.0, %v525
  %528 = vrot.lane.b32.xlu0 %v505, 64
  %v529 = vpop.permute.xlu0 %528
  %v531 = vmul.f32 %v526, %v529
  %533 = vrot.lane.b32.xlu0 %v531, 64
  %v534 = vpop.permute.xlu0 %533
  %v536 = vadd.f32 %v484, %v534
  %v537 = vtanh.pop %v536
  %v538 = vsub.f32 1.0, %v526
  %540 = vrot.lane.b32.xlu0 %v537, 96
  %v541 = vpop.permute.xlu0 %540
  %v543 = vmul.f32 %v538, %v541
  %v544 = vmul.f32 %v526, %v472
  %v545 = vadd.f32 %v543, %v544
  %547 = vrot.lane.b32.xlu0 %v545, 96
  %v548 = vpop.permute.xlu0 %547
  %550 = vst.msk [vmem:[#allocation3 + $0x8] sm:$0x3] %vm257, %v548
  %551 = vrot.lane.b32.xlu0 %v545, 80
  %v552 = vpop.permute.xlu0 %551
  %554 = vst.msk [vmem:[#allocation4 + $0x16] sm:$0x3] %vm257, %v552
  %v555 = vld [vmem:[#allocation2 + $0xa] sm:$0x3]
  %v556 = vld [vmem:[#allocation2 + $0x14] sm:$0x3]
  %v557 = vsel %vm184, %v555, %v556
  %v558 = vsel %vm118, %v548, 0
  %560 = vmatpush.msra.mxu0 0.0
  %561 = vmatpush.msra.mxu0 0.0
  %562 = vmatpush.msra.mxu0 0.0
  %563 = vmatpush.msra.mxu0 0.0
  %564 = vmatpush.msra.mxu0 0.0
  %565 = vmatpush.msra.mxu0 0.0
  %566 = vmatpush.msra.mxu0 0.0
  %567 = vmatpush.msra.mxu0 0.0
  %568 = vmatpush.msra.mxu0 0.0
  %569 = vmatpush.msra.mxu0 0.0
  %570 = vmatpush.msra.mxu0 0.0
  %571 = vmatpush.msra.mxu0 0.0
  %572 = vmatpush.msra.mxu0 %v168
  %573 = vmatpush.msra.mxu0 %v167
  %574 = vmatpush.msra.mxu0 %v166
  %575 = vmatpush.msra.mxu0 %v165
  %576 = vmatmul.f32.gmra.mxu0 %v558
  %v577 = vpop.f32.mrf.mxu0
  %v578 = vadd.f32 %v189, %v577
  %579 = vdwg.mxu0
  %v580 = vadd.f32 %v557, %v578
  %v581 = vxor.u32 %v580, 2147483648
  %v582 = vmul.f32 %v581, 1.442695
  %v583 = vpow.pop %v582
  %v584 = vadd.f32 %v583, 1.0
  %v585 = vrcp.pop %v584
  %v586 = vmul.f32 %v584, %v585
  %v587 = vsub.f32 1.0, %v586
  %v588 = vmul.f32 %v585, %v587
  %v589 = vadd.f32 %v585, %v588
  %vm590 = vweird.f32 %v584
  %vm591 = vweird.f32 %v585
  %vm592 = vmor %vm590, %vm591
  %v593 = vsel %vm592, %v585, %v589
  %v594 = vand.u32 2147483647, %v584
  %vm595 = vcmp.eq.f32.partialorder %v594, 8.507059e+37
  %v596 = vand.u32 %v584, 2147483648
  %v597 = vor.u32 1.1754944e-38, %v596
  %v598 = vsel %vm595, %v597, %v593
  %v599 = vmul.f32 1.0, %v598
  %601 = vrot.lane.b32.xlu0 %v578, 64
  %v602 = vpop.permute.xlu0 %601
  %v604 = vmul.f32 %v599, %v602
  %606 = vrot.lane.b32.xlu0 %v604, 64
  %v607 = vpop.permute.xlu0 %606
  %v609 = vadd.f32 %v557, %v607
  %v610 = vtanh.pop %v609
  %v611 = vsub.f32 1.0, %v599
  %613 = vrot.lane.b32.xlu0 %v610, 96
  %v614 = vpop.permute.xlu0 %613
  %v616 = vmul.f32 %v611, %v614
  %v617 = vmul.f32 %v599, %v545
  %v618 = vadd.f32 %v616, %v617
  %620 = vrot.lane.b32.xlu0 %v618, 96
  %v621 = vpop.permute.xlu0 %620
  %623 = vst.msk [vmem:[#allocation3 + $0xa] sm:$0x3] %vm257, %v621
  %624 = vrot.lane.b32.xlu0 %v618, 80
  %v625 = vpop.permute.xlu0 %624
  %627 = vst.msk [vmem:[#allocation4 + $0x14] sm:$0x3] %vm257, %v625
  %v628 = vld [vmem:[#allocation2 + $0xc] sm:$0x3]
  %v629 = vld [vmem:[#allocation2 + $0x12] sm:$0x3]
  %v630 = vsel %vm184, %v628, %v629
  %v631 = vsel %vm118, %v621, 0
  %633 = vmatpush.msra.mxu0 0.0
  %634 = vmatpush.msra.mxu0 0.0
  %635 = vmatpush.msra.mxu0 0.0
  %636 = vmatpush.msra.mxu0 0.0
  %637 = vmatpush.msra.mxu0 0.0
  %638 = vmatpush.msra.mxu0 0.0
  %639 = vmatpush.msra.mxu0 0.0
  %640 = vmatpush.msra.mxu0 0.0
  %641 = vmatpush.msra.mxu0 0.0
  %642 = vmatpush.msra.mxu0 0.0
  %643 = vmatpush.msra.mxu0 0.0
  %644 = vmatpush.msra.mxu0 0.0
  %645 = vmatpush.msra.mxu0 %v168
  %646 = vmatpush.msra.mxu0 %v167
  %647 = vmatpush.msra.mxu0 %v166
  %648 = vmatpush.msra.mxu0 %v165
  %649 = vmatmul.f32.gmra.mxu0 %v631
  %v650 = vpop.f32.mrf.mxu0
  %v651 = vadd.f32 %v189, %v650
  %652 = vdwg.mxu0
  %v653 = vadd.f32 %v630, %v651
  %v654 = vxor.u32 %v653, 2147483648
  %v655 = vmul.f32 %v654, 1.442695
  %v656 = vpow.pop %v655
  %v657 = vadd.f32 %v656, 1.0
  %v658 = vrcp.pop %v657
  %v659 = vmul.f32 %v657, %v658
  %v660 = vsub.f32 1.0, %v659
  %v661 = vmul.f32 %v658, %v660
  %v662 = vadd.f32 %v658, %v661
  %vm663 = vweird.f32 %v657
  %vm664 = vweird.f32 %v658
  %vm665 = vmor %vm663, %vm664
  %v666 = vsel %vm665, %v658, %v662
  %v667 = vand.u32 2147483647, %v657
  %vm668 = vcmp.eq.f32.partialorder %v667, 8.507059e+37
  %v669 = vand.u32 %v657, 2147483648
  %v670 = vor.u32 1.1754944e-38, %v669
  %v671 = vsel %vm668, %v670, %v666
  %v672 = vmul.f32 1.0, %v671
  %674 = vrot.lane.b32.xlu0 %v651, 64
  %v675 = vpop.permute.xlu0 %674
  %v677 = vmul.f32 %v672, %v675
  %679 = vrot.lane.b32.xlu0 %v677, 64
  %v680 = vpop.permute.xlu0 %679
  %v682 = vadd.f32 %v630, %v680
  %v683 = vtanh.pop %v682
  %v684 = vsub.f32 1.0, %v672
  %686 = vrot.lane.b32.xlu0 %v683, 96
  %v687 = vpop.permute.xlu0 %686
  %v689 = vmul.f32 %v684, %v687
  %v690 = vmul.f32 %v672, %v618
  %v691 = vadd.f32 %v689, %v690
  %693 = vrot.lane.b32.xlu0 %v691, 96
  %v694 = vpop.permute.xlu0 %693
  %696 = vst.msk [vmem:[#allocation3 + $0xc] sm:$0x3] %vm257, %v694
  %697 = vrot.lane.b32.xlu0 %v691, 80
  %v698 = vpop.permute.xlu0 %697
  %700 = vst.msk [vmem:[#allocation4 + $0x12] sm:$0x3] %vm257, %v698
  %v701 = vld [vmem:[#allocation2 + $0xe] sm:$0x3]
  %v702 = vld [vmem:[#allocation2 + $0x10] sm:$0x3]
  %v703 = vsel %vm184, %v701, %v702
  %v704 = vsel %vm118, %v694, 0
  %706 = vmatpush.msra.mxu0 0.0
  %707 = vmatpush.msra.mxu0 0.0
  %708 = vmatpush.msra.mxu0 0.0
  %709 = vmatpush.msra.mxu0 0.0
  %710 = vmatpush.msra.mxu0 0.0
  %711 = vmatpush.msra.mxu0 0.0
  %712 = vmatpush.msra.mxu0 0.0
  %713 = vmatpush.msra.mxu0 0.0
  %714 = vmatpush.msra.mxu0 0.0
  %715 = vmatpush.msra.mxu0 0.0
  %716 = vmatpush.msra.mxu0 0.0
  %717 = vmatpush.msra.mxu0 0.0
  %718 = vmatpush.msra.mxu0 %v168
  %719 = vmatpush.msra.mxu0 %v167
  %720 = vmatpush.msra.mxu0 %v166
  %721 = vmatpush.msra.mxu0 %v165
  %722 = vmatmul.f32.gmra.mxu0 %v704
  %v723 = vpop.f32.mrf.mxu0
  %v724 = vadd.f32 %v189, %v723
  %725 = vdwg.mxu0
  %v726 = vadd.f32 %v703, %v724
  %v727 = vxor.u32 %v726, 2147483648
  %v728 = vmul.f32 %v727, 1.442695
  %v729 = vpow.pop %v728
  %v730 = vadd.f32 %v729, 1.0
  %v731 = vrcp.pop %v730
  %v732 = vmul.f32 %v730, %v731
  %v733 = vsub.f32 1.0, %v732
  %v734 = vmul.f32 %v731, %v733
  %v735 = vadd.f32 %v731, %v734
  %vm736 = vweird.f32 %v730
  %vm737 = vweird.f32 %v731
  %vm738 = vmor %vm736, %vm737
  %v739 = vsel %vm738, %v731, %v735
  %v740 = vand.u32 2147483647, %v730
  %vm741 = vcmp.eq.f32.partialorder %v740, 8.507059e+37
  %v742 = vand.u32 %v730, 2147483648
  %v743 = vor.u32 1.1754944e-38, %v742
  %v744 = vsel %vm741, %v743, %v739
  %v745 = vmul.f32 1.0, %v744
  %747 = vrot.lane.b32.xlu0 %v724, 64
  %v748 = vpop.permute.xlu0 %747
  %v750 = vmul.f32 %v745, %v748
  %752 = vrot.lane.b32.xlu0 %v750, 64
  %v753 = vpop.permute.xlu0 %752
  %v755 = vadd.f32 %v703, %v753
  %v756 = vtanh.pop %v755
  %v757 = vsub.f32 1.0, %v745
  %759 = vrot.lane.b32.xlu0 %v756, 96
  %v760 = vpop.permute.xlu0 %759
  %v762 = vmul.f32 %v757, %v760
  %v763 = vmul.f32 %v745, %v691
  %v764 = vadd.f32 %v762, %v763
  %766 = vrot.lane.b32.xlu0 %v764, 96
  %v767 = vpop.permute.xlu0 %766
  %769 = vst.msk [vmem:[#allocation3 + $0xe] sm:$0x3] %vm257, %v767
  %770 = vrot.lane.b32.xlu0 %v764, 80
  %v771 = vpop.permute.xlu0 %770
  %773 = vst.msk [vmem:[#allocation4 + $0x10] sm:$0x3] %vm257, %v771
  %v774 = vld [vmem:[#allocation2 + $0x10] sm:$0x3]
  %v775 = vld [vmem:[#allocation2 + $0xe] sm:$0x3]
  %v776 = vsel %vm184, %v774, %v775
  %v777 = vsel %vm118, %v767, 0
  %779 = vmatpush.msra.mxu0 0.0
  %780 = vmatpush.msra.mxu0 0.0
  %781 = vmatpush.msra.mxu0 0.0
  %782 = vmatpush.msra.mxu0 0.0
  %783 = vmatpush.msra.mxu0 0.0
  %784 = vmatpush.msra.mxu0 0.0
  %785 = vmatpush.msra.mxu0 0.0
  %786 = vmatpush.msra.mxu0 0.0
  %787 = vmatpush.msra.mxu0 0.0
  %788 = vmatpush.msra.mxu0 0.0
  %789 = vmatpush.msra.mxu0 0.0
  %790 = vmatpush.msra.mxu0 0.0
  %791 = vmatpush.msra.mxu0 %v168
  %792 = vmatpush.msra.mxu0 %v167
  %793 = vmatpush.msra.mxu0 %v166
  %794 = vmatpush.msra.mxu0 %v165
  %795 = vmatmul.f32.gmra.mxu0 %v777
  %v796 = vpop.f32.mrf.mxu0
  %v797 = vadd.f32 %v189, %v796
  %798 = vdwg.mxu0
  %v799 = vadd.f32 %v776, %v797
  %v800 = vxor.u32 %v799, 2147483648
  %v801 = vmul.f32 %v800, 1.442695
  %v802 = vpow.pop %v801
  %v803 = vadd.f32 %v802, 1.0
  %v804 = vrcp.pop %v803
  %v805 = vmul.f32 %v803, %v804
  %v806 = vsub.f32 1.0, %v805
  %v807 = vmul.f32 %v804, %v806
  %v808 = vadd.f32 %v804, %v807
  %vm809 = vweird.f32 %v803
  %vm810 = vweird.f32 %v804
  %vm811 = vmor %vm809, %vm810
  %v812 = vsel %vm811, %v804, %v808
  %v813 = vand.u32 2147483647, %v803
  %vm814 = vcmp.eq.f32.partialorder %v813, 8.507059e+37
  %v815 = vand.u32 %v803, 2147483648
  %v816 = vor.u32 1.1754944e-38, %v815
  %v817 = vsel %vm814, %v816, %v812
  %v818 = vmul.f32 1.0, %v817
  %820 = vrot.lane.b32.xlu0 %v797, 64
  %v821 = vpop.permute.xlu0 %820
  %v823 = vmul.f32 %v818, %v821
  %825 = vrot.lane.b32.xlu0 %v823, 64
  %v826 = vpop.permute.xlu0 %825
  %v828 = vadd.f32 %v776, %v826
  %v829 = vtanh.pop %v828
  %v830 = vsub.f32 1.0, %v818
  %832 = vrot.lane.b32.xlu0 %v829, 96
  %v833 = vpop.permute.xlu0 %832
  %v835 = vmul.f32 %v830, %v833
  %v836 = vmul.f32 %v818, %v764
  %v837 = vadd.f32 %v835, %v836
  %839 = vrot.lane.b32.xlu0 %v837, 96
  %v840 = vpop.permute.xlu0 %839
  %842 = vst.msk [vmem:[#allocation3 + $0x10] sm:$0x3] %vm257, %v840
  %843 = vrot.lane.b32.xlu0 %v837, 80
  %v844 = vpop.permute.xlu0 %843
  %846 = vst.msk [vmem:[#allocation4 + $0xe] sm:$0x3] %vm257, %v844
  %v847 = vld [vmem:[#allocation2 + $0x12] sm:$0x3]
  %v848 = vld [vmem:[#allocation2 + $0xc] sm:$0x3]
  %v849 = vsel %vm184, %v847, %v848
  %v850 = vsel %vm118, %v840, 0
  %852 = vmatpush.msra.mxu0 0.0
  %853 = vmatpush.msra.mxu0 0.0
  %854 = vmatpush.msra.mxu0 0.0
  %855 = vmatpush.msra.mxu0 0.0
  %856 = vmatpush.msra.mxu0 0.0
  %857 = vmatpush.msra.mxu0 0.0
  %858 = vmatpush.msra.mxu0 0.0
  %859 = vmatpush.msra.mxu0 0.0
  %860 = vmatpush.msra.mxu0 0.0
  %861 = vmatpush.msra.mxu0 0.0
  %862 = vmatpush.msra.mxu0 0.0
  %863 = vmatpush.msra.mxu0 0.0
  %864 = vmatpush.msra.mxu0 %v168
  %865 = vmatpush.msra.mxu0 %v167
  %866 = vmatpush.msra.mxu0 %v166
  %867 = vmatpush.msra.mxu0 %v165
  %868 = vmatmul.f32.gmra.mxu0 %v850
  %v869 = vpop.f32.mrf.mxu0
  %v870 = vadd.f32 %v189, %v869
  %871 = vdwg.mxu0
  %v872 = vadd.f32 %v849, %v870
  %v873 = vxor.u32 %v872, 2147483648
  %v874 = vmul.f32 %v873, 1.442695
  %v875 = vpow.pop %v874
  %v876 = vadd.f32 %v875, 1.0
  %v877 = vrcp.pop %v876
  %v878 = vmul.f32 %v876, %v877
  %v879 = vsub.f32 1.0, %v878
  %v880 = vmul.f32 %v877, %v879
  %v881 = vadd.f32 %v877, %v880
  %vm882 = vweird.f32 %v876
  %vm883 = vweird.f32 %v877
  %vm884 = vmor %vm882, %vm883
  %v885 = vsel %vm884, %v877, %v881
  %v886 = vand.u32 2147483647, %v876
  %vm887 = vcmp.eq.f32.partialorder %v886, 8.507059e+37
  %v888 = vand.u32 %v876, 2147483648
  %v889 = vor.u32 1.1754944e-38, %v888
  %v890 = vsel %vm887, %v889, %v885
  %v891 = vmul.f32 1.0, %v890
  %893 = vrot.lane.b32.xlu0 %v870, 64
  %v894 = vpop.permute.xlu0 %893
  %v896 = vmul.f32 %v891, %v894
  %898 = vrot.lane.b32.xlu0 %v896, 64
  %v899 = vpop.permute.xlu0 %898
  %v901 = vadd.f32 %v849, %v899
  %v902 = vtanh.pop %v901
  %v903 = vsub.f32 1.0, %v891
  %905 = vrot.lane.b32.xlu0 %v902, 96
  %v906 = vpop.permute.xlu0 %905
  %v908 = vmul.f32 %v903, %v906
  %v909 = vmul.f32 %v891, %v837
  %v910 = vadd.f32 %v908, %v909
  %912 = vrot.lane.b32.xlu0 %v910, 96
  %v913 = vpop.permute.xlu0 %912
  %915 = vst.msk [vmem:[#allocation3 + $0x12] sm:$0x3] %vm257, %v913
  %916 = vrot.lane.b32.xlu0 %v910, 80
  %v917 = vpop.permute.xlu0 %916
  %919 = vst.msk [vmem:[#allocation4 + $0xc] sm:$0x3] %vm257, %v917
  %v920 = vld [vmem:[#allocation2 + $0x14] sm:$0x3]
  %v921 = vld [vmem:[#allocation2 + $0xa] sm:$0x3]
  %v922 = vsel %vm184, %v920, %v921
  %v923 = vsel %vm118, %v913, 0
  %925 = vmatpush.msra.mxu0 0.0
  %926 = vmatpush.msra.mxu0 0.0
  %927 = vmatpush.msra.mxu0 0.0
  %928 = vmatpush.msra.mxu0 0.0
  %929 = vmatpush.msra.mxu0 0.0
  %930 = vmatpush.msra.mxu0 0.0
  %931 = vmatpush.msra.mxu0 0.0
  %932 = vmatpush.msra.mxu0 0.0
  %933 = vmatpush.msra.mxu0 0.0
  %934 = vmatpush.msra.mxu0 0.0
  %935 = vmatpush.msra.mxu0 0.0
  %936 = vmatpush.msra.mxu0 0.0
  %937 = vmatpush.msra.mxu0 %v168
  %938 = vmatpush.msra.mxu0 %v167
  %939 = vmatpush.msra.mxu0 %v166
  %940 = vmatpush.msra.mxu0 %v165
  %941 = vmatmul.f32.gmra.mxu0 %v923
  %v942 = vpop.f32.mrf.mxu0
  %v943 = vadd.f32 %v189, %v942
  %944 = vdwg.mxu0
  %v945 = vadd.f32 %v922, %v943
  %v946 = vxor.u32 %v945, 2147483648
  %v947 = vmul.f32 %v946, 1.442695
  %v948 = vpow.pop %v947
  %v949 = vadd.f32 %v948, 1.0
  %v950 = vrcp.pop %v949
  %v951 = vmul.f32 %v949, %v950
  %v952 = vsub.f32 1.0, %v951
  %v953 = vmul.f32 %v950, %v952
  %v954 = vadd.f32 %v950, %v953
  %vm955 = vweird.f32 %v949
  %vm956 = vweird.f32 %v950
  %vm957 = vmor %vm955, %vm956
  %v958 = vsel %vm957, %v950, %v954
  %v959 = vand.u32 2147483647, %v949
  %vm960 = vcmp.eq.f32.partialorder %v959, 8.507059e+37
  %v961 = vand.u32 %v949, 2147483648
  %v962 = vor.u32 1.1754944e-38, %v961
  %v963 = vsel %vm960, %v962, %v958
  %v964 = vmul.f32 1.0, %v963
  %966 = vrot.lane.b32.xlu0 %v943, 64
  %v967 = vpop.permute.xlu0 %966
  %v969 = vmul.f32 %v964, %v967
  %971 = vrot.lane.b32.xlu0 %v969, 64
  %v972 = vpop.permute.xlu0 %971
  %v974 = vadd.f32 %v922, %v972
  %v975 = vtanh.pop %v974
  %v976 = vsub.f32 1.0, %v964
  %978 = vrot.lane.b32.xlu0 %v975, 96
  %v979 = vpop.permute.xlu0 %978
  %v981 = vmul.f32 %v976, %v979
  %v982 = vmul.f32 %v964, %v910
  %v983 = vadd.f32 %v981, %v982
  %985 = vrot.lane.b32.xlu0 %v983, 96
  %v986 = vpop.permute.xlu0 %985
  %988 = vst.msk [vmem:[#allocation3 + $0x14] sm:$0x3] %vm257, %v986
  %989 = vrot.lane.b32.xlu0 %v983, 80
  %v990 = vpop.permute.xlu0 %989
  %992 = vst.msk [vmem:[#allocation4 + $0xa] sm:$0x3] %vm257, %v990
  %v993 = vld [vmem:[#allocation2 + $0x16] sm:$0x3]
  %v994 = vld [vmem:[#allocation2 + $0x8] sm:$0x3]
  %v995 = vsel %vm184, %v993, %v994
  %v996 = vsel %vm118, %v986, 0
  %998 = vmatpush.msra.mxu0 0.0
  %999 = vmatpush.msra.mxu0 0.0
  %1000 = vmatpush.msra.mxu0 0.0
  %1001 = vmatpush.msra.mxu0 0.0
  %1002 = vmatpush.msra.mxu0 0.0
  %1003 = vmatpush.msra.mxu0 0.0
  %1004 = vmatpush.msra.mxu0 0.0
  %1005 = vmatpush.msra.mxu0 0.0
  %1006 = vmatpush.msra.mxu0 0.0
  %1007 = vmatpush.msra.mxu0 0.0
  %1008 = vmatpush.msra.mxu0 0.0
  %1009 = vmatpush.msra.mxu0 0.0
  %1010 = vmatpush.msra.mxu0 %v168
  %1011 = vmatpush.msra.mxu0 %v167
  %1012 = vmatpush.msra.mxu0 %v166
  %1013 = vmatpush.msra.mxu0 %v165
  %1014 = vmatmul.f32.gmra.mxu0 %v996
  %v1015 = vpop.f32.mrf.mxu0
  %v1016 = vadd.f32 %v189, %v1015
  %1017 = vdwg.mxu0
  %v1018 = vadd.f32 %v995, %v1016
  %v1019 = vxor.u32 %v1018, 2147483648
  %v1020 = vmul.f32 %v1019, 1.442695
  %v1021 = vpow.pop %v1020
  %v1022 = vadd.f32 %v1021, 1.0
  %v1023 = vrcp.pop %v1022
  %v1024 = vmul.f32 %v1022, %v1023
  %v1025 = vsub.f32 1.0, %v1024
  %v1026 = vmul.f32 %v1023, %v1025
  %v1027 = vadd.f32 %v1023, %v1026
  %vm1028 = vweird.f32 %v1022
  %vm1029 = vweird.f32 %v1023
  %vm1030 = vmor %vm1028, %vm1029
  %v1031 = vsel %vm1030, %v1023, %v1027
  %v1032 = vand.u32 2147483647, %v1022
  %vm1033 = vcmp.eq.f32.partialorder %v1032, 8.507059e+37
  %v1034 = vand.u32 %v1022, 2147483648
  %v1035 = vor.u32 1.1754944e-38, %v1034
  %v1036 = vsel %vm1033, %v1035, %v1031
  %v1037 = vmul.f32 1.0, %v1036
  %1039 = vrot.lane.b32.xlu0 %v1016, 64
  %v1040 = vpop.permute.xlu0 %1039
  %v1042 = vmul.f32 %v1037, %v1040
  %1044 = vrot.lane.b32.xlu0 %v1042, 64
  %v1045 = vpop.permute.xlu0 %1044
  %v1047 = vadd.f32 %v995, %v1045
  %v1048 = vtanh.pop %v1047
  %v1049 = vsub.f32 1.0, %v1037
  %1051 = vrot.lane.b32.xlu0 %v1048, 96
  %v1052 = vpop.permute.xlu0 %1051
  %v1054 = vmul.f32 %v1049, %v1052
  %v1055 = vmul.f32 %v1037, %v983
  %v1056 = vadd.f32 %v1054, %v1055
  %1058 = vrot.lane.b32.xlu0 %v1056, 96
  %v1059 = vpop.permute.xlu0 %1058
  %1061 = vst.msk [vmem:[#allocation3 + $0x16] sm:$0x3] %vm257, %v1059
  %1062 = vrot.lane.b32.xlu0 %v1056, 80
  %v1063 = vpop.permute.xlu0 %1062
  %1065 = vst.msk [vmem:[#allocation4 + $0x8] sm:$0x3] %vm257, %v1063
  %v1066 = vld [vmem:[#allocation2 + $0x18] sm:$0x3]
  %v1067 = vld [vmem:[#allocation2 + $0x6] sm:$0x3]
  %v1068 = vsel %vm184, %v1066, %v1067
  %v1069 = vsel %vm118, %v1059, 0
  %1071 = vmatpush.msra.mxu0 0.0
  %1072 = vmatpush.msra.mxu0 0.0
  %1073 = vmatpush.msra.mxu0 0.0
  %1074 = vmatpush.msra.mxu0 0.0
  %1075 = vmatpush.msra.mxu0 0.0
  %1076 = vmatpush.msra.mxu0 0.0
  %1077 = vmatpush.msra.mxu0 0.0
  %1078 = vmatpush.msra.mxu0 0.0
  %1079 = vmatpush.msra.mxu0 0.0
  %1080 = vmatpush.msra.mxu0 0.0
  %1081 = vmatpush.msra.mxu0 0.0
  %1082 = vmatpush.msra.mxu0 0.0
  %1083 = vmatpush.msra.mxu0 %v168
  %1084 = vmatpush.msra.mxu0 %v167
  %1085 = vmatpush.msra.mxu0 %v166
  %1086 = vmatpush.msra.mxu0 %v165
  %1087 = vmatmul.f32.gmra.mxu0 %v1069
  %v1088 = vpop.f32.mrf.mxu0
  %v1089 = vadd.f32 %v189, %v1088
  %1090 = vdwg.mxu0
  %v1091 = vadd.f32 %v1068, %v1089
  %v1092 = vxor.u32 %v1091, 2147483648
  %v1093 = vmul.f32 %v1092, 1.442695
  %v1094 = vpow.pop %v1093
  %v1095 = vadd.f32 %v1094, 1.0
  %v1096 = vrcp.pop %v1095
  %v1097 = vmul.f32 %v1095, %v1096
  %v1098 = vsub.f32 1.0, %v1097
  %v1099 = vmul.f32 %v1096, %v1098
  %v1100 = vadd.f32 %v1096, %v1099
  %vm1101 = vweird.f32 %v1095
  %vm1102 = vweird.f32 %v1096
  %vm1103 = vmor %vm1101, %vm1102
  %v1104 = vsel %vm1103, %v1096, %v1100
  %v1105 = vand.u32 2147483647, %v1095
  %vm1106 = vcmp.eq.f32.partialorder %v1105, 8.507059e+37
  %v1107 = vand.u32 %v1095, 2147483648
  %v1108 = vor.u32 1.1754944e-38, %v1107
  %v1109 = vsel %vm1106, %v1108, %v1104
  %v1110 = vmul.f32 1.0, %v1109
  %1112 = vrot.lane.b32.xlu0 %v1089, 64
  %v1113 = vpop.permute.xlu0 %1112
  %v1115 = vmul.f32 %v1110, %v1113
  %1117 = vrot.lane.b32.xlu0 %v1115, 64
  %v1118 = vpop.permute.xlu0 %1117
  %v1120 = vadd.f32 %v1068, %v1118
  %v1121 = vtanh.pop %v1120
  %v1122 = vsub.f32 1.0, %v1110
  %1124 = vrot.lane.b32.xlu0 %v1121, 96
  %v1125 = vpop.permute.xlu0 %1124
  %v1127 = vmul.f32 %v1122, %v1125
  %v1128 = vmul.f32 %v1110, %v1056
  %v1129 = vadd.f32 %v1127, %v1128
  %1131 = vrot.lane.b32.xlu0 %v1129, 96
  %v1132 = vpop.permute.xlu0 %1131
  %1134 = vst.msk [vmem:[#allocation3 + $0x18] sm:$0x3] %vm257, %v1132
  %1135 = vrot.lane.b32.xlu0 %v1129, 80
  %v1136 = vpop.permute.xlu0 %1135
  %1138 = vst.msk [vmem:[#allocation4 + $0x6] sm:$0x3] %vm257, %v1136
  %v1139 = vld [vmem:[#allocation2 + $0x1a] sm:$0x3]
  %v1140 = vld [vmem:[#allocation2 + $0x4] sm:$0x3]
  %v1141 = vsel %vm184, %v1139, %v1140
  %v1142 = vsel %vm118, %v1132, 0
  %1144 = vmatpush.msra.mxu0 0.0
  %1145 = vmatpush.msra.mxu0 0.0
  %1146 = vmatpush.msra.mxu0 0.0
  %1147 = vmatpush.msra.mxu0 0.0
  %1148 = vmatpush.msra.mxu0 0.0
  %1149 = vmatpush.msra.mxu0 0.0
  %1150 = vmatpush.msra.mxu0 0.0
  %1151 = vmatpush.msra.mxu0 0.0
  %1152 = vmatpush.msra.mxu0 0.0
  %1153 = vmatpush.msra.mxu0 0.0
  %1154 = vmatpush.msra.mxu0 0.0
  %1155 = vmatpush.msra.mxu0 0.0
  %1156 = vmatpush.msra.mxu0 %v168
  %1157 = vmatpush.msra.mxu0 %v167
  %1158 = vmatpush.msra.mxu0 %v166
  %1159 = vmatpush.msra.mxu0 %v165
  %1160 = vmatmul.f32.gmra.mxu0 %v1142
  %v1161 = vpop.f32.mrf.mxu0
  %v1162 = vadd.f32 %v189, %v1161
  %1163 = vdwg.mxu0
  %v1164 = vadd.f32 %v1141, %v1162
  %v1165 = vxor.u32 %v1164, 2147483648
  %v1166 = vmul.f32 %v1165, 1.442695
  %v1167 = vpow.pop %v1166
  %v1168 = vadd.f32 %v1167, 1.0
  %v1169 = vrcp.pop %v1168
  %v1170 = vmul.f32 %v1168, %v1169
  %v1171 = vsub.f32 1.0, %v1170
  %v1172 = vmul.f32 %v1169, %v1171
  %v1173 = vadd.f32 %v1169, %v1172
  %vm1174 = vweird.f32 %v1168
  %vm1175 = vweird.f32 %v1169
  %vm1176 = vmor %vm1174, %vm1175
  %v1177 = vsel %vm1176, %v1169, %v1173
  %v1178 = vand.u32 2147483647, %v1168
  %vm1179 = vcmp.eq.f32.partialorder %v1178, 8.507059e+37
  %v1180 = vand.u32 %v1168, 2147483648
  %v1181 = vor.u32 1.1754944e-38, %v1180
  %v1182 = vsel %vm1179, %v1181, %v1177
  %v1183 = vmul.f32 1.0, %v1182
  %1185 = vrot.lane.b32.xlu0 %v1162, 64
  %v1186 = vpop.permute.xlu0 %1185
  %v1188 = vmul.f32 %v1183, %v1186
  %1190 = vrot.lane.b32.xlu0 %v1188, 64
  %v1191 = vpop.permute.xlu0 %1190
  %v1193 = vadd.f32 %v1141, %v1191
  %v1194 = vtanh.pop %v1193
  %v1195 = vsub.f32 1.0, %v1183
  %1197 = vrot.lane.b32.xlu0 %v1194, 96
  %v1198 = vpop.permute.xlu0 %1197
  %v1200 = vmul.f32 %v1195, %v1198
  %v1201 = vmul.f32 %v1183, %v1129
  %v1202 = vadd.f32 %v1200, %v1201
  %1204 = vrot.lane.b32.xlu0 %v1202, 96
  %v1205 = vpop.permute.xlu0 %1204
  %1207 = vst.msk [vmem:[#allocation3 + $0x1a] sm:$0x3] %vm257, %v1205
  %1208 = vrot.lane.b32.xlu0 %v1202, 80
  %v1209 = vpop.permute.xlu0 %1208
  %1211 = vst.msk [vmem:[#allocation4 + $0x4] sm:$0x3] %vm257, %v1209
  %v1212 = vld [vmem:[#allocation2 + $0x1c] sm:$0x3]
  %v1213 = vld [vmem:[#allocation2 + $0x2] sm:$0x3]
  %v1214 = vsel %vm184, %v1212, %v1213
  %v1215 = vsel %vm118, %v1205, 0
  %1217 = vmatpush.msra.mxu0 0.0
  %1218 = vmatpush.msra.mxu0 0.0
  %1219 = vmatpush.msra.mxu0 0.0
  %1220 = vmatpush.msra.mxu0 0.0
  %1221 = vmatpush.msra.mxu0 0.0
  %1222 = vmatpush.msra.mxu0 0.0
  %1223 = vmatpush.msra.mxu0 0.0
  %1224 = vmatpush.msra.mxu0 0.0
  %1225 = vmatpush.msra.mxu0 0.0
  %1226 = vmatpush.msra.mxu0 0.0
  %1227 = vmatpush.msra.mxu0 0.0
  %1228 = vmatpush.msra.mxu0 0.0
  %1229 = vmatpush.msra.mxu0 %v168
  %1230 = vmatpush.msra.mxu0 %v167
  %1231 = vmatpush.msra.mxu0 %v166
  %1232 = vmatpush.msra.mxu0 %v165
  %1233 = vmatmul.f32.gmra.mxu0 %v1215
  %v1234 = vpop.f32.mrf.mxu0
  %v1235 = vadd.f32 %v189, %v1234
  %1236 = vdwg.mxu0
  %v1237 = vadd.f32 %v1214, %v1235
  %v1238 = vxor.u32 %v1237, 2147483648
  %v1239 = vmul.f32 %v1238, 1.442695
  %v1240 = vpow.pop %v1239
  %v1241 = vadd.f32 %v1240, 1.0
  %v1242 = vrcp.pop %v1241
  %v1243 = vmul.f32 %v1241, %v1242
  %v1244 = vsub.f32 1.0, %v1243
  %v1245 = vmul.f32 %v1242, %v1244
  %v1246 = vadd.f32 %v1242, %v1245
  %vm1247 = vweird.f32 %v1241
  %vm1248 = vweird.f32 %v1242
  %vm1249 = vmor %vm1247, %vm1248
  %v1250 = vsel %vm1249, %v1242, %v1246
  %v1251 = vand.u32 2147483647, %v1241
  %vm1252 = vcmp.eq.f32.partialorder %v1251, 8.507059e+37
  %v1253 = vand.u32 %v1241, 2147483648
  %v1254 = vor.u32 1.1754944e-38, %v1253
  %v1255 = vsel %vm1252, %v1254, %v1250
  %v1256 = vmul.f32 1.0, %v1255
  %1258 = vrot.lane.b32.xlu0 %v1235, 64
  %v1259 = vpop.permute.xlu0 %1258
  %v1261 = vmul.f32 %v1256, %v1259
  %1263 = vrot.lane.b32.xlu0 %v1261, 64
  %v1264 = vpop.permute.xlu0 %1263
  %v1266 = vadd.f32 %v1214, %v1264
  %v1267 = vtanh.pop %v1266
  %v1268 = vsub.f32 1.0, %v1256
  %1270 = vrot.lane.b32.xlu0 %v1267, 96
  %v1271 = vpop.permute.xlu0 %1270
  %v1273 = vmul.f32 %v1268, %v1271
  %v1274 = vmul.f32 %v1256, %v1202
  %v1275 = vadd.f32 %v1273, %v1274
  %1277 = vrot.lane.b32.xlu0 %v1275, 96
  %v1278 = vpop.permute.xlu0 %1277
  %1280 = vst.msk [vmem:[#allocation3 + $0x1c] sm:$0x3] %vm257, %v1278
  %1281 = vrot.lane.b32.xlu0 %v1275, 80
  %v1282 = vpop.permute.xlu0 %1281
  %1284 = vst.msk [vmem:[#allocation4 + $0x2] sm:$0x3] %vm257, %v1282
  %v1285 = vld [vmem:[#allocation2 + $0x1e] sm:$0x3]
  %v1286 = vld [vmem:[#allocation2] sm:$0x3]
  %v1287 = vsel %vm184, %v1285, %v1286
  %v1288 = vsel %vm118, %v1278, 0
  %1290 = vmatpush.msra.mxu0 0.0
  %1291 = vmatpush.msra.mxu0 0.0
  %1292 = vmatpush.msra.mxu0 0.0
  %1293 = vmatpush.msra.mxu0 0.0
  %1294 = vmatpush.msra.mxu0 0.0
  %1295 = vmatpush.msra.mxu0 0.0
  %1296 = vmatpush.msra.mxu0 0.0
  %1297 = vmatpush.msra.mxu0 0.0
  %1298 = vmatpush.msra.mxu0 0.0
  %1299 = vmatpush.msra.mxu0 0.0
  %1300 = vmatpush.msra.mxu0 0.0
  %1301 = vmatpush.msra.mxu0 0.0
  %1302 = vmatpush.msra.mxu0 %v168
  %1303 = vmatpush.msra.mxu0 %v167
  %1304 = vmatpush.msra.mxu0 %v166
  %1305 = vmatpush.msra.mxu0 %v165
  %1306 = vmatmul.f32.gmra.mxu0 %v1288
  %v1307 = vpop.f32.mrf.mxu0
  %v1308 = vadd.f32 %v189, %v1307
  %1309 = vdwg.mxu0
  %v1310 = vadd.f32 %v1287, %v1308
  %v1311 = vxor.u32 %v1310, 2147483648
  %v1312 = vmul.f32 %v1311, 1.442695
  %v1313 = vpow.pop %v1312
  %v1314 = vadd.f32 %v1313, 1.0
  %v1315 = vrcp.pop %v1314
  %v1316 = vmul.f32 %v1314, %v1315
  %v1317 = vsub.f32 1.0, %v1316
  %v1318 = vmul.f32 %v1315, %v1317
  %v1319 = vadd.f32 %v1315, %v1318
  %vm1320 = vweird.f32 %v1314
  %vm1321 = vweird.f32 %v1315
  %vm1322 = vmor %vm1320, %vm1321
  %v1323 = vsel %vm1322, %v1315, %v1319
  %v1324 = vand.u32 2147483647, %v1314
  %vm1325 = vcmp.eq.f32.partialorder %v1324, 8.507059e+37
  %v1326 = vand.u32 %v1314, 2147483648
  %v1327 = vor.u32 1.1754944e-38, %v1326
  %v1328 = vsel %vm1325, %v1327, %v1323
  %v1329 = vmul.f32 1.0, %v1328
  %1331 = vrot.lane.b32.xlu0 %v1308, 64
  %v1332 = vpop.permute.xlu0 %1331
  %v1334 = vmul.f32 %v1329, %v1332
  %1336 = vrot.lane.b32.xlu0 %v1334, 64
  %v1337 = vpop.permute.xlu0 %1336
  %v1339 = vadd.f32 %v1287, %v1337
  %v1340 = vtanh.pop %v1339
  %v1341 = vsub.f32 1.0, %v1329
  %1343 = vrot.lane.b32.xlu0 %v1340, 96
  %v1344 = vpop.permute.xlu0 %1343
  %v1346 = vmul.f32 %v1341, %v1344
  %v1347 = vmul.f32 %v1329, %v1275
  %v1348 = vadd.f32 %v1346, %v1347
  %1350 = vrot.lane.b32.xlu0 %v1348, 96
  %v1351 = vpop.permute.xlu0 %1350
  %1353 = vst.msk [vmem:[#allocation3 + $0x1e] sm:$0x3] %vm257, %v1351
  %1354 = vrot.lane.b32.xlu0 %v1348, 80
  %v1355 = vpop.permute.xlu0 %1354
  %1357 = vst.msk [vmem:[#allocation4] sm:$0x3] %vm257, %v1355
  %v1358 = vld [vmem:[#allocation3] sm:$0xff]
  %v1359 = vld [vmem:[#allocation3 + $0x8] sm:$0xff]
  %v1360 = vld [vmem:[#allocation3 + $0x10] sm:$0xff]
  %v1361 = vld [vmem:[#allocation3 + $0x18] sm:$0xff]
  %v1362 = vld [vmem:[#allocation4] sm:$0xff]
  %v1363 = vld [vmem:[#allocation4 + $0x8] sm:$0xff]
  %v1364 = vld [vmem:[#allocation4 + $0x10] sm:$0xff]
  %v1365 = vld [vmem:[#allocation4 + $0x18] sm:$0xff]
  %1370 = vrot.lane.b32.xlu0 %v1362, 16
  %v1371 = vpop.permute.xlu0 %1370
  %1372 = vrot.lane.b32.xlu0 %v1363, 16
  %v1373 = vpop.permute.xlu0 %1372
  %1374 = vrot.lane.b32.xlu0 %v1364, 16
  %v1375 = vpop.permute.xlu0 %1374
  %1376 = vrot.lane.b32.xlu0 %v1365, 16
  %v1377 = vpop.permute.xlu0 %1376
  %vm1382 = vcmask 130048
  %v1383 = vsel %vm1382, %v1358, %v1371
  %v1384 = vsel %vm1382, %v1359, %v1373
  %v1385 = vsel %vm1382, %v1360, %v1375
  %v1386 = vsel %vm1382, %v1361, %v1377
  %v1387 = vld [vmem:[%s9] sm:$0xff]
  %v1388 = vld [vmem:[%s9 + $0x8] sm:$0xff]
  %v1389 = vld [vmem:[%s9 + $0x10] sm:$0xff]
  %v1390 = vld [vmem:[%s9 + $0x18] sm:$0xff]
  %v1392 = vsel %vm118, %v1383, 0
  %v1395 = vsel %vm118, %v1384, 0
  %v1398 = vsel %vm118, %v1385, 0
  %v1401 = vsel %vm118, %v1386, 0
  %1403 = vmatpush.msra.mxu0 0.0
  %1404 = vmatpush.msra.mxu0 0.0
  %1405 = vmatpush.msra.mxu0 0.0
  %1406 = vmatpush.msra.mxu0 0.0
  %1407 = vmatpush.msra.mxu0 0.0
  %1408 = vmatpush.msra.mxu0 0.0
  %1409 = vmatpush.msra.mxu0 0.0
  %1410 = vmatpush.msra.mxu0 0.0
  %1411 = vmatpush.msra.mxu0 0.0
  %1412 = vmatpush.msra.mxu0 0.0
  %1413 = vmatpush.msra.mxu0 0.0
  %1414 = vmatpush.msra.mxu0 0.0
  %1415 = vmatpush.msra.mxu0 %v1390
  %1416 = vmatpush.msra.mxu0 %v1389
  %1417 = vmatpush.msra.mxu0 %v1388
  %1418 = vmatpush.msra.mxu0 %v1387
  %1419 = vmatmul.f32.gmra.mxu0 %v1392
  %v1420 = vpop.f32.mrf.mxu0
  %v1421 = vadd.f32 0.0, %v1420
  %1422 = vmatmul.f32.gmra.mxu0 %v1395
  %v1423 = vpop.f32.mrf.mxu0
  %v1424 = vadd.f32 0.0, %v1423
  %1425 = vmatmul.f32.gmra.mxu0 %v1398
  %v1426 = vpop.f32.mrf.mxu0
  %v1427 = vadd.f32 0.0, %v1426
  %1428 = vmatmul.f32.gmra.mxu0 %v1401
  %v1429 = vpop.f32.mrf.mxu0
  %v1430 = vadd.f32 0.0, %v1429
  %1431 = vdwg.mxu0
  %v1432 = vld [vmem:[%s10] sm:$0xff]
  %v1433 = vld [vmem:[%s10 + $0x8] sm:$0xff]
  %v1434 = vld [vmem:[%s10 + $0x10] sm:$0xff]
  %v1435 = vld [vmem:[%s10 + $0x18] sm:$0xff]
  %1436 = vxpose.xlu0.b32.start [1/16] %v1432, 128
  %1437 = vxpose.xlu0.b32.cont [2/16] %v1433, 128
  %1438 = vxpose.xlu0.b32.cont [3/16] %v1434, 128
  %1439 = vxpose.xlu0.b32.cont [4/16] %v1435, 128
  %1440 = vxpose.xlu0.b32.cont [5/16] 0.0, 128
  %1441 = vxpose.xlu0.b32.cont [6/16] 0.0, 128
  %1442 = vxpose.xlu0.b32.cont [7/16] 0.0, 128
  %1443 = vxpose.xlu0.b32.cont [8/16] 0.0, 128
  %1444 = vxpose.xlu0.b32.cont [9/16] 0.0, 128
  %1445 = vxpose.xlu0.b32.cont [10/16] 0.0, 128
  %1446 = vxpose.xlu0.b32.cont [11/16] 0.0, 128
  %1447 = vxpose.xlu0.b32.cont [12/16] 0.0, 128
  %1448 = vxpose.xlu0.b32.cont [13/16] 0.0, 128
  %1449 = vxpose.xlu0.b32.cont [14/16] 0.0, 128
  %1450 = vxpose.xlu0.b32.cont [15/16] 0.0, 128
  %1451 = vxpose.xlu0.b32.end [16/16] 0.0, 128
  %v1452 = vpop.trf.xlu0
  %v1453 = vpop.trf.xlu0
  %v1454 = vpop.trf.xlu0
  %v1455 = vpop.trf.xlu0
  %v1456 = vpop.trf.xlu0
  %v1457 = vpop.trf.xlu0
  %v1458 = vpop.trf.xlu0
  %v1459 = vpop.trf.xlu0
  %v1460 = vpop.trf.xlu0
  %v1461 = vpop.trf.xlu0
  %v1462 = vpop.trf.xlu0
  %v1463 = vpop.trf.xlu0
  %v1464 = vpop.trf.xlu0
  %v1465 = vpop.trf.xlu0
  %v1466 = vpop.trf.xlu0
  %v1467 = vpop.trf.xlu0
  %v1469 = vsel %vm118, %v1452, 0
  %1471 = vmatpush.xpose.msra.mxu0 0.0
  %1472 = vmatpush.xpose.msra.mxu0 0.0
  %1473 = vmatpush.xpose.msra.mxu0 0.0
  %1474 = vmatpush.xpose.msra.mxu0 0.0
  %1475 = vmatpush.xpose.msra.mxu0 0.0
  %1476 = vmatpush.xpose.msra.mxu0 0.0
  %1477 = vmatpush.xpose.msra.mxu0 0.0
  %1478 = vmatpush.xpose.msra.mxu0 0.0
  %1479 = vmatpush.xpose.msra.mxu0 0.0
  %1480 = vmatpush.xpose.msra.mxu0 0.0
  %1481 = vmatpush.xpose.msra.mxu0 0.0
  %1482 = vmatpush.xpose.msra.mxu0 0.0
  %1483 = vmatpush.xpose.msra.mxu0 %v1401
  %1484 = vmatpush.xpose.msra.mxu0 %v1398
  %1485 = vmatpush.xpose.msra.mxu0 %v1395
  %1486 = vmatpush.xpose.msra.mxu0 %v1392
  %1487 = vmatmul.f32.gmra.mxu0 %v1469
  %v1488 = vpop.f32.mrf.mxu0
  %v1489 = vadd.f32 0.0, %v1488
  %1490 = vdwg.mxu0
  %v1491 = vld [vmem:[%s11] sm:$0x1]
  %v1493 = vperm.slane %v1491, 0
  %v1495 = vmul.f32 %v1383, %v1493
  %v1496 = vmul.f32 %v1384, %v1493
  %v1497 = vmul.f32 %v1385, %v1493
  %v1498 = vmul.f32 %v1386, %v1493
  %1500 = vset.pattern.permute.xlu0 0
  %1501 = vperm.xlu0 %1500, %v1421
  %v1502 = vpop.permute.xlu0 %1501
  %1505 = vset.pattern.permute.xlu0 0
  %1506 = vperm.xlu0 %1505, %v1424
  %v1507 = vpop.permute.xlu0 %1506
  %1510 = vset.pattern.permute.xlu0 0
  %1511 = vperm.xlu0 %1510, %v1427
  %v1512 = vpop.permute.xlu0 %1511
  %1515 = vset.pattern.permute.xlu0 0
  %1516 = vperm.xlu0 %1515, %v1430
  %v1517 = vpop.permute.xlu0 %1516
  %v1520 = vsel %vm118, %v1495, 0
  %v1523 = vsel %vm118, %v1496, 0
  %v1526 = vsel %vm118, %v1497, 0
  %v1529 = vsel %vm118, %v1498, 0
  %1531 = vmatpush.xpose.msra.mxu0 0.0
  %1532 = vmatpush.xpose.msra.mxu0 0.0
  %1533 = vmatpush.xpose.msra.mxu0 0.0
  %1534 = vmatpush.xpose.msra.mxu0 0.0
  %1535 = vmatpush.xpose.msra.mxu0 0.0
  %1536 = vmatpush.xpose.msra.mxu0 0.0
  %1537 = vmatpush.xpose.msra.mxu0 0.0
  %1538 = vmatpush.xpose.msra.mxu0 0.0
  %1539 = vmatpush.xpose.msra.mxu0 0.0
  %1540 = vmatpush.xpose.msra.mxu0 0.0
  %1541 = vmatpush.xpose.msra.mxu0 0.0
  %1542 = vmatpush.xpose.msra.mxu0 0.0
  %1543 = vmatpush.xpose.msra.mxu0 %v1401
  %1544 = vmatpush.xpose.msra.mxu0 %v1398
  %1545 = vmatpush.xpose.msra.mxu0 %v1395
  %1546 = vmatpush.xpose.msra.mxu0 %v1392
  %1547 = vmatmul.f32.gmra.mxu0 %v1520
  %v1548 = vpop.f32.mrf.mxu0
  %v1549 = vadd.f32 %v1502, %v1548
  %1550 = vmatmul.f32.gmra.mxu0 %v1523
  %v1551 = vpop.f32.mrf.mxu0
  %v1552 = vadd.f32 %v1507, %v1551
  %1553 = vmatmul.f32.gmra.mxu0 %v1526
  %v1554 = vpop.f32.mrf.mxu0
  %v1555 = vadd.f32 %v1512, %v1554
  %1556 = vmatmul.f32.gmra.mxu0 %v1529
  %v1557 = vpop.f32.mrf.mxu0
  %v1558 = vadd.f32 %v1517, %v1557
  %1559 = vdwg.mxu0
  %v1560 = vperm.slane %v1489, 0
  %v1561 = vadd.f32 %v1549, %v1560
  %v1562 = vadd.f32 %v1552, %v1560
  %v1563 = vadd.f32 %v1555, %v1560
  %v1564 = vadd.f32 %v1558, %v1560
  %v1565 = vld [vmem:[%s1] sm:$0xff]
  %v1566 = vld [vmem:[%s1 + $0x8] sm:$0xff]
  %v1567 = vld [vmem:[%s1 + $0x10] sm:$0xff]
  %v1568 = vld [vmem:[%s1 + $0x18] sm:$0xff]
  %v1569 = vmul.f32 %v1565, %v1561
  %v1570 = vmul.f32 %v1566, %v1562
  %v1571 = vmul.f32 %v1567, %v1563
  %v1572 = vmul.f32 %v1568, %v1564
  %v1573 = vld [vmem:[%s2] sm:$0xff]
  %v1574 = vld [vmem:[%s2 + $0x8] sm:$0xff]
  %v1575 = vld [vmem:[%s2 + $0x10] sm:$0xff]
  %v1576 = vld [vmem:[%s2 + $0x18] sm:$0xff]
  %v1577 = vadd.f32 %v1569, %v1573
  %v1578 = vadd.f32 %v1570, %v1574
  %v1579 = vadd.f32 %v1571, %v1575
  %v1580 = vadd.f32 %v1572, %v1576
  %v1581 = vsel %vm118, %v1577, -inf
  %1582 = vmax.xlane.f32.xlu0 %v1581
  %v1583 = vpop.xlane.xlu0 %1582
  %v1584 = vsel %vm118, %v1578, -inf
  %1585 = vmax.xlane.f32.xlu0 %v1584
  %v1586 = vpop.xlane.xlu0 %1585
  %v1587 = vsel %vm118, %v1579, -inf
  %1588 = vmax.xlane.f32.xlu0 %v1587
  %v1589 = vpop.xlane.xlu0 %1588
  %v1590 = vsel %vm118, %v1580, -inf
  %1591 = vmax.xlane.f32.xlu0 %v1590
  %v1592 = vpop.xlane.xlu0 %1591
  %v1593 = vsub.f32 %v1577, %v1583
  %v1594 = vsub.f32 %v1578, %v1586
  %v1595 = vsub.f32 %v1579, %v1589
  %v1596 = vsub.f32 %v1580, %v1592
  %v1597 = vmul.f32 %v1593, 1.442695
  %v1598 = vpow.pop %v1597
  %v1599 = vmul.f32 %v1594, 1.442695
  %v1600 = vpow.pop %v1599
  %v1601 = vmul.f32 %v1595, 1.442695
  %v1602 = vpow.pop %v1601
  %v1603 = vmul.f32 %v1596, 1.442695
  %v1604 = vpow.pop %v1603
  %v1605 = vsel %vm118, %v1598, 0.0
  %1606 = vadd.xlane.f32.xlu0 %v1605
  %v1607 = vpop.xlane.xlu0 %1606
  %v1608 = vsel %vm118, %v1600, 0.0
  %1609 = vadd.xlane.f32.xlu0 %v1608
  %v1610 = vpop.xlane.xlu0 %1609
  %v1611 = vsel %vm118, %v1602, 0.0
  %1612 = vadd.xlane.f32.xlu0 %v1611
  %v1613 = vpop.xlane.xlu0 %1612
  %v1614 = vsel %vm118, %v1604, 0.0
  %1615 = vadd.xlane.f32.xlu0 %v1614
  %v1616 = vpop.xlane.xlu0 %1615
  %v1617 = vrcp.pop %v1607
  %v1618 = vrcp.pop %v1610
  %v1619 = vrcp.pop %v1613
  %v1620 = vrcp.pop %v1616
  %v1621 = vmul.f32 %v1598, %v1617
  %v1622 = vmul.f32 %v1600, %v1618
  %v1623 = vmul.f32 %v1602, %v1619
  %v1624 = vmul.f32 %v1604, %v1620
  %v1626 = vsel %vm118, %v1621, 0
  %v1629 = vsel %vm118, %v1622, 0
  %v1632 = vsel %vm118, %v1623, 0
  %v1635 = vsel %vm118, %v1624, 0
  %1637 = vmatpush.msra.mxu0 0.0
  %1638 = vmatpush.msra.mxu0 0.0
  %1639 = vmatpush.msra.mxu0 0.0
  %1640 = vmatpush.msra.mxu0 0.0
  %1641 = vmatpush.msra.mxu0 0.0
  %1642 = vmatpush.msra.mxu0 0.0
  %1643 = vmatpush.msra.mxu0 0.0
  %1644 = vmatpush.msra.mxu0 0.0
  %1645 = vmatpush.msra.mxu0 0.0
  %1646 = vmatpush.msra.mxu0 0.0
  %1647 = vmatpush.msra.mxu0 0.0
  %1648 = vmatpush.msra.mxu0 0.0
  %1649 = vmatpush.msra.mxu0 %v1386
  %1650 = vmatpush.msra.mxu0 %v1385
  %1651 = vmatpush.msra.mxu0 %v1384
  %1652 = vmatpush.msra.mxu0 %v1383
  %1653 = vmatmul.f32.gmra.mxu0 %v1626
  %v1654 = vpop.f32.mrf.mxu0
  %v1655 = vadd.f32 0.0, %v1654
  %1656 = vmatmul.f32.gmra.mxu0 %v1629
  %v1657 = vpop.f32.mrf.mxu0
  %v1658 = vadd.f32 0.0, %v1657
  %1659 = vmatmul.f32.gmra.mxu0 %v1632
  %v1660 = vpop.f32.mrf.mxu0
  %v1661 = vadd.f32 0.0, %v1660
  %1662 = vmatmul.f32.gmra.mxu0 %v1635
  %v1663 = vpop.f32.mrf.mxu0
  %v1664 = vadd.f32 0.0, %v1663
  %1665 = vdwg.mxu0
  %v1666 = vld [vmem:[%s12] sm:$0xff]
  %v1667 = vld [vmem:[%s12 + $0x8] sm:$0xff]
  %v1668 = vld [vmem:[%s12 + $0x10] sm:$0xff]
  %v1669 = vld [vmem:[%s12 + $0x18] sm:$0xff]
  %v1670 = vld [vmem:[%s13] sm:$0xff]
  %v1671 = vld [vmem:[%s13 + $0x8] sm:$0xff]
  %v1672 = vld [vmem:[%s13 + $0x10] sm:$0xff]
  %v1673 = vld [vmem:[%s13 + $0x18] sm:$0xff]
  %1674 = vmatpush.msra.mxu0 0.0
  %1675 = vmatpush.msra.mxu0 0.0
  %1676 = vmatpush.msra.mxu0 0.0
  %1677 = vmatpush.msra.mxu0 0.0
  %1678 = vmatpush.msra.mxu0 0.0
  %1679 = vmatpush.msra.mxu0 0.0
  %1680 = vmatpush.msra.mxu0 0.0
  %1681 = vmatpush.msra.mxu0 0.0
  %1682 = vmatpush.msra.mxu0 0.0
  %1683 = vmatpush.msra.mxu0 0.0
  %1684 = vmatpush.msra.mxu0 0.0
  %1685 = vmatpush.msra.mxu0 0.0
  %1686 = vmatpush.msra.mxu0 %v1673
  %1687 = vmatpush.msra.mxu0 %v1672
  %1688 = vmatpush.msra.mxu0 %v1671
  %1689 = vmatpush.msra.mxu0 %v1670
  %1690 = vmatmul.f32.gmra.mxu0 %v1392
  %v1691 = vpop.f32.mrf.mxu0
  %v1692 = vadd.f32 0.0, %v1691
  %1693 = vmatmul.f32.gmra.mxu0 %v1395
  %v1694 = vpop.f32.mrf.mxu0
  %v1695 = vadd.f32 0.0, %v1694
  %1696 = vmatmul.f32.gmra.mxu0 %v1398
  %v1697 = vpop.f32.mrf.mxu0
  %v1698 = vadd.f32 0.0, %v1697
  %1699 = vmatmul.f32.gmra.mxu0 %v1401
  %v1700 = vpop.f32.mrf.mxu0
  %v1701 = vadd.f32 0.0, %v1700
  %1702 = vdwg.mxu0
  %v1704 = vsel %vm118, %v1655, 0
  %v1707 = vsel %vm118, %v1658, 0
  %v1710 = vsel %vm118, %v1661, 0
  %v1713 = vsel %vm118, %v1664, 0
  %1715 = vmatpush.msra.mxu0 0.0
  %1716 = vmatpush.msra.mxu0 0.0
  %1717 = vmatpush.msra.mxu0 0.0
  %1718 = vmatpush.msra.mxu0 0.0
  %1719 = vmatpush.msra.mxu0 0.0
  %1720 = vmatpush.msra.mxu0 0.0
  %1721 = vmatpush.msra.mxu0 0.0
  %1722 = vmatpush.msra.mxu0 0.0
  %1723 = vmatpush.msra.mxu0 0.0
  %1724 = vmatpush.msra.mxu0 0.0
  %1725 = vmatpush.msra.mxu0 0.0
  %1726 = vmatpush.msra.mxu0 0.0
  %1727 = vmatpush.msra.mxu0 %v1669
  %1728 = vmatpush.msra.mxu0 %v1668
  %1729 = vmatpush.msra.mxu0 %v1667
  %1730 = vmatpush.msra.mxu0 %v1666
  %1731 = vmatmul.f32.gmra.mxu0 %v1704
  %v1732 = vpop.f32.mrf.mxu0
  %v1733 = vadd.f32 %v1692, %v1732
  %1734 = vmatmul.f32.gmra.mxu0 %v1707
  %v1735 = vpop.f32.mrf.mxu0
  %v1736 = vadd.f32 %v1695, %v1735
  %1737 = vmatmul.f32.gmra.mxu0 %v1710
  %v1738 = vpop.f32.mrf.mxu0
  %v1739 = vadd.f32 %v1698, %v1738
  %1740 = vmatmul.f32.gmra.mxu0 %v1713
  %v1741 = vpop.f32.mrf.mxu0
  %v1742 = vadd.f32 %v1701, %v1741
  %1743 = vdwg.mxu0
  %v1744 = vmul.f32 %v1383, %v1655
  %v1745 = vmul.f32 %v1384, %v1658
  %v1746 = vmul.f32 %v1385, %v1661
  %v1747 = vmul.f32 %v1386, %v1664
  %v1748 = vld [vmem:[%s14] sm:$0xff]
  %v1749 = vld [vmem:[%s14 + $0x8] sm:$0xff]
  %v1750 = vld [vmem:[%s14 + $0x10] sm:$0xff]
  %v1751 = vld [vmem:[%s14 + $0x18] sm:$0xff]
  %v1753 = vsel %vm118, %v1744, 0
  %v1756 = vsel %vm118, %v1745, 0
  %v1759 = vsel %vm118, %v1746, 0
  %v1762 = vsel %vm118, %v1747, 0
  %1764 = vmatpush.msra.mxu0 0.0
  %1765 = vmatpush.msra.mxu0 0.0
  %1766 = vmatpush.msra.mxu0 0.0
  %1767 = vmatpush.msra.mxu0 0.0
  %1768 = vmatpush.msra.mxu0 0.0
  %1769 = vmatpush.msra.mxu0 0.0
  %1770 = vmatpush.msra.mxu0 0.0
  %1771 = vmatpush.msra.mxu0 0.0
  %1772 = vmatpush.msra.mxu0 0.0
  %1773 = vmatpush.msra.mxu0 0.0
  %1774 = vmatpush.msra.mxu0 0.0
  %1775 = vmatpush.msra.mxu0 0.0
  %1776 = vmatpush.msra.mxu0 %v1751
  %1777 = vmatpush.msra.mxu0 %v1750
  %1778 = vmatpush.msra.mxu0 %v1749
  %1779 = vmatpush.msra.mxu0 %v1748
  %1780 = vmatmul.f32.gmra.mxu0 %v1753
  %v1781 = vpop.f32.mrf.mxu0
  %v1782 = vadd.f32 0.0, %v1781
  %1783 = vmatmul.f32.gmra.mxu0 %v1756
  %v1784 = vpop.f32.mrf.mxu0
  %v1785 = vadd.f32 0.0, %v1784
  %1786 = vmatmul.f32.gmra.mxu0 %v1759
  %v1787 = vpop.f32.mrf.mxu0
  %v1788 = vadd.f32 0.0, %v1787
  %1789 = vmatmul.f32.gmra.mxu0 %v1762
  %v1790 = vpop.f32.mrf.mxu0
  %v1791 = vadd.f32 0.0, %v1790
  %1792 = vdwg.mxu0
  %v1793 = vadd.f32 %v1733, %v1782
  %v1794 = vadd.f32 %v1736, %v1785
  %v1795 = vadd.f32 %v1739, %v1788
  %v1796 = vadd.f32 %v1742, %v1791
  %v1797 = vld [vmem:[%s15] sm:$0x1]
  %v1799 = vperm.slane %v1797, 0
  %v1801 = vadd.f32 %v1793, %v1799
  %v1802 = vadd.f32 %v1794, %v1799
  %v1803 = vadd.f32 %v1795, %v1799
  %v1804 = vadd.f32 %v1796, %v1799
  %v1805 = vmax.f32 %v1801, 0.0
  %v1806 = vmax.f32 %v1802, 0.0
  %v1807 = vmax.f32 %v1803, 0.0
  %v1808 = vmax.f32 %v1804, 0.0
  %v1809 = vadd.f32 %v53, %v1805
  %v1810 = vadd.f32 %v54, %v1806
  %v1811 = vadd.f32 %v55, %v1807
  %v1812 = vadd.f32 %v56, %v1808
  %1813 = vst [vmem:[%s16] sm:$0xff] %v1809
  %1814 = vst [vmem:[%s16 + $0x8] sm:$0xff] %v1810
  %1815 = vst [vmem:[%s16 + $0x10] sm:$0xff] %v1811
  %1816 = vst [vmem:[%s16 + $0x18] sm:$0xff] %v1812
  // Predicated region
  $region66: #{selfatt_forward.1} parent=0 // pred_check
    _
  $region67: #{selfatt_forward.1} parent=0 // pred_check_branch
    %1818 = sbr.rel (0) target = $region69
  $region68: #{selfatt_forward.1} parent=0 // pred_region
    _
  $region69: #{selfatt_forward.1} parent=0 // pred_fallthru
    _
  // Predicated region
  $region70: #{selfatt_forward.1} parent=0 // pred_check
    _
  $region71: #{selfatt_forward.1} parent=0 // pred_check_branch
    %1820 = sbr.rel (0) target = $region73
  $region72: #{selfatt_forward.1} parent=0 // pred_region
    _
  $region73: #{selfatt_forward.1} parent=0 // pred_fallthru
    _

</llo_original>
